<compile_context>
chip_gen: v7x
topology: tpu7x:2x2x1
jax: 0.10.0
libtpu: 0.0.40
codegen_flags: <defaults>
</compile_context>

<pallas_src>
import functools

import jax
import jax.numpy as jnp
from jax import lax
from jax.experimental import pallas as pl
from jax.experimental.pallas import tpu as pltpu


def _round_up(x, m):
    return (x + m - 1) // m * m


def _leaky(x, slope):
    return jnp.where(x >= 0, x, slope * x)


def _use_bf16_elementwise():
    """bf16 VALUs exist on v6e / v7x only; keep f32 elementwise on older gens."""
    try:
        kind = jax.devices()[0].device_kind.lower()
    except Exception:
        return False
    return ("v6" in kind) or ("v7" in kind) or ("7x" in kind)


def _vmem_capacity_bytes():
    try:
        info = pltpu.get_tpu_info()
        cap = getattr(info, "vmem_capacity_bytes", None)
        if cap:
            return int(cap)
    except Exception:
        pass
    kind = ""
    try:
        kind = jax.devices()[0].device_kind.lower()
    except Exception:
        pass
    if ("v7" in kind) or ("7x" in kind):
        return 64 * 1024 * 1024
    return 128 * 1024 * 1024


# ----------------------------------------------------------------------------
# Kernel
# ----------------------------------------------------------------------------
def depth_conv_block3_kernel(
    rmask_ref,                      # (1, TH+2, 1, Cp) row-validity mask (f32)
    x_ref, xt_ref, xb_ref,          # main tile + 1-row top/bottom halo (bf16)
    w_in_ref, b_in_ref,             # fused [adaptor?, conv1, conv2] 1x1
    w1_ref, b1_ref,                 # conv1 alone (for the halo rows)
    w_dw_ref, b_dw_ref,             # 3x3 depthwise (stored as (9, Cp), f32)
    w_oc_ref, b_oc_ref,             # DepthConv2.out_conv 1x1
    w_f1_ref, b_f1_ref,             # ConvFFN2.conv, (Cp, 4Cp)
    w_f2_ref, b_f2_ref,             # ConvFFN2.conv_out
    out_ref,
    *, slope_depth_conv, slope_ffn, has_adaptor, dw_bf16,
):
    TH = x_ref.shape[1]
    W = x_ref.shape[2]
    Cin = x_ref.shape[3]
    Cp = w_oc_ref.shape[0]
    dw_dtype = jnp.bfloat16 if dw_bf16 else jnp.float32

    # ---- fused [adaptor?, conv1, conv2] 1x1 on the main tile (MXU, bf16) ----
    xf = x_ref[0].reshape(TH * W, Cin)                       # free reshape
    y = jnp.dot(xf, w_in_ref[...], preferred_element_type=jnp.float32)
    y = y + b_in_ref[...]
    if has_adaptor:
        identity = y[:, 0:Cp]
        t_main = y[:, Cp:2 * Cp]
        x2 = y[:, 2 * Cp:3 * Cp]
    else:
        # in_ch == out_ch: PyTorch passthrough identity (no eye-matmul).
        identity = xf.astype(jnp.float32)
        t_main = y[:, 0:Cp]
        x2 = y[:, Cp:2 * Cp]

    # ---- conv1 recomputed on the two 1-row halos (tiny MXU matmul) ----------
    xh = jnp.concatenate([xt_ref[0, 0], xb_ref[0, 0]], axis=0)       # (2W, Cin)
    th = jnp.dot(xh, w1_ref[...], preferred_element_type=jnp.float32)
    th = th + b1_ref[...]

    # ---- conv1 activation, compute-dtype cast, zero out-of-image rows -------
    t_top = _leaky(th[:W], slope_depth_conv).astype(dw_dtype).reshape(1, W, Cp)
    t_bot = _leaky(th[W:], slope_depth_conv).astype(dw_dtype).reshape(1, W, Cp)
    t_mid = _leaky(t_main, slope_depth_conv).astype(dw_dtype).reshape(TH, W, Cp)
    t_all = jnp.concatenate([t_top, t_mid, t_bot], axis=0)           # (TH+2,W,Cp)
    # Rows outside the image (halo at the image border, garbage rows of a
    # partial tail tile) become the depthwise conv's zero padding.
    t_all = jnp.where(rmask_ref[0] > 0.5, t_all, jnp.zeros((), dw_dtype))

    # ---- 3x3 depthwise: 2 shifted-column copies, row taps are free slices ---
    zcol = jnp.zeros((TH + 2, 1, Cp), dw_dtype)
    t_wm = jnp.concatenate([zcol, t_all[:, :W - 1, :]], axis=1)      # col w-1
    t_wp = jnp.concatenate([t_all[:, 1:, :], zcol], axis=1)          # col w+1
    cols = (t_wm, t_all, t_wp)

    wdw = w_dw_ref[...].astype(dw_dtype)                             # (9, Cp)
    # Seed with the centre tap + bias (saves a zeros slab and one add);
    # multiplies in compute dtype, accumulation in f32.
    acc = cols[1][1:TH + 1] * wdw[4] + b_dw_ref[...]
    for dy in range(3):
        for dx in range(3):
            if dy == 1 and dx == 1:
                continue
            acc = acc + cols[dx][dy:dy + TH] * wdw[3 * dy + dx]
    x1 = acc.reshape(TH * W, Cp)                                     # f32

    # ---- out_conv(x1 * x2) + identity ---------------------------------------
    m = (x1 * x2).astype(jnp.bfloat16)
    d = identity + b_oc_ref[...] + jnp.dot(
        m, w_oc_ref[...], preferred_element_type=jnp.float32)

    # ---- ConvFFN2: single [Cp, 4Cp] matmul, lane-aligned split at 2*Cp ------
    d_bf = d.astype(jnp.bfloat16)
    f = jnp.dot(d_bf, w_f1_ref[...], preferred_element_type=jnp.float32)
    f = f + b_f1_ref[...]
    f1 = f[:, :2 * Cp]
    f2 = f[:, 2 * Cp:]
    g = (f1 * _leaky(f2, slope_ffn)).astype(jnp.bfloat16)
    ffn = jnp.dot(g, w_f2_ref[...], preferred_element_type=jnp.float32)
    ffn = ffn + b_f2_ref[...]
    out = d + ffn

    out_ref[0] = out.reshape(TH, W, Cp).astype(out_ref.dtype)


# ----------------------------------------------------------------------------
# Host-side preparation / wrapper
# ----------------------------------------------------------------------------
def _prepare_weights(params, in_ch, out_ch, cin_p, cp):
    C = out_ch
    bf = jnp.bfloat16

    def padw(w, rows, cols):
        return jnp.pad(w, ((0, rows - w.shape[0]), (0, cols - w.shape[1])))

    def padb(b, cols):
        return jnp.pad(b, ((0, 0), (0, cols - b.shape[1])))

    w1 = padw(params['w1'], cin_p, cp)
    b1 = padb(params['b1'], cp)
    w2 = padw(params['w2'], cin_p, cp)
    b2 = padb(params['b2'], cp)
    if 'w_ad' in params:
        w_ad = padw(params['w_ad'], cin_p, cp)
        b_ad = padb(params['b_ad'], cp)
        w_in = jnp.concatenate([w_ad, w1, w2], axis=1)
        b_in = jnp.concatenate([b_ad, b1, b2], axis=1)
    else:
        w_in = jnp.concatenate([w1, w2], axis=1)
        b_in = jnp.concatenate([b1, b2], axis=1)

    w_dw = jnp.pad(params['w_dw'], ((0, 0), (0, 0), (0, cp - C))).reshape(9, cp)
    b_dw = padb(params['b_dw'], cp)
    w_oc = padw(params['w_oc'], cp, cp)
    b_oc = padb(params['b_oc'], cp)
    # ConvFFN2.conv as a single (Cp, 4Cp) weight: columns [0, 2C) -> f1 half,
    # [2C, 4C) -> f2 half, each padded so the f1/f2 split lands at 2*Cp.
    w_f1 = jnp.concatenate([padw(params['w_f1'][:, :2 * C], cp, 2 * cp),
                            padw(params['w_f1'][:, 2 * C:], cp, 2 * cp)], axis=1)
    b_f1 = jnp.concatenate([padb(params['b_f1'][:, :2 * C], 2 * cp),
                            padb(params['b_f1'][:, 2 * C:], 2 * cp)], axis=1)
    w_f2 = padw(params['w_f2'], 2 * cp, cp)
    b_f2 = padb(params['b_f2'], cp)

    return [w_in.astype(bf), b_in, w1.astype(bf), b1,
            w_dw.astype(jnp.float32), b_dw,
            w_oc.astype(bf), b_oc,
            w_f1.astype(bf), b_f1,
            w_f2.astype(bf), b_f2]


def _pick_block_rows(H, W, cp, cin_p, act_budget, dw_bf16):
    dsz = 2 if dw_bf16 else 4
    # Rough per-row live-slab estimate: f32 fused-conv output / accumulator /
    # residual / FFN intermediates, compute-dtype depthwise slabs, and the
    # double-buffered bf16 input + f32 output tiles.
    per_row = W * ((60 + 3 * dsz) * cp + 6 * cin_p)
    target = max(8, act_budget // max(per_row, 1))
    if target >= H:
        return H
    # Prefer a divisor of H near the target so there is no small tail tile,
    # but never shrink by more than ~25% (a masked tail beats a tiny tile).
    for th in range(target, max(8, (3 * target) // 4) - 1, -1):
        if H % th == 0:
            return th
    return target


def depth_conv_block3(x_nhwc, params, slope_depth_conv=0.01, slope_ffn=0.1,
                      block_rows=None, trim_output=True):
    """x_nhwc: (N, H, W, Cin) float32. Returns (N, H, W, Cout) float32
    (or the lane-padded (N, H, W, Cp) tensor if trim_output=False)."""
    N, H, W, Cin = x_nhwc.shape
    C = params['w1'].shape[1]
    has_adaptor = 'w_ad' in params
    if not has_adaptor:
        assert Cin == C, "module has no adaptor only when in_ch == out_ch"

    Cp = _round_up(C, 128)
    Cin_p = _round_up(Cin, 128)

    dw_bf16 = _use_bf16_elementwise()
    vmem_cap = _vmem_capacity_bytes()
    if vmem_cap <= 80 * 1024 * 1024:       # v7x-class: 64 MiB physical VMEM
        vmem_limit = 44 * 1024 * 1024
        act_budget = 26 * 1024 * 1024
    else:                                   # v5e / v6e: 128 MiB physical VMEM
        vmem_limit = 96 * 1024 * 1024
        act_budget = 60 * 1024 * 1024

    weights = _prepare_weights(params, Cin, C, Cin_p, Cp)
    # Leave room for the (default double-buffered) weight set.
    wbytes = 2 * sum(int(w.size) * w.dtype.itemsize for w in weights)
    act_budget = max(act_budget - wbytes, 4 * 1024 * 1024)

    if block_rows is None:
        block_rows = _pick_block_rows(H, W, Cp, Cin_p, act_budget, dw_bf16)
    TH = min(int(block_rows), H)
    n_tiles = -(-H // TH)                   # ceil-div: TH need not divide H

    xp = jnp.pad(x_nhwc, ((0, 0), (0, 0), (0, 0),
                          (0, Cin_p - Cin))).astype(jnp.bfloat16)

    # Per-tile row-validity mask for the (TH+2)-row conv1 slab: slab row j of
    # tile i is image row i*TH + j - 1; rows outside [0, H) are zeroed
    # in-kernel (they are the 3x3 conv's zero padding / tail-tile garbage).
    grow = (jnp.arange(n_tiles) * TH)[:, None] + jnp.arange(TH + 2)[None, :] - 1
    valid = ((grow >= 0) & (grow < H)).astype(jnp.float32)        # (n_tiles, TH+2)
    rmask = jnp.broadcast_to(valid[:, :, None, None],
                             (n_tiles, TH + 2, 1, Cp))

    kernel = functools.partial(
        depth_conv_block3_kernel,
        slope_depth_conv=slope_depth_conv, slope_ffn=slope_ffn,
        has_adaptor=has_adaptor, dw_bf16=dw_bf16)

    def const_spec(a):
        nd = a.ndim
        return pl.BlockSpec(a.shape, lambda n, i, _nd=nd: (0,) * _nd)

    rmask_spec = pl.BlockSpec((1, TH + 2, 1, Cp), lambda n, i: (i, 0, 0, 0))
    x_main_spec = pl.BlockSpec((1, TH, W, Cin_p), lambda n, i: (n, i, 0, 0))
    # 1-row halos: block size 1 along H -> block index == row index (clamped;
    # out-of-image halo rows are zeroed in-kernel via the row mask).
    x_top_spec = pl.BlockSpec(
        (1, 1, W, Cin_p), lambda n, i: (n, jnp.maximum(i * TH - 1, 0), 0, 0))
    x_bot_spec = pl.BlockSpec(
        (1, 1, W, Cin_p), lambda n, i: (n, jnp.minimum((i + 1) * TH, H - 1), 0, 0))

    in_specs = ([rmask_spec, x_main_spec, x_top_spec, x_bot_spec]
                + [const_spec(a) for a in weights])
    out_specs = pl.BlockSpec((1, TH, W, Cp), lambda n, i: (n, i, 0, 0))

    out_padded = pl.pallas_call(
        kernel,
        out_shape=jax.ShapeDtypeStruct((N, H, W, Cp), jnp.float32),
        grid=(N, n_tiles),
        in_specs=in_specs,
        out_specs=out_specs,
        compiler_params=pltpu.CompilerParams(
            dimension_semantics=("parallel", "parallel"),
            vmem_limit_bytes=vmem_limit),
    )(rmask, xp, xp, xp, *weights)

    if trim_output and C != Cp:
        return out_padded[..., :C]
    return out_padded


# ----------------------------------------------------------------------------
# Synthetic params + pure-JAX reference (mirrors the kernel's cast points)
# ----------------------------------------------------------------------------
def init_params(key, in_ch, out_ch):
    C = out_ch
    ks = jax.random.split(key, 14)

    def nrm(k, shape, scale):
        return (scale * jax.random.normal(k, shape)).astype(jnp.float32)

    p = {}
    if in_ch != out_ch:
        p['w_ad'] = nrm(ks[0], (in_ch, C), 1.0 / (in_ch ** 0.5))
        p['b_ad'] = nrm(ks[1], (1, C), 0.1)
    p['w1'] = nrm(ks[2], (in_ch, C), 1.0 / (in_ch ** 0.5))
    p['b1'] = nrm(ks[3], (1, C), 0.1)
    p['w_dw'] = nrm(ks[4], (3, 3, C), 1.0 / 3.0)
    p['b_dw'] = nrm(ks[5], (1, C), 0.1)
    p['w2'] = nrm(ks[6], (in_ch, C), 1.0 / (in_ch ** 0.5))
    p['b2'] = nrm(ks[7], (1, C), 0.1)
    p['w_oc'] = nrm(ks[8], (C, C), 1.0 / (C ** 0.5))
    p['b_oc'] = nrm(ks[9], (1, C), 0.1)
    p['w_f1'] = nrm(ks[10], (C, 4 * C), 1.0 / (C ** 0.5))
    p['b_f1'] = nrm(ks[11], (1, 4 * C), 0.1)
    p['w_f2'] = nrm(ks[12], (2 * C, C), 1.0 / ((2 * C) ** 0.5))
    p['b_f2'] = nrm(ks[13], (1, C), 0.1)
    return p


def reference_nhwc(x, p, slope_depth_conv=0.01, slope_ffn=0.1, dw_bf16=False):
    """Pure-JAX reference mirroring the kernel's bf16 quantization points."""
    C = p['w1'].shape[1]
    hp = jax.lax.Precision.HIGHEST

    def q(a):
        return a.astype(jnp.bfloat16).astype(jnp.float32)

    def c1(t, w, b):
        return (jnp.einsum('nhwc,cd->nhwd', q(t), q(w), precision=hp)
                + b.reshape(1, 1, 1, -1))

    xq = q(x)
    identity = c1(xq, p['w_ad'], p['b_ad']) if 'w_ad' in p else xq
    t = c1(xq, p['w1'], p['b1'])
    t = jnp.where(t >= 0, t, slope_depth_conv * t)

    # 3x3 depthwise conv, zero padding; optionally emulate the kernel's bf16
    # taps (bf16 operands and per-tap bf16 products, f32 accumulation).
    w_dw = p['w_dw']
    if dw_bf16:
        t_dw = q(t)
        w_dw = q(w_dw)
    else:
        t_dw = t
    _, H_, W_, _ = t.shape
    tp = jnp.pad(t_dw, ((0, 0), (1, 1), (1, 1), (0, 0)))
    acc = jnp.zeros_like(t)
    for dy in range(3):
        for dx in range(3):
            tap = tp[:, dy:dy + H_, dx:dx + W_, :] * w_dw[dy, dx]
            acc = acc + (q(tap) if dw_bf16 else tap)
    x1 = acc + p['b_dw'].reshape(1, 1, 1, -1)

    x2 = c1(xq, p['w2'], p['b2'])
    d = identity + c1(x1 * x2, p['w_oc'], p['b_oc'])
    f = c1(d, p['w_f1'], p['b_f1'])
    f1 = f[..., :2 * C]
    f2 = f[..., 2 * C:]
    f2 = jnp.where(f2 >= 0, f2, slope_ffn * f2)
    return d + c1(f1 * f2, p['w_f2'], p['b_f2'])


if __name__ == "__main__":
    key = jax.random.PRNGKey(0)
    kx, kp, kx2, kp2 = jax.random.split(key, 4)
    dw_bf16 = _use_bf16_elementwise()

    # ---- case 1: in_ch == out_ch (no adaptor), NCHW (2, 4, 16, 16) ----------
    N, C_IN, C_OUT, HW = 2, 4, 4, 16
    x_nchw = jax.random.normal(kx, (N, C_IN, HW, HW), dtype=jnp.float32)
    x_nhwc = jnp.transpose(x_nchw, (0, 2, 3, 1))
    params = init_params(kp, C_IN, C_OUT)
    ref = jax.block_until_ready(reference_nhwc(x_nhwc, params, dw_bf16=dw_bf16))

    # block_rows=8 -> two full row tiles (halo / boundary path).
    out = jax.block_until_ready(depth_conv_block3(x_nhwc, params, block_rows=8))
    assert out.shape == (N, HW, HW, C_OUT)
    err = float(jnp.max(jnp.abs(out - ref)))
    assert err < 2e-2, f"full-tile path error {err}"

    # block_rows=6 -> ceil-div grid with a partial tail tile (rows masked
    # in-kernel; out-of-bounds output rows dropped by the clamped DMA).
    out2 = jax.block_until_ready(depth_conv_block3(x_nhwc, params, block_rows=6))
    err2 = float(jnp.max(jnp.abs(out2 - ref)))
    assert err2 < 2e-2, f"tail-tile path error {err2}"

    # ---- case 2: in_ch != out_ch (adaptor path), NCHW (2, 8, 16, 16) --------
    x2_nchw = jax.random.normal(kx2, (N, 8, HW, HW), dtype=jnp.float32)
    x2_nhwc = jnp.transpose(x2_nchw, (0, 2, 3, 1))
    params2 = init_params(kp2, 8, C_OUT)
    ref3 = jax.block_until_ready(reference_nhwc(x2_nhwc, params2, dw_bf16=dw_bf16))
    out3 = jax.block_until_ready(depth_conv_block3(x2_nhwc, params2, block_rows=16))
    err3 = float(jnp.max(jnp.abs(out3 - ref3)))
    assert err3 < 2e-2, f"adaptor path error {err3}"

    print("KERNEL_OK")
</pallas_src>

<mosaic_0001>
module attributes {stable_mosaic.version = 11 : i64} {
  func.func @depth_conv_block3_kernel(%arg0: i32, %arg1: i32, %arg2: memref<1x10x1x128xf32, #tpu.memory_space<vmem>>, %arg3: memref<1x8x16x128xbf16, #tpu.memory_space<vmem>>, %arg4: memref<1x1x16x128xbf16, #tpu.memory_space<vmem>>, %arg5: memref<1x1x16x128xbf16, #tpu.memory_space<vmem>>, %arg6: memref<128x256xbf16, #tpu.memory_space<vmem>>, %arg7: memref<1x256xf32, #tpu.memory_space<vmem>>, %arg8: memref<128x128xbf16, #tpu.memory_space<vmem>>, %arg9: memref<1x128xf32, #tpu.memory_space<vmem>>, %arg10: memref<9x128xf32, #tpu.memory_space<vmem>>, %arg11: memref<1x128xf32, #tpu.memory_space<vmem>>, %arg12: memref<128x128xbf16, #tpu.memory_space<vmem>>, %arg13: memref<1x128xf32, #tpu.memory_space<vmem>>, %arg14: memref<128x512xbf16, #tpu.memory_space<vmem>>, %arg15: memref<1x512xf32, #tpu.memory_space<vmem>>, %arg16: memref<256x128xbf16, #tpu.memory_space<vmem>>, %arg17: memref<1x128xf32, #tpu.memory_space<vmem>>, %arg18: memref<1x8x16x128xf32, #tpu.memory_space<vmem>>) attributes {dimension_semantics = [#tpu.dimension_semantics<parallel>, #tpu.dimension_semantics<parallel>], iteration_bounds = array<i64: 2, 2>, scalar_prefetch = 0 : i64, scratch_operands = 0 : i64, tpu.core_type = #tpu.core_type<tc>, window_params = [{transform_indices = @transform_0, window_bounds = array<i64: 1, 10, 1, 128>}, {transform_indices = @transform_1, window_bounds = array<i64: 1, 8, 16, 128>}, {transform_indices = @transform_2, window_bounds = array<i64: 1, 1, 16, 128>}, {transform_indices = @transform_3, window_bounds = array<i64: 1, 1, 16, 128>}, {pipeline_mode = #tpu.pipeline_mode<synchronous>, transform_indices = @transform_4, window_bounds = array<i64: 128, 256>}, {pipeline_mode = #tpu.pipeline_mode<synchronous>, transform_indices = @transform_5, window_bounds = array<i64: 1, 256>}, {pipeline_mode = #tpu.pipeline_mode<synchronous>, transform_indices = @transform_6, window_bounds = array<i64: 128, 128>}, {pipeline_mode = #tpu.pipeline_mode<synchronous>, transform_indices = @transform_7, window_bounds = array<i64: 1, 128>}, {pipeline_mode = #tpu.pipeline_mode<synchronous>, transform_indices = @transform_8, window_bounds = array<i64: 9, 128>}, {pipeline_mode = #tpu.pipeline_mode<synchronous>, transform_indices = @transform_9, window_bounds = array<i64: 1, 128>}, {pipeline_mode = #tpu.pipeline_mode<synchronous>, transform_indices = @transform_10, window_bounds = array<i64: 128, 128>}, {pipeline_mode = #tpu.pipeline_mode<synchronous>, transform_indices = @transform_11, window_bounds = array<i64: 1, 128>}, {pipeline_mode = #tpu.pipeline_mode<synchronous>, transform_indices = @transform_12, window_bounds = array<i64: 128, 512>}, {pipeline_mode = #tpu.pipeline_mode<synchronous>, transform_indices = @transform_13, window_bounds = array<i64: 1, 512>}, {pipeline_mode = #tpu.pipeline_mode<synchronous>, transform_indices = @transform_14, window_bounds = array<i64: 256, 128>}, {pipeline_mode = #tpu.pipeline_mode<synchronous>, transform_indices = @transform_15, window_bounds = array<i64: 1, 128>}, {transform_indices = @transform_16, window_bounds = array<i64: 1, 8, 16, 128>}]} {
    %c0 = arith.constant 0 : index
    %c0_0 = arith.constant 0 : index
    %c0_1 = arith.constant 0 : index
    %c0_2 = arith.constant 0 : index
    %0 = vector.load %arg3[%c0, %c0_0, %c0_1, %c0_2] : memref<1x8x16x128xbf16, #tpu.memory_space<vmem>>, vector<1x8x16x128xbf16>
    %1 = vector.shape_cast %0 : vector<1x8x16x128xbf16> to vector<8x16x128xbf16>
    %2 = vector.shape_cast %1 : vector<8x16x128xbf16> to vector<128x128xbf16>
    %c0_3 = arith.constant 0 : index
    %c0_4 = arith.constant 0 : index
    %3 = vector.load %arg6[%c0_3, %c0_4] : memref<128x256xbf16, #tpu.memory_space<vmem>>, vector<128x256xbf16>
    %cst = arith.constant dense<0.000000e+00> : vector<128x256xf32>
    %4 = tpu.matmul %2, %3, %cst {dimension_numbers = #tpu.dot_dimension_numbers<[1], [0], [0], [1], [0, 0, 1, 1], [], []>} : vector<128x128xbf16>, vector<128x256xbf16>, vector<128x256xf32> -> vector<128x256xf32>
    %c0_5 = arith.constant 0 : index
    %c0_6 = arith.constant 0 : index
    %5 = vector.load %arg7[%c0_5, %c0_6] : memref<1x256xf32, #tpu.memory_space<vmem>>, vector<1x256xf32>
    %6 = vector.broadcast %5 : vector<1x256xf32> to vector<128x256xf32>
    %7 = arith.addf %4, %6 : vector<128x256xf32>
    %8 = arith.extf %2 : vector<128x128xbf16> to vector<128x128xf32>
    %9 = vector.extract_strided_slice %7 {offsets = [0, 0], sizes = [128, 128], strides = [1, 1]} : vector<128x256xf32> to vector<128x128xf32>
    %10 = vector.extract_strided_slice %7 {offsets = [0, 128], sizes = [128, 128], strides = [1, 1]} : vector<128x256xf32> to vector<128x128xf32>
    %c0_7 = arith.constant 0 : index
    %c0_8 = arith.constant 0 : index
    %c0_9 = arith.constant 0 : index
    %c0_10 = arith.constant 0 : index
    %11 = vector.load %arg4[%c0_7, %c0_8, %c0_9, %c0_10] : memref<1x1x16x128xbf16, #tpu.memory_space<vmem>>, vector<1x1x16x128xbf16>
    %12 = vector.shape_cast %11 : vector<1x1x16x128xbf16> to vector<16x128xbf16>
    %c0_11 = arith.constant 0 : index
    %c0_12 = arith.constant 0 : index
    %c0_13 = arith.constant 0 : index
    %c0_14 = arith.constant 0 : index
    %13 = vector.load %arg5[%c0_11, %c0_12, %c0_13, %c0_14] : memref<1x1x16x128xbf16, #tpu.memory_space<vmem>>, vector<1x1x16x128xbf16>
    %14 = vector.shape_cast %13 : vector<1x1x16x128xbf16> to vector<16x128xbf16>
    %15 = tpu.concatenate %12, %14 in 0 : vector<16x128xbf16>, vector<16x128xbf16> -> vector<32x128xbf16>
    %c0_15 = arith.constant 0 : index
    %c0_16 = arith.constant 0 : index
    %16 = vector.load %arg8[%c0_15, %c0_16] : memref<128x128xbf16, #tpu.memory_space<vmem>>, vector<128x128xbf16>
    %cst_17 = arith.constant dense<0.000000e+00> : vector<32x128xf32>
    %17 = tpu.matmul %15, %16, %cst_17 {dimension_numbers = #tpu.dot_dimension_numbers<[1], [0], [0], [1], [0, 0, 1, 1], [], []>} : vector<32x128xbf16>, vector<128x128xbf16>, vector<32x128xf32> -> vector<32x128xf32>
    %c0_18 = arith.constant 0 : index
    %c0_19 = arith.constant 0 : index
    %18 = vector.load %arg9[%c0_18, %c0_19] : memref<1x128xf32, #tpu.memory_space<vmem>>, vector<1x128xf32>
    %19 = vector.broadcast %18 : vector<1x128xf32> to vector<32x128xf32>
    %20 = arith.addf %17, %19 : vector<32x128xf32>
    %21 = vector.extract_strided_slice %20 {offsets = [0, 0], sizes = [16, 128], strides = [1, 1]} : vector<32x128xf32> to vector<16x128xf32>
    %cst_20 = arith.constant 0.000000e+00 : f32
    %22 = vector.broadcast %cst_20 : f32 to vector<16x128xf32>
    %23 = arith.cmpf oge, %21, %22 : vector<16x128xf32>
    %cst_21 = arith.constant 0.00999999977 : f32
    %24 = vector.broadcast %cst_21 : f32 to vector<16x128xf32>
    %25 = arith.mulf %24, %21 : vector<16x128xf32>
    %26 = arith.select %23, %21, %25 : vector<16x128xi1>, vector<16x128xf32>
    %27 = vector.shape_cast %26 : vector<16x128xf32> to vector<1x16x128xf32>
    %28 = vector.extract_strided_slice %20 {offsets = [16, 0], sizes = [16, 128], strides = [1, 1]} : vector<32x128xf32> to vector<16x128xf32>
    %cst_22 = arith.constant 0.000000e+00 : f32
    %29 = vector.broadcast %cst_22 : f32 to vector<16x128xf32>
    %30 = arith.cmpf oge, %28, %29 : vector<16x128xf32>
    %cst_23 = arith.constant 0.00999999977 : f32
    %31 = vector.broadcast %cst_23 : f32 to vector<16x128xf32>
    %32 = arith.mulf %31, %28 : vector<16x128xf32>
    %33 = arith.select %30, %28, %32 : vector<16x128xi1>, vector<16x128xf32>
    %34 = vector.shape_cast %33 : vector<16x128xf32> to vector<1x16x128xf32>
    %cst_24 = arith.constant 0.000000e+00 : f32
    %35 = vector.broadcast %cst_24 : f32 to vector<128x128xf32>
    %36 = arith.cmpf oge, %9, %35 : vector<128x128xf32>
    %cst_25 = arith.constant 0.00999999977 : f32
    %37 = vector.broadcast %cst_25 : f32 to vector<128x128xf32>
    %38 = arith.mulf %37, %9 : vector<128x128xf32>
    %39 = arith.select %36, %9, %38 : vector<128x128xi1>, vector<128x128xf32>
    %40 = vector.shape_cast %39 : vector<128x128xf32> to vector<8x16x128xf32>
    %41 = tpu.concatenate %27, %40, %34 in 0 : vector<1x16x128xf32>, vector<8x16x128xf32>, vector<1x16x128xf32> -> vector<10x16x128xf32>
    %c0_26 = arith.constant 0 : index
    %c0_27 = arith.constant 0 : index
    %c0_28 = arith.constant 0 : index
    %c0_29 = arith.constant 0 : index
    %42 = vector.load %arg2[%c0_26, %c0_27, %c0_28, %c0_29] : memref<1x10x1x128xf32, #tpu.memory_space<vmem>>, vector<1x10x1x128xf32>
    %43 = vector.shape_cast %42 : vector<1x10x1x128xf32> to vector<10x1x128xf32>
    %cst_30 = arith.constant 5.000000e-01 : f32
    %44 = vector.broadcast %cst_30 : f32 to vector<10x1x128xf32>
    %45 = arith.cmpf ogt, %43, %44 : vector<10x1x128xf32>
    %cst_31 = arith.constant 0.000000e+00 : f32
    %46 = vector.shape_cast %45 : vector<10x1x128xi1> to vector<10x1x128xi1>
    %47 = vector.broadcast %46 : vector<10x1x128xi1> to vector<10x16x128xi1>
    %48 = vector.broadcast %cst_31 : f32 to vector<10x16x128xf32>
    %49 = arith.select %47, %41, %48 : vector<10x16x128xi1>, vector<10x16x128xf32>
    %cst_32 = arith.constant 0.000000e+00 : f32
    %50 = vector.broadcast %cst_32 : f32 to vector<10x1x128xf32>
    %51 = vector.extract_strided_slice %49 {offsets = [0, 0, 0], sizes = [10, 15, 128], strides = [1, 1, 1]} : vector<10x16x128xf32> to vector<10x15x128xf32>
    %52 = tpu.concatenate %50, %51 in 1 : vector<10x1x128xf32>, vector<10x15x128xf32> -> vector<10x16x128xf32>
    %53 = vector.extract_strided_slice %49 {offsets = [0, 1, 0], sizes = [10, 15, 128], strides = [1, 1, 1]} : vector<10x16x128xf32> to vector<10x15x128xf32>
    %54 = tpu.concatenate %53, %50 in 1 : vector<10x15x128xf32>, vector<10x1x128xf32> -> vector<10x16x128xf32>
    %c0_33 = arith.constant 0 : index
    %c0_34 = arith.constant 0 : index
    %55 = vector.load %arg10[%c0_33, %c0_34] : memref<9x128xf32, #tpu.memory_space<vmem>>, vector<9x128xf32>
    %56 = vector.extract_strided_slice %49 {offsets = [1, 0, 0], sizes = [8, 16, 128], strides = [1, 1, 1]} : vector<10x16x128xf32> to vector<8x16x128xf32>
    %57 = vector.extract_strided_slice %55 {offsets = [4, 0], sizes = [1, 128], strides = [1, 1]} : vector<9x128xf32> to vector<1x128xf32>
    %58 = vector.shape_cast %57 : vector<1x128xf32> to vector<128xf32>
    %59 = vector.shape_cast %58 : vector<128xf32> to vector<1x1x128xf32>
    %60 = vector.broadcast %59 : vector<1x1x128xf32> to vector<8x16x128xf32>
    %61 = arith.mulf %56, %60 : vector<8x16x128xf32>
    %c0_35 = arith.constant 0 : index
    %c0_36 = arith.constant 0 : index
    %62 = vector.load %arg11[%c0_35, %c0_36] : memref<1x128xf32, #tpu.memory_space<vmem>>, vector<1x128xf32>
    %63 = vector.shape_cast %62 : vector<1x128xf32> to vector<1x1x128xf32>
    %64 = vector.broadcast %63 : vector<1x1x128xf32> to vector<8x16x128xf32>
    %65 = arith.addf %61, %64 : vector<8x16x128xf32>
    %66 = vector.extract_strided_slice %52 {offsets = [0, 0, 0], sizes = [8, 16, 128], strides = [1, 1, 1]} : vector<10x16x128xf32> to vector<8x16x128xf32>
    %67 = vector.extract_strided_slice %55 {offsets = [0, 0], sizes = [1, 128], strides = [1, 1]} : vector<9x128xf32> to vector<1x128xf32>
    %68 = vector.shape_cast %67 : vector<1x128xf32> to vector<128xf32>
    %69 = vector.shape_cast %68 : vector<128xf32> to vector<1x1x128xf32>
    %70 = vector.broadcast %69 : vector<1x1x128xf32> to vector<8x16x128xf32>
    %71 = arith.mulf %66, %70 : vector<8x16x128xf32>
    %72 = arith.addf %65, %71 : vector<8x16x128xf32>
    %73 = vector.extract_strided_slice %49 {offsets = [0, 0, 0], sizes = [8, 16, 128], strides = [1, 1, 1]} : vector<10x16x128xf32> to vector<8x16x128xf32>
    %74 = vector.extract_strided_slice %55 {offsets = [1, 0], sizes = [1, 128], strides = [1, 1]} : vector<9x128xf32> to vector<1x128xf32>
    %75 = vector.shape_cast %74 : vector<1x128xf32> to vector<128xf32>
    %76 = vector.shape_cast %75 : vector<128xf32> to vector<1x1x128xf32>
    %77 = vector.broadcast %76 : vector<1x1x128xf32> to vector<8x16x128xf32>
    %78 = arith.mulf %73, %77 : vector<8x16x128xf32>
    %79 = arith.addf %72, %78 : vector<8x16x128xf32>
    %80 = vector.extract_strided_slice %54 {offsets = [0, 0, 0], sizes = [8, 16, 128], strides = [1, 1, 1]} : vector<10x16x128xf32> to vector<8x16x128xf32>
    %81 = vector.extract_strided_slice %55 {offsets = [2, 0], sizes = [1, 128], strides = [1, 1]} : vector<9x128xf32> to vector<1x128xf32>
    %82 = vector.shape_cast %81 : vector<1x128xf32> to vector<128xf32>
    %83 = vector.shape_cast %82 : vector<128xf32> to vector<1x1x128xf32>
    %84 = vector.broadcast %83 : vector<1x1x128xf32> to vector<8x16x128xf32>
    %85 = arith.mulf %80, %84 : vector<8x16x128xf32>
    %86 = arith.addf %79, %85 : vector<8x16x128xf32>
    %87 = vector.extract_strided_slice %52 {offsets = [1, 0, 0], sizes = [8, 16, 128], strides = [1, 1, 1]} : vector<10x16x128xf32> to vector<8x16x128xf32>
    %88 = vector.extract_strided_slice %55 {offsets = [3, 0], sizes = [1, 128], strides = [1, 1]} : vector<9x128xf32> to vector<1x128xf32>
    %89 = vector.shape_cast %88 : vector<1x128xf32> to vector<128xf32>
    %90 = vector.shape_cast %89 : vector<128xf32> to vector<1x1x128xf32>
    %91 = vector.broadcast %90 : vector<1x1x128xf32> to vector<8x16x128xf32>
    %92 = arith.mulf %87, %91 : vector<8x16x128xf32>
    %93 = arith.addf %86, %92 : vector<8x16x128xf32>
    %94 = vector.extract_strided_slice %54 {offsets = [1, 0, 0], sizes = [8, 16, 128], strides = [1, 1, 1]} : vector<10x16x128xf32> to vector<8x16x128xf32>
    %95 = vector.extract_strided_slice %55 {offsets = [5, 0], sizes = [1, 128], strides = [1, 1]} : vector<9x128xf32> to vector<1x128xf32>
    %96 = vector.shape_cast %95 : vector<1x128xf32> to vector<128xf32>
    %97 = vector.shape_cast %96 : vector<128xf32> to vector<1x1x128xf32>
    %98 = vector.broadcast %97 : vector<1x1x128xf32> to vector<8x16x128xf32>
    %99 = arith.mulf %94, %98 : vector<8x16x128xf32>
    %100 = arith.addf %93, %99 : vector<8x16x128xf32>
    %101 = vector.extract_strided_slice %52 {offsets = [2, 0, 0], sizes = [8, 16, 128], strides = [1, 1, 1]} : vector<10x16x128xf32> to vector<8x16x128xf32>
    %102 = vector.extract_strided_slice %55 {offsets = [6, 0], sizes = [1, 128], strides = [1, 1]} : vector<9x128xf32> to vector<1x128xf32>
    %103 = vector.shape_cast %102 : vector<1x128xf32> to vector<128xf32>
    %104 = vector.shape_cast %103 : vector<128xf32> to vector<1x1x128xf32>
    %105 = vector.broadcast %104 : vector<1x1x128xf32> to vector<8x16x128xf32>
    %106 = arith.mulf %101, %105 : vector<8x16x128xf32>
    %107 = arith.addf %100, %106 : vector<8x16x128xf32>
    %108 = vector.extract_strided_slice %49 {offsets = [2, 0, 0], sizes = [8, 16, 128], strides = [1, 1, 1]} : vector<10x16x128xf32> to vector<8x16x128xf32>
    %109 = vector.extract_strided_slice %55 {offsets = [7, 0], sizes = [1, 128], strides = [1, 1]} : vector<9x128xf32> to vector<1x128xf32>
    %110 = vector.shape_cast %109 : vector<1x128xf32> to vector<128xf32>
    %111 = vector.shape_cast %110 : vector<128xf32> to vector<1x1x128xf32>
    %112 = vector.broadcast %111 : vector<1x1x128xf32> to vector<8x16x128xf32>
    %113 = arith.mulf %108, %112 : vector<8x16x128xf32>
    %114 = arith.addf %107, %113 : vector<8x16x128xf32>
    %115 = vector.extract_strided_slice %54 {offsets = [2, 0, 0], sizes = [8, 16, 128], strides = [1, 1, 1]} : vector<10x16x128xf32> to vector<8x16x128xf32>
    %116 = vector.extract_strided_slice %55 {offsets = [8, 0], sizes = [1, 128], strides = [1, 1]} : vector<9x128xf32> to vector<1x128xf32>
    %117 = vector.shape_cast %116 : vector<1x128xf32> to vector<128xf32>
    %118 = vector.shape_cast %117 : vector<128xf32> to vector<1x1x128xf32>
    %119 = vector.broadcast %118 : vector<1x1x128xf32> to vector<8x16x128xf32>
    %120 = arith.mulf %115, %119 : vector<8x16x128xf32>
    %121 = arith.addf %114, %120 : vector<8x16x128xf32>
    %122 = vector.shape_cast %121 : vector<8x16x128xf32> to vector<128x128xf32>
    %123 = arith.mulf %122, %10 : vector<128x128xf32>
    %124 = arith.truncf %123 : vector<128x128xf32> to vector<128x128xbf16>
    %c0_37 = arith.constant 0 : index
    %c0_38 = arith.constant 0 : index
    %125 = vector.load %arg13[%c0_37, %c0_38] : memref<1x128xf32, #tpu.memory_space<vmem>>, vector<1x128xf32>
    %126 = vector.broadcast %125 : vector<1x128xf32> to vector<128x128xf32>
    %127 = arith.addf %8, %126 : vector<128x128xf32>
    %c0_39 = arith.constant 0 : index
    %c0_40 = arith.constant 0 : index
    %128 = vector.load %arg12[%c0_39, %c0_40] : memref<128x128xbf16, #tpu.memory_space<vmem>>, vector<128x128xbf16>
    %cst_41 = arith.constant dense<0.000000e+00> : vector<128x128xf32>
    %129 = tpu.matmul %124, %128, %cst_41 {dimension_numbers = #tpu.dot_dimension_numbers<[1], [0], [0], [1], [0, 0, 1, 1], [], []>} : vector<128x128xbf16>, vector<128x128xbf16>, vector<128x128xf32> -> vector<128x128xf32>
    %130 = arith.addf %127, %129 : vector<128x128xf32>
    %131 = arith.truncf %130 : vector<128x128xf32> to vector<128x128xbf16>
    %c0_42 = arith.constant 0 : index
    %c0_43 = arith.constant 0 : index
    %132 = vector.load %arg14[%c0_42, %c0_43] : memref<128x512xbf16, #tpu.memory_space<vmem>>, vector<128x512xbf16>
    %cst_44 = arith.constant dense<0.000000e+00> : vector<128x512xf32>
    %133 = tpu.matmul %131, %132, %cst_44 {dimension_numbers = #tpu.dot_dimension_numbers<[1], [0], [0], [1], [0, 0, 1, 1], [], []>} : vector<128x128xbf16>, vector<128x512xbf16>, vector<128x512xf32> -> vector<128x512xf32>
    %c0_45 = arith.constant 0 : index
    %c0_46 = arith.constant 0 : index
    %134 = vector.load %arg15[%c0_45, %c0_46] : memref<1x512xf32, #tpu.memory_space<vmem>>, vector<1x512xf32>
    %135 = vector.broadcast %134 : vector<1x512xf32> to vector<128x512xf32>
    %136 = arith.addf %133, %135 : vector<128x512xf32>
    %137 = vector.extract_strided_slice %136 {offsets = [0, 0], sizes = [128, 256], strides = [1, 1]} : vector<128x512xf32> to vector<128x256xf32>
    %138 = vector.extract_strided_slice %136 {offsets = [0, 256], sizes = [128, 256], strides = [1, 1]} : vector<128x512xf32> to vector<128x256xf32>
    %cst_47 = arith.constant 0.000000e+00 : f32
    %139 = vector.broadcast %cst_47 : f32 to vector<128x256xf32>
    %140 = arith.cmpf oge, %138, %139 : vector<128x256xf32>
    %cst_48 = arith.constant 1.000000e-01 : f32
    %141 = vector.broadcast %cst_48 : f32 to vector<128x256xf32>
    %142 = arith.mulf %141, %138 : vector<128x256xf32>
    %143 = arith.select %140, %138, %142 : vector<128x256xi1>, vector<128x256xf32>
    %144 = arith.mulf %137, %143 : vector<128x256xf32>
    %145 = arith.truncf %144 : vector<128x256xf32> to vector<128x256xbf16>
    %c0_49 = arith.constant 0 : index
    %c0_50 = arith.constant 0 : index
    %146 = vector.load %arg16[%c0_49, %c0_50] : memref<256x128xbf16, #tpu.memory_space<vmem>>, vector<256x128xbf16>
    %cst_51 = arith.constant dense<0.000000e+00> : vector<128x128xf32>
    %147 = tpu.matmul %145, %146, %cst_51 {dimension_numbers = #tpu.dot_dimension_numbers<[1], [0], [0], [1], [0, 0, 1, 1], [], []>} : vector<128x256xbf16>, vector<256x128xbf16>, vector<128x128xf32> -> vector<128x128xf32>
    %c0_52 = arith.constant 0 : index
    %c0_53 = arith.constant 0 : index
    %148 = vector.load %arg17[%c0_52, %c0_53] : memref<1x128xf32, #tpu.memory_space<vmem>>, vector<1x128xf32>
    %149 = vector.broadcast %148 : vector<1x128xf32> to vector<128x128xf32>
    %150 = arith.addf %147, %149 : vector<128x128xf32>
    %151 = arith.addf %130, %150 : vector<128x128xf32>
    %152 = vector.shape_cast %151 : vector<128x128xf32> to vector<8x16x128xf32>
    %c0_54 = arith.constant 0 : index
    %c0_55 = arith.constant 0 : index
    %c0_56 = arith.constant 0 : index
    %c0_57 = arith.constant 0 : index
    %153 = vector.load %arg18[%c0_54, %c0_55, %c0_56, %c0_57] : memref<1x8x16x128xf32, #tpu.memory_space<vmem>>, vector<1x8x16x128xf32>
    %154 = vector.shape_cast %153 : vector<1x8x16x128xf32> to vector<8x16x128xf32>
    %155 = vector.shape_cast %152 : vector<8x16x128xf32> to vector<1x8x16x128xf32>
    tpu.vector_store %arg18[%c0_54, %c0_55, %c0_56, %c0_57], %155 {strides = array<i32>} : memref<1x8x16x128xf32, #tpu.memory_space<vmem>>, vector<1x8x16x128xf32>,
    return
  }
  func.func @transform_0(%arg0: i32, %arg1: i32) -> (i32, i32, i32, i32) {
    %c0_i32 = arith.constant 0 : i32
    %c0_i32_0 = arith.constant 0 : i32
    %c0_i32_1 = arith.constant 0 : i32
    %c0_i32_2 = arith.constant 0 : i32
    return %arg1, %c0_i32, %c0_i32_0, %c0_i32_1 : i32, i32, i32, i32
  }
  func.func @transform_1(%arg0: i32, %arg1: i32) -> (i32, i32, i32, i32) {
    %c0_i32 = arith.constant 0 : i32
    %c0_i32_0 = arith.constant 0 : i32
    %c0_i32_1 = arith.constant 0 : i32
    return %arg0, %arg1, %c0_i32, %c0_i32_0 : i32, i32, i32, i32
  }
  func.func @transform_2(%arg0: i32, %arg1: i32) -> (i32, i32, i32, i32) {
    %c8_i32 = arith.constant 8 : i32
    %0 = arith.muli %arg1, %c8_i32 : i32
    %c1_i32 = arith.constant 1 : i32
    %1 = arith.subi %0, %c1_i32 : i32
    %c0_i32 = arith.constant 0 : i32
    %2 = arith.maxsi %1, %c0_i32 : i32
    %c0_i32_0 = arith.constant 0 : i32
    %c0_i32_1 = arith.constant 0 : i32
    %c0_i32_2 = arith.constant 0 : i32
    return %arg0, %2, %c0_i32_0, %c0_i32_1 : i32, i32, i32, i32
  }
  func.func @transform_3(%arg0: i32, %arg1: i32) -> (i32, i32, i32, i32) {
    %c1_i32 = arith.constant 1 : i32
    %0 = arith.addi %arg1, %c1_i32 : i32
    %c8_i32 = arith.constant 8 : i32
    %1 = arith.muli %0, %c8_i32 : i32
    %c15_i32 = arith.constant 15 : i32
    %2 = arith.minsi %1, %c15_i32 : i32
    %c0_i32 = arith.constant 0 : i32
    %c0_i32_0 = arith.constant 0 : i32
    %c0_i32_1 = arith.constant 0 : i32
    return %arg0, %2, %c0_i32, %c0_i32_0 : i32, i32, i32, i32
  }
  func.func @transform_4(%arg0: i32, %arg1: i32) -> (i32, i32) {
    %c0_i32 = arith.constant 0 : i32
    %c0_i32_0 = arith.constant 0 : i32
    %c0_i32_1 = arith.constant 0 : i32
    return %c0_i32, %c0_i32_0 : i32, i32
  }
  func.func @transform_5(%arg0: i32, %arg1: i32) -> (i32, i32) {
    %c0_i32 = arith.constant 0 : i32
    %c0_i32_0 = arith.constant 0 : i32
    %c0_i32_1 = arith.constant 0 : i32
    return %c0_i32, %c0_i32_0 : i32, i32
  }
  func.func @transform_6(%arg0: i32, %arg1: i32) -> (i32, i32) {
    %c0_i32 = arith.constant 0 : i32
    %c0_i32_0 = arith.constant 0 : i32
    %c0_i32_1 = arith.constant 0 : i32
    return %c0_i32, %c0_i32_0 : i32, i32
  }
  func.func @transform_7(%arg0: i32, %arg1: i32) -> (i32, i32) {
    %c0_i32 = arith.constant 0 : i32
    %c0_i32_0 = arith.constant 0 : i32
    %c0_i32_1 = arith.constant 0 : i32
    return %c0_i32, %c0_i32_0 : i32, i32
  }
  func.func @transform_8(%arg0: i32, %arg1: i32) -> (i32, i32) {
    %c0_i32 = arith.constant 0 : i32
    %c0_i32_0 = arith.constant 0 : i32
    %c0_i32_1 = arith.constant 0 : i32
    return %c0_i32, %c0_i32_0 : i32, i32
  }
  func.func @transform_9(%arg0: i32, %arg1: i32) -> (i32, i32) {
    %c0_i32 = arith.constant 0 : i32
    %c0_i32_0 = arith.constant 0 : i32
    %c0_i32_1 = arith.constant 0 : i32
    return %c0_i32, %c0_i32_0 : i32, i32
  }
  func.func @transform_10(%arg0: i32, %arg1: i32) -> (i32, i32) {
    %c0_i32 = arith.constant 0 : i32
    %c0_i32_0 = arith.constant 0 : i32
    %c0_i32_1 = arith.constant 0 : i32
    return %c0_i32, %c0_i32_0 : i32, i32
  }
  func.func @transform_11(%arg0: i32, %arg1: i32) -> (i32, i32) {
    %c0_i32 = arith.constant 0 : i32
    %c0_i32_0 = arith.constant 0 : i32
    %c0_i32_1 = arith.constant 0 : i32
    return %c0_i32, %c0_i32_0 : i32, i32
  }
  func.func @transform_12(%arg0: i32, %arg1: i32) -> (i32, i32) {
    %c0_i32 = arith.constant 0 : i32
    %c0_i32_0 = arith.constant 0 : i32
    %c0_i32_1 = arith.constant 0 : i32
    return %c0_i32, %c0_i32_0 : i32, i32
  }
  func.func @transform_13(%arg0: i32, %arg1: i32) -> (i32, i32) {
    %c0_i32 = arith.constant 0 : i32
    %c0_i32_0 = arith.constant 0 : i32
    %c0_i32_1 = arith.constant 0 : i32
    return %c0_i32, %c0_i32_0 : i32, i32
  }
  func.func @transform_14(%arg0: i32, %arg1: i32) -> (i32, i32) {
    %c0_i32 = arith.constant 0 : i32
    %c0_i32_0 = arith.constant 0 : i32
    %c0_i32_1 = arith.constant 0 : i32
    return %c0_i32, %c0_i32_0 : i32, i32
  }
  func.func @transform_15(%arg0: i32, %arg1: i32) -> (i32, i32) {
    %c0_i32 = arith.constant 0 : i32
    %c0_i32_0 = arith.constant 0 : i32
    %c0_i32_1 = arith.constant 0 : i32
    return %c0_i32, %c0_i32_0 : i32, i32
  }
  func.func @transform_16(%arg0: i32, %arg1: i32) -> (i32, i32, i32, i32) {
    %c0_i32 = arith.constant 0 : i32
    %c0_i32_0 = arith.constant 0 : i32
    %c0_i32_1 = arith.constant 0 : i32
    return %arg0, %arg1, %c0_i32, %c0_i32_0 : i32, i32, i32, i32
  }
}

</mosaic_0001>

<llo_original>
// kernel: tpu_custom_call.1
$region0: #{tpu_custom_call.1}
  #allocation0 [shape = 'u32[]', space=smem, size = 0x4, offset = 0x4, fixed_abs, tag = 'smem constant byte address 0x4 - core index']
  #allocation1 [shape = 'u32[144,128]{1,0:T(1,128)}', space=vmem, size = 0x12000, scoped, tag = 'internal scratch']
  %s0 = inlined_call_operand.hbm [shape: f32[2,10,1,128], index: 0, kind: input, shape index: {}]
  %s1 = inlined_call_operand.hbm [shape: bf16[2,16,16,128], index: 1, kind: input, shape index: {}]
  %s2 = inlined_call_operand.hbm [shape: bf16[2,16,16,128], index: 2, kind: input, shape index: {}]
  %s3 = inlined_call_operand.hbm [shape: bf16[2,16,16,128], index: 3, kind: input, shape index: {}]
  %s4 = inlined_call_operand.hbm [shape: bf16[128,256], index: 4, kind: input, shape index: {}]
  %s5 = inlined_call_operand.hbm [shape: f32[1,256], index: 5, kind: input, shape index: {}]
  %s6 = inlined_call_operand.hbm [shape: bf16[128,128], index: 6, kind: input, shape index: {}]
  %s7 = inlined_call_operand.hbm [shape: f32[1,128], index: 7, kind: input, shape index: {}]
  %s8 = inlined_call_operand.hbm [shape: f32[9,128], index: 8, kind: input, shape index: {}]
  %s9 = inlined_call_operand.hbm [shape: f32[1,128], index: 9, kind: input, shape index: {}]
  %s10 = inlined_call_operand.hbm [shape: bf16[128,128], index: 10, kind: input, shape index: {}]
  %s11 = inlined_call_operand.hbm [shape: f32[1,128], index: 11, kind: input, shape index: {}]
  %s12 = inlined_call_operand.hbm [shape: bf16[128,512], index: 12, kind: input, shape index: {}]
  %s13 = inlined_call_operand.hbm [shape: f32[1,512], index: 13, kind: input, shape index: {}]
  %s14 = inlined_call_operand.hbm [shape: bf16[256,128], index: 14, kind: input, shape index: {}]
  %s15 = inlined_call_operand.hbm [shape: f32[1,128], index: 15, kind: input, shape index: {}]
  %s16 = inlined_call_operand.hbm [shape: f32[2,16,16,128], index: 16, kind: output, shape index: {}]
  %s17 = sld [smem:[#allocation0]]
  $region161: #{tpu_custom_call.1} parent=0
    _
  %s19 = ssub.s32 1, %s17
  %s20 = scalar_select 0, %s19, %s17
  $region1: #{tpu_custom_call.1} parent=0
    #allocation2 [shape = 'u8[10240]{0}', space=vmem, size = 0x2800, scoped, tag = 'input window, operand 0']
    #allocation3 [shape = 's32[2]{0}', space=sflag, size = 0x8, scoped, tag = 'scoped memory for tpu_custom_call.1']
    #allocation4 [shape = 's32[2]{0}', space=sflag, size = 0x8, scoped, tag = 'scoped memory for tpu_custom_call.1']
    #allocation5 [shape = 'u8[65536]{0}', space=vmem, size = 0x10000, scoped, tag = 'input window, operand 1']
    #allocation6 [shape = 's32[2]{0}', space=sflag, size = 0x8, scoped, tag = 'scoped memory for tpu_custom_call.1']
    #allocation7 [shape = 'u8[8192]{0}', space=vmem, size = 0x2000, scoped, tag = 'input window, operand 2']
    #allocation8 [shape = 'u8[8192]{0}', space=vmem, size = 0x2000, scoped, tag = 'input window, operand 3']
    #allocation9 [shape = 's32[2]{0}', space=sflag, size = 0x8, scoped, tag = 'scoped memory for tpu_custom_call.1']
    #allocation10 [shape = 'u8[65536]{0}', space=vmem, size = 0x10000, scoped, tag = 'input window, operand 4, single buffered']
    #allocation11 [shape = 'u8[1024]{0}', space=vmem, size = 0x400, scoped, tag = 'input window, operand 5, single buffered']
    #allocation12 [shape = 's32[1]{0}', space=sflag, size = 0x4, scoped, tag = 'scoped memory for tpu_custom_call.1']
    #allocation13 [shape = 'u8[32768]{0}', space=vmem, size = 0x8000, scoped, tag = 'input window, operand 6, single buffered']
    #allocation14 [shape = 'u8[512]{0}', space=vmem, size = 0x400, scoped, tag = 'input window, operand 7, single buffered']
    #allocation15 [shape = 's32[1]{0}', space=sflag, size = 0x4, scoped, tag = 'scoped memory for tpu_custom_call.1']
    #allocation16 [shape = 'u8[8192]{0}', space=vmem, size = 0x2000, scoped, tag = 'input window, operand 8, single buffered']
    #allocation17 [shape = 'u8[512]{0}', space=vmem, size = 0x400, scoped, tag = 'input window, operand 9, single buffered']
    #allocation18 [shape = 's32[1]{0}', space=sflag, size = 0x4, scoped, tag = 'scoped memory for tpu_custom_call.1']
    #allocation19 [shape = 'u8[32768]{0}', space=vmem, size = 0x8000, scoped, tag = 'input window, operand 10, single buffered']
    #allocation20 [shape = 'u8[512]{0}', space=vmem, size = 0x400, scoped, tag = 'input window, operand 11, single buffered']
    #allocation21 [shape = 's32[1]{0}', space=sflag, size = 0x4, scoped, tag = 'scoped memory for tpu_custom_call.1']
    #allocation22 [shape = 'u8[131072]{0}', space=vmem, size = 0x20000, scoped, tag = 'input window, operand 12, single buffered']
    #allocation23 [shape = 'u8[2048]{0}', space=vmem, size = 0x800, scoped, tag = 'input window, operand 13, single buffered']
    #allocation24 [shape = 's32[1]{0}', space=sflag, size = 0x4, scoped, tag = 'scoped memory for tpu_custom_call.1']
    #allocation25 [shape = 'u8[65536]{0}', space=vmem, size = 0x10000, scoped, tag = 'input window, operand 14, single buffered']
    #allocation26 [shape = 'u8[512]{0}', space=vmem, size = 0x400, scoped, tag = 'input window, operand 15, single buffered']
    #allocation27 [shape = 's32[1]{0}', space=sflag, size = 0x4, scoped, tag = 'scoped memory for tpu_custom_call.1']
    #allocation28 [shape = 'u8[131072]{0}', space=vmem, size = 0x20000, scoped, tag = 'output window, operand 0']
    %21 = vsyncpa [#allocation3], 0
    %s22 = scalar_lea.sflag [#allocation3], 1
    %23 = vsyncpa %s22, 0
    %24 = vsyncpa [#allocation6], 0
    %s25 = scalar_lea.sflag [#allocation6], 1
    %26 = vsyncpa %s25, 0
    %27 = vsyncpa [#allocation9], 0
    %s28 = scalar_lea.sflag [#allocation9], 1
    %29 = vsyncpa %s28, 0
    %30 = vsyncpa [#allocation12], 0
    %31 = vsyncpa [#allocation15], 0
    %32 = vsyncpa [#allocation18], 0
    %33 = vsyncpa [#allocation21], 0
    %34 = vsyncpa [#allocation24], 0
    %35 = vsyncpa [#allocation27], 0
    %36 = vsyncpa [#allocation4], 0
    %s37 = scalar_lea.sflag [#allocation4], 1
    %38 = vsyncpa %s37, 0
    loop: start=0, step=1, limit=6
    $region2: #{tpu_custom_call.1} parent=1 // loop_pre_header
      _
    $region3: #{tpu_custom_call.1} parent=1 // loop_header
      %s40 = sphi 0, %s44
      %p41 = scmp.ge.s32.totalorder %s40, 6
      %s47 = sphi 0, %s59
      %s48 = sphi 0, %s55
      %s49 = sphi 0, %s47
      %s50 = sphi 0, %s48
      %s51 = sphi 0, %s49
      %s52 = sphi 0, %s50
      %s62 = sphi 0, %s64
      %s65 = sphi 0, %s62
      %s66 = sphi 0, %s65
      %s82 = sphi 0, %s66
      %s90 = sphi 0, %s92
      %s93 = sphi 0, %s90
      %s94 = sphi 0, %s93
      %s110 = sphi 0, %s94
      %s126 = sphi 0, %s128
      %s129 = sphi 0, %s126
      %s130 = sphi 0, %s129
      %s146 = sphi 0, %s130
      %s162 = sphi 0, %s164
      %s165 = sphi 0, %s162
      %s166 = sphi 0, %s165
      %s182 = sphi 0, %s166
      %s186 = sphi 0, %s186
      %s188 = sphi 0, %s186
      %s189 = sphi 0, %s188
      %s203 = sphi 0, %s189
      %s207 = sphi 0, %s207
      %s209 = sphi 0, %s207
      %s210 = sphi 0, %s209
      %s224 = sphi 0, %s210
      %s228 = sphi 0, %s228
      %s230 = sphi 0, %s228
      %s231 = sphi 0, %s230
      %s245 = sphi 0, %s231
      %s249 = sphi 0, %s249
      %s251 = sphi 0, %s249
      %s252 = sphi 0, %s251
      %s266 = sphi 0, %s252
      %s270 = sphi 0, %s270
      %s272 = sphi 0, %s270
      %s273 = sphi 0, %s272
      %s287 = sphi 0, %s273
      %s291 = sphi 0, %s291
      %s293 = sphi 0, %s291
      %s294 = sphi 0, %s293
      %s308 = sphi 0, %s294
      %s312 = sphi 0, %s312
      %s314 = sphi 0, %s312
      %s315 = sphi 0, %s314
      %s329 = sphi 0, %s315
      %s333 = sphi 0, %s333
      %s335 = sphi 0, %s333
      %s336 = sphi 0, %s335
      %s350 = sphi 0, %s336
      %s354 = sphi 0, %s354
      %s356 = sphi 0, %s354
      %s357 = sphi 0, %s356
      %s371 = sphi 0, %s357
      %s375 = sphi 0, %s375
      %s377 = sphi 0, %s375
      %s378 = sphi 0, %s377
      %s392 = sphi 0, %s378
      %s396 = sphi 0, %s396
      %s398 = sphi 0, %s396
      %s399 = sphi 0, %s398
      %s413 = sphi 0, %s399
      %s417 = sphi 0, %s417
      %s419 = sphi 0, %s417
      %s420 = sphi 0, %s419
      %s434 = sphi 0, %s420
      %s442 = sphi 0, %s444
      %s445 = sphi 0, %s442
      %s446 = sphi 0, %s445
      %s462 = sphi 0, %s446
    $region4: #{tpu_custom_call.1} parent=1 // loop_header_branch
      %43 = sbr.rel (%p41) target = $region8
    $region5: #{tpu_custom_call.1} parent=1 // loop_body
      %s45 = ssub.s32 %s40, 1
      %s46 = ssub.s32 %s40, 2
      %s53 = sadd.s32 1, %s48
      %p54 = scmp.ge.s32.totalorder %s53, 2
      %s55 = scalar_select %p54, 0, %s53
      %s56 = sadd.s32 1, %s47
      %s57 = scalar_select %p54, %s56, %s47
      %p58 = scmp.ge.s32.totalorder %s57, 2
      %s59 = scalar_select %p58, 0, %s57
      %s60 = ssub.s32 %s48, %s55
      %p61 = scmp.eq.s32.totalorder %s60, 0
      %s63 = sadd.s32 %s62, 1
      %s64 = scalar_select %p61, %s62, %s63
      %p67 = pneg %p61
      %p68 = scmp.eq.s32.totalorder %s40, 3
      %p69 = por %p67, %p68
      %p70 = scmp.ne.s32.totalorder %s62, %s65
      %p71 = scmp.eq.s32.totalorder %s40, 0
      %p72 = por %p70, %p71
      %p73 = scmp.ne.s32.totalorder %s62, %s65
      %p74 = scmp.eq.s32.totalorder %s45, 3
      %p75 = por %p73, %p74
      %p76 = scmp.ne.s32.totalorder %s65, %s66
      %p77 = scmp.eq.s32.totalorder %s45, 0
      %p78 = por %p76, %p77
      %p79 = scmp.ne.s32.totalorder %s65, %s66
      %p80 = scmp.eq.s32.totalorder %s46, 3
      %p81 = por %p79, %p80
      %p83 = scmp.ne.s32.totalorder %s66, %s82
      %p84 = scmp.eq.s32.totalorder %s46, 0
      %p85 = por %p83, %p84
      %s86 = ssub.s32 %s47, %s59
      %s87 = ssub.s32 %s48, %s55
      %s88 = sor.u32 %s86, %s87
      %p89 = scmp.eq.s32.totalorder %s88, 0
      %s91 = sadd.s32 %s90, 1
      %s92 = scalar_select %p89, %s90, %s91
      %p95 = pneg %p89
      %p96 = scmp.eq.s32.totalorder %s40, 3
      %p97 = por %p95, %p96
      %p98 = scmp.ne.s32.totalorder %s90, %s93
      %p99 = scmp.eq.s32.totalorder %s40, 0
      %p100 = por %p98, %p99
      %p101 = scmp.ne.s32.totalorder %s90, %s93
      %p102 = scmp.eq.s32.totalorder %s45, 3
      %p103 = por %p101, %p102
      %p104 = scmp.ne.s32.totalorder %s93, %s94
      %p105 = scmp.eq.s32.totalorder %s45, 0
      %p106 = por %p104, %p105
      %p107 = scmp.ne.s32.totalorder %s93, %s94
      %p108 = scmp.eq.s32.totalorder %s46, 3
      %p109 = por %p107, %p108
      %p111 = scmp.ne.s32.totalorder %s94, %s110
      %p112 = scmp.eq.s32.totalorder %s46, 0
      %p113 = por %p111, %p112
      %s114 = smul.u32 %s48, 8
      %s115 = ssub.s32 %s114, 1
      %p116 = scmp.gt.s32.totalorder %s115, 0
      %s117 = scalar_select %p116, %s115, 0
      %s118 = smul.u32 %s55, 8
      %s119 = ssub.s32 %s118, 1
      %p120 = scmp.gt.s32.totalorder %s119, 0
      %s121 = scalar_select %p120, %s119, 0
      %s122 = ssub.s32 %s47, %s59
      %s123 = ssub.s32 %s117, %s121
      %s124 = sor.u32 %s122, %s123
      %p125 = scmp.eq.s32.totalorder %s124, 0
      %s127 = sadd.s32 %s126, 1
      %s128 = scalar_select %p125, %s126, %s127
      %p131 = pneg %p125
      %p132 = scmp.eq.s32.totalorder %s40, 3
      %p133 = por %p131, %p132
      %p134 = scmp.ne.s32.totalorder %s126, %s129
      %p135 = scmp.eq.s32.totalorder %s40, 0
      %p136 = por %p134, %p135
      %p137 = scmp.ne.s32.totalorder %s126, %s129
      %p138 = scmp.eq.s32.totalorder %s45, 3
      %p139 = por %p137, %p138
      %p140 = scmp.ne.s32.totalorder %s129, %s130
      %p141 = scmp.eq.s32.totalorder %s45, 0
      %p142 = por %p140, %p141
      %p143 = scmp.ne.s32.totalorder %s129, %s130
      %p144 = scmp.eq.s32.totalorder %s46, 3
      %p145 = por %p143, %p144
      %p147 = scmp.ne.s32.totalorder %s130, %s146
      %p148 = scmp.eq.s32.totalorder %s46, 0
      %p149 = por %p147, %p148
      %s150 = sadd.s32 %s48, 1
      %s151 = smul.u32 %s150, 8
      %p152 = scmp.lt.s32.totalorder %s151, 15
      %s153 = scalar_select %p152, %s151, 15
      %s154 = sadd.s32 %s55, 1
      %s155 = smul.u32 %s154, 8
      %p156 = scmp.lt.s32.totalorder %s155, 15
      %s157 = scalar_select %p156, %s155, 15
      %s158 = ssub.s32 %s47, %s59
      %s159 = ssub.s32 %s153, %s157
      %s160 = sor.u32 %s158, %s159
      %p161 = scmp.eq.s32.totalorder %s160, 0
      %s163 = sadd.s32 %s162, 1
      %s164 = scalar_select %p161, %s162, %s163
      %p167 = pneg %p161
      %p168 = scmp.eq.s32.totalorder %s40, 3
      %p169 = por %p167, %p168
      %p170 = scmp.ne.s32.totalorder %s162, %s165
      %p171 = scmp.eq.s32.totalorder %s40, 0
      %p172 = por %p170, %p171
      %p173 = scmp.ne.s32.totalorder %s162, %s165
      %p174 = scmp.eq.s32.totalorder %s45, 3
      %p175 = por %p173, %p174
      %p176 = scmp.ne.s32.totalorder %s165, %s166
      %p177 = scmp.eq.s32.totalorder %s45, 0
      %p178 = por %p176, %p177
      %p179 = scmp.ne.s32.totalorder %s165, %s166
      %p180 = scmp.eq.s32.totalorder %s46, 3
      %p181 = por %p179, %p180
      %p183 = scmp.ne.s32.totalorder %s166, %s182
      %p184 = scmp.eq.s32.totalorder %s46, 0
      %p185 = por %p183, %p184
      %s187 = sadd.s32 %s186, 1
      %p190 = scmp.eq.s32.totalorder %s40, 3
      %p191 = scmp.ne.s32.totalorder %s186, %s188
      %p192 = scmp.eq.s32.totalorder %s40, 0
      %p193 = por %p191, %p192
      %p194 = scmp.ne.s32.totalorder %s186, %s188
      %p195 = scmp.eq.s32.totalorder %s45, 3
      %p196 = por %p194, %p195
      %p197 = scmp.ne.s32.totalorder %s188, %s189
      %p198 = scmp.eq.s32.totalorder %s45, 0
      %p199 = por %p197, %p198
      %p200 = scmp.ne.s32.totalorder %s188, %s189
      %p201 = scmp.eq.s32.totalorder %s46, 3
      %p202 = por %p200, %p201
      %p204 = scmp.ne.s32.totalorder %s189, %s203
      %p205 = scmp.eq.s32.totalorder %s46, 0
      %p206 = por %p204, %p205
      %s208 = sadd.s32 %s207, 1
      %p211 = scmp.eq.s32.totalorder %s40, 3
      %p212 = scmp.ne.s32.totalorder %s207, %s209
      %p213 = scmp.eq.s32.totalorder %s40, 0
      %p214 = por %p212, %p213
      %p215 = scmp.ne.s32.totalorder %s207, %s209
      %p216 = scmp.eq.s32.totalorder %s45, 3
      %p217 = por %p215, %p216
      %p218 = scmp.ne.s32.totalorder %s209, %s210
      %p219 = scmp.eq.s32.totalorder %s45, 0
      %p220 = por %p218, %p219
      %p221 = scmp.ne.s32.totalorder %s209, %s210
      %p222 = scmp.eq.s32.totalorder %s46, 3
      %p223 = por %p221, %p222
      %p225 = scmp.ne.s32.totalorder %s210, %s224
      %p226 = scmp.eq.s32.totalorder %s46, 0
      %p227 = por %p225, %p226
      %s229 = sadd.s32 %s228, 1
      %p232 = scmp.eq.s32.totalorder %s40, 3
      %p233 = scmp.ne.s32.totalorder %s228, %s230
      %p234 = scmp.eq.s32.totalorder %s40, 0
      %p235 = por %p233, %p234
      %p236 = scmp.ne.s32.totalorder %s228, %s230
      %p237 = scmp.eq.s32.totalorder %s45, 3
      %p238 = por %p236, %p237
      %p239 = scmp.ne.s32.totalorder %s230, %s231
      %p240 = scmp.eq.s32.totalorder %s45, 0
      %p241 = por %p239, %p240
      %p242 = scmp.ne.s32.totalorder %s230, %s231
      %p243 = scmp.eq.s32.totalorder %s46, 3
      %p244 = por %p242, %p243
      %p246 = scmp.ne.s32.totalorder %s231, %s245
      %p247 = scmp.eq.s32.totalorder %s46, 0
      %p248 = por %p246, %p247
      %s250 = sadd.s32 %s249, 1
      %p253 = scmp.eq.s32.totalorder %s40, 3
      %p254 = scmp.ne.s32.totalorder %s249, %s251
      %p255 = scmp.eq.s32.totalorder %s40, 0
      %p256 = por %p254, %p255
      %p257 = scmp.ne.s32.totalorder %s249, %s251
      %p258 = scmp.eq.s32.totalorder %s45, 3
      %p259 = por %p257, %p258
      %p260 = scmp.ne.s32.totalorder %s251, %s252
      %p261 = scmp.eq.s32.totalorder %s45, 0
      %p262 = por %p260, %p261
      %p263 = scmp.ne.s32.totalorder %s251, %s252
      %p264 = scmp.eq.s32.totalorder %s46, 3
      %p265 = por %p263, %p264
      %p267 = scmp.ne.s32.totalorder %s252, %s266
      %p268 = scmp.eq.s32.totalorder %s46, 0
      %p269 = por %p267, %p268
      %s271 = sadd.s32 %s270, 1
      %p274 = scmp.eq.s32.totalorder %s40, 3
      %p275 = scmp.ne.s32.totalorder %s270, %s272
      %p276 = scmp.eq.s32.totalorder %s40, 0
      %p277 = por %p275, %p276
      %p278 = scmp.ne.s32.totalorder %s270, %s272
      %p279 = scmp.eq.s32.totalorder %s45, 3
      %p280 = por %p278, %p279
      %p281 = scmp.ne.s32.totalorder %s272, %s273
      %p282 = scmp.eq.s32.totalorder %s45, 0
      %p283 = por %p281, %p282
      %p284 = scmp.ne.s32.totalorder %s272, %s273
      %p285 = scmp.eq.s32.totalorder %s46, 3
      %p286 = por %p284, %p285
      %p288 = scmp.ne.s32.totalorder %s273, %s287
      %p289 = scmp.eq.s32.totalorder %s46, 0
      %p290 = por %p288, %p289
      %s292 = sadd.s32 %s291, 1
      %p295 = scmp.eq.s32.totalorder %s40, 3
      %p296 = scmp.ne.s32.totalorder %s291, %s293
      %p297 = scmp.eq.s32.totalorder %s40, 0
      %p298 = por %p296, %p297
      %p299 = scmp.ne.s32.totalorder %s291, %s293
      %p300 = scmp.eq.s32.totalorder %s45, 3
      %p301 = por %p299, %p300
      %p302 = scmp.ne.s32.totalorder %s293, %s294
      %p303 = scmp.eq.s32.totalorder %s45, 0
      %p304 = por %p302, %p303
      %p305 = scmp.ne.s32.totalorder %s293, %s294
      %p306 = scmp.eq.s32.totalorder %s46, 3
      %p307 = por %p305, %p306
      %p309 = scmp.ne.s32.totalorder %s294, %s308
      %p310 = scmp.eq.s32.totalorder %s46, 0
      %p311 = por %p309, %p310
      %s313 = sadd.s32 %s312, 1
      %p316 = scmp.eq.s32.totalorder %s40, 3
      %p317 = scmp.ne.s32.totalorder %s312, %s314
      %p318 = scmp.eq.s32.totalorder %s40, 0
      %p319 = por %p317, %p318
      %p320 = scmp.ne.s32.totalorder %s312, %s314
      %p321 = scmp.eq.s32.totalorder %s45, 3
      %p322 = por %p320, %p321
      %p323 = scmp.ne.s32.totalorder %s314, %s315
      %p324 = scmp.eq.s32.totalorder %s45, 0
      %p325 = por %p323, %p324
      %p326 = scmp.ne.s32.totalorder %s314, %s315
      %p327 = scmp.eq.s32.totalorder %s46, 3
      %p328 = por %p326, %p327
      %p330 = scmp.ne.s32.totalorder %s315, %s329
      %p331 = scmp.eq.s32.totalorder %s46, 0
      %p332 = por %p330, %p331
      %s334 = sadd.s32 %s333, 1
      %p337 = scmp.eq.s32.totalorder %s40, 3
      %p338 = scmp.ne.s32.totalorder %s333, %s335
      %p339 = scmp.eq.s32.totalorder %s40, 0
      %p340 = por %p338, %p339
      %p341 = scmp.ne.s32.totalorder %s333, %s335
      %p342 = scmp.eq.s32.totalorder %s45, 3
      %p343 = por %p341, %p342
      %p344 = scmp.ne.s32.totalorder %s335, %s336
      %p345 = scmp.eq.s32.totalorder %s45, 0
      %p346 = por %p344, %p345
      %p347 = scmp.ne.s32.totalorder %s335, %s336
      %p348 = scmp.eq.s32.totalorder %s46, 3
      %p349 = por %p347, %p348
      %p351 = scmp.ne.s32.totalorder %s336, %s350
      %p352 = scmp.eq.s32.totalorder %s46, 0
      %p353 = por %p351, %p352
      %s355 = sadd.s32 %s354, 1
      %p358 = scmp.eq.s32.totalorder %s40, 3
      %p359 = scmp.ne.s32.totalorder %s354, %s356
      %p360 = scmp.eq.s32.totalorder %s40, 0
      %p361 = por %p359, %p360
      %p362 = scmp.ne.s32.totalorder %s354, %s356
      %p363 = scmp.eq.s32.totalorder %s45, 3
      %p364 = por %p362, %p363
      %p365 = scmp.ne.s32.totalorder %s356, %s357
      %p366 = scmp.eq.s32.totalorder %s45, 0
      %p367 = por %p365, %p366
      %p368 = scmp.ne.s32.totalorder %s356, %s357
      %p369 = scmp.eq.s32.totalorder %s46, 3
      %p370 = por %p368, %p369
      %p372 = scmp.ne.s32.totalorder %s357, %s371
      %p373 = scmp.eq.s32.totalorder %s46, 0
      %p374 = por %p372, %p373
      %s376 = sadd.s32 %s375, 1
      %p379 = scmp.eq.s32.totalorder %s40, 3
      %p380 = scmp.ne.s32.totalorder %s375, %s377
      %p381 = scmp.eq.s32.totalorder %s40, 0
      %p382 = por %p380, %p381
      %p383 = scmp.ne.s32.totalorder %s375, %s377
      %p384 = scmp.eq.s32.totalorder %s45, 3
      %p385 = por %p383, %p384
      %p386 = scmp.ne.s32.totalorder %s377, %s378
      %p387 = scmp.eq.s32.totalorder %s45, 0
      %p388 = por %p386, %p387
      %p389 = scmp.ne.s32.totalorder %s377, %s378
      %p390 = scmp.eq.s32.totalorder %s46, 3
      %p391 = por %p389, %p390
      %p393 = scmp.ne.s32.totalorder %s378, %s392
      %p394 = scmp.eq.s32.totalorder %s46, 0
      %p395 = por %p393, %p394
      %s397 = sadd.s32 %s396, 1
      %p400 = scmp.eq.s32.totalorder %s40, 3
      %p401 = scmp.ne.s32.totalorder %s396, %s398
      %p402 = scmp.eq.s32.totalorder %s40, 0
      %p403 = por %p401, %p402
      %p404 = scmp.ne.s32.totalorder %s396, %s398
      %p405 = scmp.eq.s32.totalorder %s45, 3
      %p406 = por %p404, %p405
      %p407 = scmp.ne.s32.totalorder %s398, %s399
      %p408 = scmp.eq.s32.totalorder %s45, 0
      %p409 = por %p407, %p408
      %p410 = scmp.ne.s32.totalorder %s398, %s399
      %p411 = scmp.eq.s32.totalorder %s46, 3
      %p412 = por %p410, %p411
      %p414 = scmp.ne.s32.totalorder %s399, %s413
      %p415 = scmp.eq.s32.totalorder %s46, 0
      %p416 = por %p414, %p415
      %s418 = sadd.s32 %s417, 1
      %p421 = scmp.eq.s32.totalorder %s40, 3
      %p422 = scmp.ne.s32.totalorder %s417, %s419
      %p423 = scmp.eq.s32.totalorder %s40, 0
      %p424 = por %p422, %p423
      %p425 = scmp.ne.s32.totalorder %s417, %s419
      %p426 = scmp.eq.s32.totalorder %s45, 3
      %p427 = por %p425, %p426
      %p428 = scmp.ne.s32.totalorder %s419, %s420
      %p429 = scmp.eq.s32.totalorder %s45, 0
      %p430 = por %p428, %p429
      %p431 = scmp.ne.s32.totalorder %s419, %s420
      %p432 = scmp.eq.s32.totalorder %s46, 3
      %p433 = por %p431, %p432
      %p435 = scmp.ne.s32.totalorder %s420, %s434
      %p436 = scmp.eq.s32.totalorder %s46, 0
      %p437 = por %p435, %p436
      %s438 = ssub.s32 %s47, %s59
      %s439 = ssub.s32 %s48, %s55
      %s440 = sor.u32 %s438, %s439
      %p441 = scmp.eq.s32.totalorder %s440, 0
      %s443 = sadd.s32 %s442, 1
      %s444 = scalar_select %p441, %s442, %s443
      %p447 = pneg %p441
      %p448 = scmp.eq.s32.totalorder %s40, 3
      %p449 = por %p447, %p448
      %p450 = scmp.ne.s32.totalorder %s442, %s445
      %p451 = scmp.eq.s32.totalorder %s40, 0
      %p452 = por %p450, %p451
      %p453 = scmp.ne.s32.totalorder %s442, %s445
      %p454 = scmp.eq.s32.totalorder %s45, 3
      %p455 = por %p453, %p454
      %p456 = scmp.ne.s32.totalorder %s445, %s446
      %p457 = scmp.eq.s32.totalorder %s45, 0
      %p458 = por %p456, %p457
      %p459 = scmp.ne.s32.totalorder %s445, %s446
      %p460 = scmp.eq.s32.totalorder %s46, 3
      %p461 = por %p459, %p460
      %p463 = scmp.ne.s32.totalorder %s446, %s462
      %p464 = scmp.eq.s32.totalorder %s46, 0
      %p465 = por %p463, %p464
      %p466 = scmp.le.s32.totalorder 1, %s40
      %p467 = scmp.lt.s32.totalorder %s40, 5
      %p468 = pnand %p466, %p467
      %p469 = pneg %p468
      // Predicated region
      $region9: #{tpu_custom_call.1} parent=5 // pred_check
        _
      $region10: #{tpu_custom_call.1} parent=5 // pred_check_branch
        %471 = sbr.rel (%p468) target = $region12
      $region11: #{tpu_custom_call.1} parent=5 // pred_region
        %s472 = ssub.s32 %s40, 1
        // Predicated region
        $region13: #{tpu_custom_call.1} parent=11 // pred_check
          %p473 = pneg %p199
        $region14: #{tpu_custom_call.1} parent=11 // pred_check_branch
          %475 = sbr.rel (%p473) target = $region16
        $region15: #{tpu_custom_call.1} parent=11 // pred_region
          %s477 = ssub.s32 2048, 2048
          %478 = vsyncadd [#allocation9], %s477
          %s479 = sshll.u32 [#allocation10], 4
          %s480 = int_to_ptr.vmem [resolvable:$true] %s479
          %485 = dma.hbm_to_vmem [thread:$0]  %s4, 2048, %s480, [#allocation9], 128, 128, 8
        $region16: #{tpu_custom_call.1} parent=11 // pred_fallthru
          _
        // Predicated region
        $region17: #{tpu_custom_call.1} parent=11 // pred_check
          %p486 = pneg %p220
        $region18: #{tpu_custom_call.1} parent=11 // pred_check_branch
          %488 = sbr.rel (%p486) target = $region20
        $region19: #{tpu_custom_call.1} parent=11 // pred_region
          %s490 = ssub.s32 32, 32
          %491 = vsyncadd [#allocation12], %s490
          %s493 = sshll.u32 [#allocation11], 4
          %s494 = int_to_ptr.vmem [resolvable:$true] %s493
          %496 = dma.hbm_to_vmem [thread:$0]  %s5, 32, %s494, [#allocation12]
        $region20: #{tpu_custom_call.1} parent=11 // pred_fallthru
          _
        // Predicated region
        $region21: #{tpu_custom_call.1} parent=11 // pred_check
          %p497 = pneg %p241
        $region22: #{tpu_custom_call.1} parent=11 // pred_check_branch
          %499 = sbr.rel (%p497) target = $region24
        $region23: #{tpu_custom_call.1} parent=11 // pred_region
          %s501 = ssub.s32 1024, 1024
          %502 = vsyncadd [#allocation12], %s501
          %s503 = sshll.u32 [#allocation13], 4
          %s504 = int_to_ptr.vmem [resolvable:$true] %s503
          %509 = dma.hbm_to_vmem [thread:$0]  %s6, 1024, %s504, [#allocation12], 64, 64, 4
        $region24: #{tpu_custom_call.1} parent=11 // pred_fallthru
          _
        // Predicated region
        $region25: #{tpu_custom_call.1} parent=11 // pred_check
          %p510 = pneg %p262
        $region26: #{tpu_custom_call.1} parent=11 // pred_check_branch
          %512 = sbr.rel (%p510) target = $region28
        $region27: #{tpu_custom_call.1} parent=11 // pred_region
          %s514 = ssub.s32 16, 16
          %515 = vsyncadd [#allocation15], %s514
          %s517 = sshll.u32 [#allocation14], 4
          %s518 = int_to_ptr.vmem [resolvable:$true] %s517
          %520 = dma.hbm_to_vmem [thread:$0]  %s7, 16, %s518, [#allocation15]
        $region28: #{tpu_custom_call.1} parent=11 // pred_fallthru
          _
        // Predicated region
        $region29: #{tpu_custom_call.1} parent=11 // pred_check
          %p521 = pneg %p283
        $region30: #{tpu_custom_call.1} parent=11 // pred_check_branch
          %523 = sbr.rel (%p521) target = $region32
        $region31: #{tpu_custom_call.1} parent=11 // pred_region
          %s525 = ssub.s32 256, 256
          %526 = vsyncadd [#allocation15], %s525
          %s527 = sshll.u32 [#allocation16], 4
          %s528 = int_to_ptr.vmem [resolvable:$true] %s527
          %533 = dma.hbm_to_vmem [thread:$0]  %s8, 256, %s528, [#allocation15], 128, 128, 8
        $region32: #{tpu_custom_call.1} parent=11 // pred_fallthru
          _
        // Predicated region
        $region33: #{tpu_custom_call.1} parent=11 // pred_check
          %p534 = pneg %p304
        $region34: #{tpu_custom_call.1} parent=11 // pred_check_branch
          %536 = sbr.rel (%p534) target = $region36
        $region35: #{tpu_custom_call.1} parent=11 // pred_region
          %s538 = ssub.s32 16, 16
          %539 = vsyncadd [#allocation18], %s538
          %s541 = sshll.u32 [#allocation17], 4
          %s542 = int_to_ptr.vmem [resolvable:$true] %s541
          %544 = dma.hbm_to_vmem [thread:$0]  %s9, 16, %s542, [#allocation18]
        $region36: #{tpu_custom_call.1} parent=11 // pred_fallthru
          _
        // Predicated region
        $region37: #{tpu_custom_call.1} parent=11 // pred_check
          %p545 = pneg %p325
        $region38: #{tpu_custom_call.1} parent=11 // pred_check_branch
          %547 = sbr.rel (%p545) target = $region40
        $region39: #{tpu_custom_call.1} parent=11 // pred_region
          %s549 = ssub.s32 1024, 1024
          %550 = vsyncadd [#allocation18], %s549
          %s551 = sshll.u32 [#allocation19], 4
          %s552 = int_to_ptr.vmem [resolvable:$true] %s551
          %557 = dma.hbm_to_vmem [thread:$0]  %s10, 1024, %s552, [#allocation18], 64, 64, 4
        $region40: #{tpu_custom_call.1} parent=11 // pred_fallthru
          _
        // Predicated region
        $region41: #{tpu_custom_call.1} parent=11 // pred_check
          %p558 = pneg %p346
        $region42: #{tpu_custom_call.1} parent=11 // pred_check_branch
          %560 = sbr.rel (%p558) target = $region44
        $region43: #{tpu_custom_call.1} parent=11 // pred_region
          %s562 = ssub.s32 16, 16
          %563 = vsyncadd [#allocation21], %s562
          %s565 = sshll.u32 [#allocation20], 4
          %s566 = int_to_ptr.vmem [resolvable:$true] %s565
          %568 = dma.hbm_to_vmem [thread:$0]  %s11, 16, %s566, [#allocation21]
        $region44: #{tpu_custom_call.1} parent=11 // pred_fallthru
          _
        // Predicated region
        $region45: #{tpu_custom_call.1} parent=11 // pred_check
          %p569 = pneg %p367
        $region46: #{tpu_custom_call.1} parent=11 // pred_check_branch
          %571 = sbr.rel (%p569) target = $region48
        $region47: #{tpu_custom_call.1} parent=11 // pred_region
          %s573 = ssub.s32 4096, 4096
          %574 = vsyncadd [#allocation21], %s573
          %s575 = sshll.u32 [#allocation22], 4
          %s576 = int_to_ptr.vmem [resolvable:$true] %s575
          %581 = dma.hbm_to_vmem [thread:$0]  %s12, 4096, %s576, [#allocation21], 256, 256, 16
        $region48: #{tpu_custom_call.1} parent=11 // pred_fallthru
          _
        // Predicated region
        $region49: #{tpu_custom_call.1} parent=11 // pred_check
          %p582 = pneg %p388
        $region50: #{tpu_custom_call.1} parent=11 // pred_check_branch
          %584 = sbr.rel (%p582) target = $region52
        $region51: #{tpu_custom_call.1} parent=11 // pred_region
          %s586 = ssub.s32 64, 64
          %587 = vsyncadd [#allocation24], %s586
          %s589 = sshll.u32 [#allocation23], 4
          %s590 = int_to_ptr.vmem [resolvable:$true] %s589
          %592 = dma.hbm_to_vmem [thread:$0]  %s13, 64, %s590, [#allocation24]
        $region52: #{tpu_custom_call.1} parent=11 // pred_fallthru
          _
        // Predicated region
        $region53: #{tpu_custom_call.1} parent=11 // pred_check
          %p593 = pneg %p409
        $region54: #{tpu_custom_call.1} parent=11 // pred_check_branch
          %595 = sbr.rel (%p593) target = $region56
        $region55: #{tpu_custom_call.1} parent=11 // pred_region
          %s597 = ssub.s32 2048, 2048
          %598 = vsyncadd [#allocation24], %s597
          %s599 = sshll.u32 [#allocation25], 4
          %s600 = int_to_ptr.vmem [resolvable:$true] %s599
          %605 = dma.hbm_to_vmem [thread:$0]  %s14, 2048, %s600, [#allocation24], 64, 64, 4
        $region56: #{tpu_custom_call.1} parent=11 // pred_fallthru
          _
        // Predicated region
        $region57: #{tpu_custom_call.1} parent=11 // pred_check
          %p606 = pneg %p430
        $region58: #{tpu_custom_call.1} parent=11 // pred_check_branch
          %608 = sbr.rel (%p606) target = $region60
        $region59: #{tpu_custom_call.1} parent=11 // pred_region
          %s610 = ssub.s32 16, 16
          %611 = vsyncadd [#allocation27], %s610
          %s613 = sshll.u32 [#allocation26], 4
          %s614 = int_to_ptr.vmem [resolvable:$true] %s613
          %616 = dma.hbm_to_vmem [thread:$0]  %s15, 16, %s614, [#allocation27]
        $region60: #{tpu_custom_call.1} parent=11 // pred_fallthru
          _
      $region12: #{tpu_custom_call.1} parent=5 // pred_fallthru
        _
      %p617 = scmp.lt.s32.totalorder %s40, 4
      // Predicated region
      $region61: #{tpu_custom_call.1} parent=5 // pred_check
        %p618 = pneg %p617
      $region62: #{tpu_custom_call.1} parent=5 // pred_check_branch
        %620 = sbr.rel (%p618) target = $region64
      $region63: #{tpu_custom_call.1} parent=5 // pred_region
        // Predicated region
        $region65: #{tpu_custom_call.1} parent=63 // pred_check
          %p621 = pneg %p72
        $region66: #{tpu_custom_call.1} parent=63 // pred_check_branch
          %623 = sbr.rel (%p621) target = $region68
        $region67: #{tpu_custom_call.1} parent=63 // pred_region
          %s624 = sand.u32 %s62, 1
          %s625 = scalar_lea.sflag [#allocation3], %s624
          %s626 = sand.u32 %s62, 1
          %s627 = smul.addr %s626, 10
          %s628 = scalar_lea.vmem [#allocation2], %s627
          %s630 = ssub.s32 160, 160
          %631 = vsyncadd %s625, %s630
          %s632 = smul.addr %s48, 10
          %s633 = smul.addr %s632, 16
          %s634 = scalar_lea.hbm %s0, %s633
          %s635 = sshll.u32 %s628, 4
          %s636 = int_to_ptr.vmem [resolvable:$true] %s635
          %641 = dma.hbm_to_vmem [thread:$0]  %s634, 160, %s636, %s625, 16, 16, 1
        $region68: #{tpu_custom_call.1} parent=63 // pred_fallthru
          _
        // Predicated region
        $region69: #{tpu_custom_call.1} parent=63 // pred_check
          %p642 = pneg %p100
        $region70: #{tpu_custom_call.1} parent=63 // pred_check_branch
          %644 = sbr.rel (%p642) target = $region72
        $region71: #{tpu_custom_call.1} parent=63 // pred_region
          %s645 = sand.u32 %s40, 1
          %s646 = scalar_lea.sflag [#allocation6], %s645
          %s647 = sand.u32 %s90, 1
          %s648 = smul.addr %s647, 64
          %s649 = scalar_lea.vmem [#allocation5], %s648
          %s650 = smul.u32 8, %s48
          %s652 = ssub.s32 1024, 1024
          %653 = vsyncadd %s646, %s652
          %s654 = smul.addr %s650, 2
          %s655 = smul.addr %s47, 32
          %s656 = sadd.s32 %s654, %s655
          %s657 = smul.addr %s656, 64
          %s658 = scalar_lea.hbm %s1, %s657
          %s659 = sshll.u32 %s649, 4
          %s660 = int_to_ptr.vmem [resolvable:$true] %s659
          %665 = dma.hbm_to_vmem [thread:$0]  %s658, 1024, %s660, %s646, 64, 64, 4
        $region72: #{tpu_custom_call.1} parent=63 // pred_fallthru
          _
        // Predicated region
        $region73: #{tpu_custom_call.1} parent=63 // pred_check
          %p666 = pneg %p136
        $region74: #{tpu_custom_call.1} parent=63 // pred_check_branch
          %668 = sbr.rel (%p666) target = $region76
        $region75: #{tpu_custom_call.1} parent=63 // pred_region
          %s669 = sand.u32 %s40, 1
          %s670 = scalar_lea.sflag [#allocation6], %s669
          %s671 = sand.u32 %s126, 1
          %s672 = smul.addr %s671, 8
          %s673 = scalar_lea.vmem [#allocation7], %s672
          %s674 = smul.u32 %s48, 8
          %s675 = ssub.s32 %s674, 1
          %p676 = scmp.gt.s32.totalorder %s675, 0
          %s677 = scalar_select %p676, %s675, 0
          %s679 = ssub.s32 128, 128
          %680 = vsyncadd %s670, %s679
          %s681 = smul.addr %s677, 2
          %s682 = smul.addr %s47, 32
          %s683 = sadd.s32 %s681, %s682
          %s684 = smul.addr %s683, 64
          %s685 = scalar_lea.hbm %s2, %s684
          %s686 = sshll.u32 %s673, 4
          %s687 = int_to_ptr.vmem [resolvable:$true] %s686
          %692 = dma.hbm_to_vmem [thread:$0]  %s685, 128, %s687, %s670, 64, 64, 4
        $region76: #{tpu_custom_call.1} parent=63 // pred_fallthru
          _
        // Predicated region
        $region77: #{tpu_custom_call.1} parent=63 // pred_check
          %p693 = pneg %p172
        $region78: #{tpu_custom_call.1} parent=63 // pred_check_branch
          %695 = sbr.rel (%p693) target = $region80
        $region79: #{tpu_custom_call.1} parent=63 // pred_region
          %s696 = sand.u32 %s40, 1
          %s697 = scalar_lea.sflag [#allocation9], %s696
          %s698 = sand.u32 %s162, 1
          %s699 = smul.addr %s698, 8
          %s700 = scalar_lea.vmem [#allocation8], %s699
          %s701 = sadd.s32 %s48, 1
          %s702 = smul.u32 %s701, 8
          %p703 = scmp.lt.s32.totalorder %s702, 15
          %s704 = scalar_select %p703, %s702, 15
          %s706 = ssub.s32 128, 128
          %707 = vsyncadd %s697, %s706
          %s708 = smul.addr %s704, 2
          %s709 = smul.addr %s47, 32
          %s710 = sadd.s32 %s708, %s709
          %s711 = smul.addr %s710, 64
          %s712 = scalar_lea.hbm %s3, %s711
          %s713 = sshll.u32 %s700, 4
          %s714 = int_to_ptr.vmem [resolvable:$true] %s713
          %719 = dma.hbm_to_vmem [thread:$0]  %s712, 128, %s714, %s697, 64, 64, 4
        $region80: #{tpu_custom_call.1} parent=63 // pred_fallthru
          _
      $region64: #{tpu_custom_call.1} parent=5 // pred_fallthru
        _
      %p720 = scmp.le.s32.totalorder 1, %s40
      %p721 = scmp.lt.s32.totalorder %s40, 5
      %p722 = pnand %p720, %p721
      %p723 = pneg %p722
      // Predicated region
      $region81: #{tpu_custom_call.1} parent=5 // pred_check
        _
      $region82: #{tpu_custom_call.1} parent=5 // pred_check_branch
        %725 = sbr.rel (%p722) target = $region84
      $region83: #{tpu_custom_call.1} parent=5 // pred_region
        %s726 = ssub.s32 %s40, 1
        %s727 = sand.u32 %s65, 1
        %s728 = scalar_lea.sflag [#allocation3], %s727
        %s729 = sand.u32 %s65, 1
        %s730 = smul.addr %s729, 10
        %s731 = scalar_lea.vmem [#allocation2], %s730
        // Predicated region
        $region85: #{tpu_custom_call.1} parent=83 // pred_check
          %p732 = pneg %p78
        $region86: #{tpu_custom_call.1} parent=83 // pred_check_branch
          %734 = sbr.rel (%p732) target = $region88
        $region87: #{tpu_custom_call.1} parent=83 // pred_region
          %735 = dma.done %s728, 160
        $region88: #{tpu_custom_call.1} parent=83 // pred_fallthru
          _
        %s736 = sand.u32 %s45, 1
        %s737 = scalar_lea.sflag [#allocation6], %s736
        %s738 = sand.u32 %s93, 1
        %s739 = smul.addr %s738, 64
        %s740 = scalar_lea.vmem [#allocation5], %s739
        // Predicated region
        $region89: #{tpu_custom_call.1} parent=83 // pred_check
          %p741 = pneg %p106
        $region90: #{tpu_custom_call.1} parent=83 // pred_check_branch
          %743 = sbr.rel (%p741) target = $region92
        $region91: #{tpu_custom_call.1} parent=83 // pred_region
          %744 = dma.done %s737, 1024
        $region92: #{tpu_custom_call.1} parent=83 // pred_fallthru
          _
        %s745 = sand.u32 %s45, 1
        %s746 = scalar_lea.sflag [#allocation6], %s745
        %s747 = sand.u32 %s129, 1
        %s748 = smul.addr %s747, 8
        %s749 = scalar_lea.vmem [#allocation7], %s748
        // Predicated region
        $region93: #{tpu_custom_call.1} parent=83 // pred_check
          %p750 = pneg %p142
        $region94: #{tpu_custom_call.1} parent=83 // pred_check_branch
          %752 = sbr.rel (%p750) target = $region96
        $region95: #{tpu_custom_call.1} parent=83 // pred_region
          %753 = dma.done %s746, 128
        $region96: #{tpu_custom_call.1} parent=83 // pred_fallthru
          _
        %s754 = sand.u32 %s45, 1
        %s755 = scalar_lea.sflag [#allocation9], %s754
        %s756 = sand.u32 %s165, 1
        %s757 = smul.addr %s756, 8
        %s758 = scalar_lea.vmem [#allocation8], %s757
        // Predicated region
        $region97: #{tpu_custom_call.1} parent=83 // pred_check
          %p759 = pneg %p178
        $region98: #{tpu_custom_call.1} parent=83 // pred_check_branch
          %761 = sbr.rel (%p759) target = $region100
        $region99: #{tpu_custom_call.1} parent=83 // pred_region
          %762 = dma.done %s755, 128
        $region100: #{tpu_custom_call.1} parent=83 // pred_fallthru
          _
        // Predicated region
        $region101: #{tpu_custom_call.1} parent=83 // pred_check
          %p763 = pneg %p199
        $region102: #{tpu_custom_call.1} parent=83 // pred_check_branch
          %765 = sbr.rel (%p763) target = $region104
        $region103: #{tpu_custom_call.1} parent=83 // pred_region
          %766 = dma.done [#allocation9], 2048
        $region104: #{tpu_custom_call.1} parent=83 // pred_fallthru
          _
        // Predicated region
        $region105: #{tpu_custom_call.1} parent=83 // pred_check
          %p767 = pneg %p220
        $region106: #{tpu_custom_call.1} parent=83 // pred_check_branch
          %769 = sbr.rel (%p767) target = $region108
        $region107: #{tpu_custom_call.1} parent=83 // pred_region
          %770 = dma.done [#allocation12], 32
        $region108: #{tpu_custom_call.1} parent=83 // pred_fallthru
          _
        // Predicated region
        $region109: #{tpu_custom_call.1} parent=83 // pred_check
          %p771 = pneg %p241
        $region110: #{tpu_custom_call.1} parent=83 // pred_check_branch
          %773 = sbr.rel (%p771) target = $region112
        $region111: #{tpu_custom_call.1} parent=83 // pred_region
          %774 = dma.done [#allocation12], 1024
        $region112: #{tpu_custom_call.1} parent=83 // pred_fallthru
          _
        // Predicated region
        $region113: #{tpu_custom_call.1} parent=83 // pred_check
          %p775 = pneg %p262
        $region114: #{tpu_custom_call.1} parent=83 // pred_check_branch
          %777 = sbr.rel (%p775) target = $region116
        $region115: #{tpu_custom_call.1} parent=83 // pred_region
          %778 = dma.done [#allocation15], 16
        $region116: #{tpu_custom_call.1} parent=83 // pred_fallthru
          _
        // Predicated region
        $region117: #{tpu_custom_call.1} parent=83 // pred_check
          %p779 = pneg %p283
        $region118: #{tpu_custom_call.1} parent=83 // pred_check_branch
          %781 = sbr.rel (%p779) target = $region120
        $region119: #{tpu_custom_call.1} parent=83 // pred_region
          %782 = dma.done [#allocation15], 256
        $region120: #{tpu_custom_call.1} parent=83 // pred_fallthru
          _
        // Predicated region
        $region121: #{tpu_custom_call.1} parent=83 // pred_check
          %p783 = pneg %p304
        $region122: #{tpu_custom_call.1} parent=83 // pred_check_branch
          %785 = sbr.rel (%p783) target = $region124
        $region123: #{tpu_custom_call.1} parent=83 // pred_region
          %786 = dma.done [#allocation18], 16
        $region124: #{tpu_custom_call.1} parent=83 // pred_fallthru
          _
        // Predicated region
        $region125: #{tpu_custom_call.1} parent=83 // pred_check
          %p787 = pneg %p325
        $region126: #{tpu_custom_call.1} parent=83 // pred_check_branch
          %789 = sbr.rel (%p787) target = $region128
        $region127: #{tpu_custom_call.1} parent=83 // pred_region
          %790 = dma.done [#allocation18], 1024
        $region128: #{tpu_custom_call.1} parent=83 // pred_fallthru
          _
        // Predicated region
        $region129: #{tpu_custom_call.1} parent=83 // pred_check
          %p791 = pneg %p346
        $region130: #{tpu_custom_call.1} parent=83 // pred_check_branch
          %793 = sbr.rel (%p791) target = $region132
        $region131: #{tpu_custom_call.1} parent=83 // pred_region
          %794 = dma.done [#allocation21], 16
        $region132: #{tpu_custom_call.1} parent=83 // pred_fallthru
          _
        // Predicated region
        $region133: #{tpu_custom_call.1} parent=83 // pred_check
          %p795 = pneg %p367
        $region134: #{tpu_custom_call.1} parent=83 // pred_check_branch
          %797 = sbr.rel (%p795) target = $region136
        $region135: #{tpu_custom_call.1} parent=83 // pred_region
          %798 = dma.done [#allocation21], 4096
        $region136: #{tpu_custom_call.1} parent=83 // pred_fallthru
          _
        // Predicated region
        $region137: #{tpu_custom_call.1} parent=83 // pred_check
          %p799 = pneg %p388
        $region138: #{tpu_custom_call.1} parent=83 // pred_check_branch
          %801 = sbr.rel (%p799) target = $region140
        $region139: #{tpu_custom_call.1} parent=83 // pred_region
          %802 = dma.done [#allocation24], 64
        $region140: #{tpu_custom_call.1} parent=83 // pred_fallthru
          _
        // Predicated region
        $region141: #{tpu_custom_call.1} parent=83 // pred_check
          %p803 = pneg %p409
        $region142: #{tpu_custom_call.1} parent=83 // pred_check_branch
          %805 = sbr.rel (%p803) target = $region144
        $region143: #{tpu_custom_call.1} parent=83 // pred_region
          %806 = dma.done [#allocation24], 2048
        $region144: #{tpu_custom_call.1} parent=83 // pred_fallthru
          _
        // Predicated region
        $region145: #{tpu_custom_call.1} parent=83 // pred_check
          %p807 = pneg %p430
        $region146: #{tpu_custom_call.1} parent=83 // pred_check_branch
          %809 = sbr.rel (%p807) target = $region148
        $region147: #{tpu_custom_call.1} parent=83 // pred_region
          %810 = dma.done [#allocation27], 16
        $region148: #{tpu_custom_call.1} parent=83 // pred_fallthru
          _
        %s811 = sand.u32 %s65, 1
        %s812 = scalar_lea.sflag [#allocation3], %s811
        %s813 = sand.u32 %s65, 1
        %s814 = smul.addr %s813, 10
        %s815 = scalar_lea.vmem [#allocation2], %s814
        %p816 = pneg %p78
        %p817 = pneg %p75
        %s818 = sand.u32 %s45, 1
        %s819 = scalar_lea.sflag [#allocation6], %s818
        %s820 = sand.u32 %s93, 1
        %s821 = smul.addr %s820, 64
        %s822 = scalar_lea.vmem [#allocation5], %s821
        %p823 = pneg %p106
        %p824 = pneg %p103
        %s825 = sand.u32 %s45, 1
        %s826 = scalar_lea.sflag [#allocation6], %s825
        %s827 = sand.u32 %s129, 1
        %s828 = smul.addr %s827, 8
        %s829 = scalar_lea.vmem [#allocation7], %s828
        %p830 = pneg %p142
        %p831 = pneg %p139
        %s832 = sand.u32 %s45, 1
        %s833 = scalar_lea.sflag [#allocation9], %s832
        %s834 = sand.u32 %s165, 1
        %s835 = smul.addr %s834, 8
        %s836 = scalar_lea.vmem [#allocation8], %s835
        %p837 = pneg %p178
        %p838 = pneg %p175
        %p839 = pneg %p199
        %p840 = pneg %p196
        %p841 = pneg %p220
        %p842 = pneg %p217
        %p843 = pneg %p241
        %p844 = pneg %p238
        %p845 = pneg %p262
        %p846 = pneg %p259
        %p847 = pneg %p283
        %p848 = pneg %p280
        %p849 = pneg %p304
        %p850 = pneg %p301
        %p851 = pneg %p325
        %p852 = pneg %p322
        %p853 = pneg %p346
        %p854 = pneg %p343
        %p855 = pneg %p367
        %p856 = pneg %p364
        %p857 = pneg %p388
        %p858 = pneg %p385
        %p859 = pneg %p409
        %p860 = pneg %p406
        %p861 = pneg %p430
        %p862 = pneg %p427
        %p863 = pneg %p458
        %p864 = pneg %p455
        %s865 = sand.u32 %s445, 1
        %s866 = scalar_lea.sflag [#allocation4], %s865
        %s867 = sand.u32 %s445, 1
        %s868 = smul.addr %s867, 128
        %s869 = scalar_lea.vmem [#allocation28], %s868
        %s870 = smul.u32 8, %s50
        %s871 = smul.u32 %s50, 8
        %s872 = ssub.s32 %s871, 1
        %p873 = scmp.gt.s32.totalorder %s872, 0
        %s874 = scalar_select %p873, %s872, 0
        %s875 = sadd.s32 %s50, 1
        %s876 = smul.u32 %s875, 8
        %p877 = scmp.lt.s32.totalorder %s876, 15
        %s878 = scalar_select %p877, %s876, 15
        %s879 = smul.u32 8, %s50
        %v881 = vld [vmem:[%s740] sm:$0xf]
        %v882 = vld [vmem:[%s740 + $0x4] sm:$0xf]
        %v883 = vld [vmem:[%s740 + $0x8] sm:$0xf]
        %v884 = vld [vmem:[%s740 + $0xc] sm:$0xf]
        %v885 = vld [vmem:[%s740 + $0x10] sm:$0xf]
        %v886 = vld [vmem:[%s740 + $0x14] sm:$0xf]
        %v887 = vld [vmem:[%s740 + $0x18] sm:$0xf]
        %v888 = vld [vmem:[%s740 + $0x1c] sm:$0xf]
        %v889 = vld [vmem:[%s740 + $0x20] sm:$0xf]
        %v890 = vld [vmem:[%s740 + $0x24] sm:$0xf]
        %v891 = vld [vmem:[%s740 + $0x28] sm:$0xf]
        %v892 = vld [vmem:[%s740 + $0x2c] sm:$0xf]
        %v893 = vld [vmem:[%s740 + $0x30] sm:$0xf]
        %v894 = vld [vmem:[%s740 + $0x34] sm:$0xf]
        %v895 = vld [vmem:[%s740 + $0x38] sm:$0xf]
        %v896 = vld [vmem:[%s740 + $0x3c] sm:$0xf]
        %v897 = vld [vmem:[#allocation10] sm:$0xff]
        %v898 = vld [vmem:[#allocation10 + $0x8] sm:$0xff]
        %v899 = vld [vmem:[#allocation10 + $0x10] sm:$0xff]
        %v900 = vld [vmem:[#allocation10 + $0x18] sm:$0xff]
        %v901 = vld [vmem:[#allocation10 + $0x20] sm:$0xff]
        %v902 = vld [vmem:[#allocation10 + $0x28] sm:$0xff]
        %v903 = vld [vmem:[#allocation10 + $0x30] sm:$0xff]
        %v904 = vld [vmem:[#allocation10 + $0x38] sm:$0xff]
        %v905 = vld [vmem:[#allocation10 + $0x40] sm:$0xff]
        %v906 = vld [vmem:[#allocation10 + $0x48] sm:$0xff]
        %v907 = vld [vmem:[#allocation10 + $0x50] sm:$0xff]
        %v908 = vld [vmem:[#allocation10 + $0x58] sm:$0xff]
        %v909 = vld [vmem:[#allocation10 + $0x60] sm:$0xff]
        %v910 = vld [vmem:[#allocation10 + $0x68] sm:$0xff]
        %v911 = vld [vmem:[#allocation10 + $0x70] sm:$0xff]
        %v912 = vld [vmem:[#allocation10 + $0x78] sm:$0xff]
        %v913 = vld [vmem:[#allocation11] sm:$0x3]
        %v915 = vlaneseq
        %v916 = vshrl.u32 %v915, 7
        %v917 = vsub.s32 0, %v916
        %v918 = vrot.slane %v913, %v917
        %v919 = vlaneseq
        %v920 = vshrl.u32 %v919, 7
        %v921 = vsub.s32 1, %v920
        %v922 = vrot.slane %v913, %v921
        %v941 = vunpack.c.l.b16 %v881
        %v942 = vunpack.c.l.b16 %v882
        %v943 = vunpack.c.l.b16 %v883
        %v944 = vunpack.c.l.b16 %v884
        %v945 = vunpack.c.l.b16 %v885
        %v946 = vunpack.c.l.b16 %v886
        %v947 = vunpack.c.l.b16 %v887
        %v948 = vunpack.c.l.b16 %v888
        %v949 = vunpack.c.l.b16 %v889
        %v950 = vunpack.c.l.b16 %v890
        %v951 = vunpack.c.l.b16 %v891
        %v952 = vunpack.c.l.b16 %v892
        %v953 = vunpack.c.l.b16 %v893
        %v954 = vunpack.c.l.b16 %v894
        %v955 = vunpack.c.l.b16 %v895
        %v956 = vunpack.c.l.b16 %v896
        %v957 = vpack.c.b16 %v942, %v941
        %v958 = vpack.c.b16 %v944, %v943
        %v959 = vpack.c.b16 %v946, %v945
        %v960 = vpack.c.b16 %v948, %v947
        %v961 = vpack.c.b16 %v950, %v949
        %v962 = vpack.c.b16 %v952, %v951
        %v963 = vpack.c.b16 %v954, %v953
        %v964 = vpack.c.b16 %v956, %v955
        %v989 = vunpack.c.l.b16 %v897
        %v990 = vunpack.c.h.b16 %v897
        %v991 = vunpack.c.l.b16 %v898
        %v992 = vunpack.c.h.b16 %v898
        %v993 = vunpack.c.l.b16 %v899
        %v994 = vunpack.c.h.b16 %v899
        %v995 = vunpack.c.l.b16 %v900
        %v996 = vunpack.c.h.b16 %v900
        %v997 = vunpack.c.l.b16 %v901
        %v998 = vunpack.c.h.b16 %v901
        %v999 = vunpack.c.l.b16 %v902
        %v1000 = vunpack.c.h.b16 %v902
        %v1001 = vunpack.c.l.b16 %v903
        %v1002 = vunpack.c.h.b16 %v903
        %v1003 = vunpack.c.l.b16 %v904
        %v1004 = vunpack.c.h.b16 %v904
        %v1005 = vunpack.c.l.b16 %v905
        %v1006 = vunpack.c.h.b16 %v905
        %v1007 = vunpack.c.l.b16 %v906
        %v1008 = vunpack.c.h.b16 %v906
        %v1009 = vunpack.c.l.b16 %v907
        %v1010 = vunpack.c.h.b16 %v907
        %v1011 = vunpack.c.l.b16 %v908
        %v1012 = vunpack.c.h.b16 %v908
        %v1013 = vunpack.c.l.b16 %v909
        %v1014 = vunpack.c.h.b16 %v909
        %v1015 = vunpack.c.l.b16 %v910
        %v1016 = vunpack.c.h.b16 %v910
        %v1017 = vunpack.c.l.b16 %v911
        %v1018 = vunpack.c.h.b16 %v911
        %v1019 = vunpack.c.l.b16 %v912
        %v1020 = vunpack.c.h.b16 %v912
        %v1021 = vpack.c.b16 %v991, %v989
        %v1022 = vpack.c.b16 %v992, %v990
        %v1023 = vpack.c.b16 %v995, %v993
        %v1024 = vpack.c.b16 %v996, %v994
        %v1025 = vpack.c.b16 %v999, %v997
        %v1026 = vpack.c.b16 %v1000, %v998
        %v1027 = vpack.c.b16 %v1003, %v1001
        %v1028 = vpack.c.b16 %v1004, %v1002
        %v1029 = vpack.c.b16 %v1007, %v1005
        %v1030 = vpack.c.b16 %v1008, %v1006
        %v1031 = vpack.c.b16 %v1011, %v1009
        %v1032 = vpack.c.b16 %v1012, %v1010
        %v1033 = vpack.c.b16 %v1015, %v1013
        %v1034 = vpack.c.b16 %v1016, %v1014
        %v1035 = vpack.c.b16 %v1019, %v1017
        %v1036 = vpack.c.b16 %v1020, %v1018
        %1053 = vmatprep.subr.bf16.mxu0 %v1022
        %1054 = vmatpush1.bf16.msra.mxu0 %v1021
        %1055 = vmatprep.subr.bf16.mxu0 %v1024
        %1056 = vmatpush1.bf16.msra.mxu0 %v1023
        %1057 = vmatprep.subr.bf16.mxu0 %v1026
        %1058 = vmatpush1.bf16.msra.mxu0 %v1025
        %1059 = vmatprep.subr.bf16.mxu0 %v1028
        %1060 = vmatpush1.bf16.msra.mxu0 %v1027
        %1061 = vmatprep.subr.bf16.mxu0 %v1030
        %1062 = vmatpush1.bf16.msra.mxu0 %v1029
        %1063 = vmatprep.subr.bf16.mxu0 %v1032
        %1064 = vmatpush1.bf16.msra.mxu0 %v1031
        %1065 = vmatprep.subr.bf16.mxu0 %v1034
        %1066 = vmatpush1.bf16.msra.mxu0 %v1033
        %1067 = vmatprep.subr.bf16.mxu0 %v1036
        %1068 = vmatpush1.bf16.msra.mxu0 %v1035
        %1069 = vmatprep.subr.bf16.mxu0 0
        %1070 = vmatpush1.bf16.msra.mxu0 0
        %1071 = vmatprep.subr.bf16.mxu0 0
        %1072 = vmatpush1.bf16.msra.mxu0 0
        %1073 = vmatprep.subr.bf16.mxu0 0
        %1074 = vmatpush1.bf16.msra.mxu0 0
        %1075 = vmatprep.subr.bf16.mxu0 0
        %1076 = vmatpush1.bf16.msra.mxu0 0
        %1077 = vmatprep.subr.bf16.mxu0 0
        %1078 = vmatpush1.bf16.msra.mxu0 0
        %1079 = vmatprep.subr.bf16.mxu0 0
        %1080 = vmatpush1.bf16.msra.mxu0 0
        %1081 = vmatprep.subr.bf16.mxu0 0
        %1082 = vmatpush1.bf16.msra.mxu0 0
        %1083 = vmatprep.subr.bf16.mxu0 0
        %1084 = vmatpush1.bf16.msra.mxu0 0
        %1085 = vmatprep.mubr.bf16.mxu0 0
        %1086 = vmatmul.mubr.bf16.gmra.mrb[0].mxu0 %v957
        %v1087 = vpop.f32.mrb[0].mxu0
        %v1088 = vadd.f32 %v918, %v1087
        %v1089 = vpop.f32.mrb[0].mxu0
        %v1090 = vadd.f32 %v922, %v1089
        %v1091 = vpop.f32.mrb[0].mxu0
        %v1092 = vadd.f32 %v918, %v1091
        %v1093 = vpop.f32.mrb[0].mxu0
        %v1094 = vadd.f32 %v922, %v1093
        %1095 = vmatprep.mubr.bf16.mxu0 0
        %1096 = vmatmul.mubr.bf16.gmra.mrb[0].mxu0 %v958
        %v1097 = vpop.f32.mrb[0].mxu0
        %v1098 = vadd.f32 %v918, %v1097
        %v1099 = vpop.f32.mrb[0].mxu0
        %v1100 = vadd.f32 %v922, %v1099
        %v1101 = vpop.f32.mrb[0].mxu0
        %v1102 = vadd.f32 %v918, %v1101
        %v1103 = vpop.f32.mrb[0].mxu0
        %v1104 = vadd.f32 %v922, %v1103
        %1105 = vmatprep.mubr.bf16.mxu0 0
        %1106 = vmatmul.mubr.bf16.gmra.mrb[0].mxu0 %v959
        %v1107 = vpop.f32.mrb[0].mxu0
        %v1108 = vadd.f32 %v918, %v1107
        %v1109 = vpop.f32.mrb[0].mxu0
        %v1110 = vadd.f32 %v922, %v1109
        %v1111 = vpop.f32.mrb[0].mxu0
        %v1112 = vadd.f32 %v918, %v1111
        %v1113 = vpop.f32.mrb[0].mxu0
        %v1114 = vadd.f32 %v922, %v1113
        %1115 = vmatprep.mubr.bf16.mxu0 0
        %1116 = vmatmul.mubr.bf16.gmra.mrb[0].mxu0 %v960
        %v1117 = vpop.f32.mrb[0].mxu0
        %v1118 = vadd.f32 %v918, %v1117
        %v1119 = vpop.f32.mrb[0].mxu0
        %v1120 = vadd.f32 %v922, %v1119
        %v1121 = vpop.f32.mrb[0].mxu0
        %v1122 = vadd.f32 %v918, %v1121
        %v1123 = vpop.f32.mrb[0].mxu0
        %v1124 = vadd.f32 %v922, %v1123
        %1125 = vmatprep.mubr.bf16.mxu0 0
        %1126 = vmatmul.mubr.bf16.gmra.mrb[0].mxu0 %v961
        %v1127 = vpop.f32.mrb[0].mxu0
        %v1128 = vadd.f32 %v918, %v1127
        %v1129 = vpop.f32.mrb[0].mxu0
        %v1130 = vadd.f32 %v922, %v1129
        %v1131 = vpop.f32.mrb[0].mxu0
        %v1132 = vadd.f32 %v918, %v1131
        %v1133 = vpop.f32.mrb[0].mxu0
        %v1134 = vadd.f32 %v922, %v1133
        %1135 = vmatprep.mubr.bf16.mxu0 0
        %1136 = vmatmul.mubr.bf16.gmra.mrb[0].mxu0 %v962
        %v1137 = vpop.f32.mrb[0].mxu0
        %v1138 = vadd.f32 %v918, %v1137
        %v1139 = vpop.f32.mrb[0].mxu0
        %v1140 = vadd.f32 %v922, %v1139
        %v1141 = vpop.f32.mrb[0].mxu0
        %v1142 = vadd.f32 %v918, %v1141
        %v1143 = vpop.f32.mrb[0].mxu0
        %v1144 = vadd.f32 %v922, %v1143
        %1145 = vmatprep.mubr.bf16.mxu0 0
        %1146 = vmatmul.mubr.bf16.gmra.mrb[0].mxu0 %v963
        %v1147 = vpop.f32.mrb[0].mxu0
        %v1148 = vadd.f32 %v918, %v1147
        %v1149 = vpop.f32.mrb[0].mxu0
        %v1150 = vadd.f32 %v922, %v1149
        %v1151 = vpop.f32.mrb[0].mxu0
        %v1152 = vadd.f32 %v918, %v1151
        %v1153 = vpop.f32.mrb[0].mxu0
        %v1154 = vadd.f32 %v922, %v1153
        %1155 = vmatprep.mubr.bf16.mxu0 0
        %1156 = vmatmul.mubr.bf16.gmra.mrb[0].mxu0 %v964
        %v1157 = vpop.f32.mrb[0].mxu0
        %v1158 = vadd.f32 %v918, %v1157
        %v1159 = vpop.f32.mrb[0].mxu0
        %v1160 = vadd.f32 %v922, %v1159
        %v1161 = vpop.f32.mrb[0].mxu0
        %v1162 = vadd.f32 %v918, %v1161
        %v1163 = vpop.f32.mrb[0].mxu0
        %v1164 = vadd.f32 %v922, %v1163
        %1165 = vdwg.mxu0
        %v1166 = vunpack.c.l.bf16 %v881
        %v1167 = vunpack.c.l.bf16 %v882
        %v1168 = vunpack.c.l.bf16 %v883
        %v1169 = vunpack.c.l.bf16 %v884
        %v1170 = vunpack.c.l.bf16 %v885
        %v1171 = vunpack.c.l.bf16 %v886
        %v1172 = vunpack.c.l.bf16 %v887
        %v1173 = vunpack.c.l.bf16 %v888
        %v1174 = vunpack.c.l.bf16 %v889
        %v1175 = vunpack.c.l.bf16 %v890
        %v1176 = vunpack.c.l.bf16 %v891
        %v1177 = vunpack.c.l.bf16 %v892
        %v1178 = vunpack.c.l.bf16 %v893
        %v1179 = vunpack.c.l.bf16 %v894
        %v1180 = vunpack.c.l.bf16 %v895
        %v1181 = vunpack.c.l.bf16 %v896
        %v1182 = vld [vmem:[%s749] sm:$0xf]
        %v1183 = vld [vmem:[%s749 + $0x4] sm:$0xf]
        %v1184 = vld [vmem:[%s758] sm:$0xf]
        %v1185 = vld [vmem:[%s758 + $0x4] sm:$0xf]
        %v1188 = vunpack.c.l.b16 %v1182
        %v1189 = vunpack.c.l.b16 %v1183
        %v1190 = vpack.c.b16 %v1189, %v1188
        %v1194 = vunpack.c.l.b16 %v1184
        %v1195 = vunpack.c.l.b16 %v1185
        %v1196 = vpack.c.b16 %v1195, %v1194
        %v1198 = vld [vmem:[#allocation13] sm:$0xf]
        %v1199 = vld [vmem:[#allocation13 + $0x4] sm:$0xf]
        %v1200 = vld [vmem:[#allocation13 + $0x8] sm:$0xf]
        %v1201 = vld [vmem:[#allocation13 + $0xc] sm:$0xf]
        %v1202 = vld [vmem:[#allocation13 + $0x10] sm:$0xf]
        %v1203 = vld [vmem:[#allocation13 + $0x14] sm:$0xf]
        %v1204 = vld [vmem:[#allocation13 + $0x18] sm:$0xf]
        %v1205 = vld [vmem:[#allocation13 + $0x1c] sm:$0xf]
        %v1206 = vld [vmem:[#allocation13 + $0x20] sm:$0xf]
        %v1207 = vld [vmem:[#allocation13 + $0x24] sm:$0xf]
        %v1208 = vld [vmem:[#allocation13 + $0x28] sm:$0xf]
        %v1209 = vld [vmem:[#allocation13 + $0x2c] sm:$0xf]
        %v1210 = vld [vmem:[#allocation13 + $0x30] sm:$0xf]
        %v1211 = vld [vmem:[#allocation13 + $0x34] sm:$0xf]
        %v1212 = vld [vmem:[#allocation13 + $0x38] sm:$0xf]
        %v1213 = vld [vmem:[#allocation13 + $0x3c] sm:$0xf]
        %v1214 = vld [vmem:[#allocation14] sm:$0x1]
        %v1216 = vlaneseq
        %v1217 = vshrl.u32 %v1216, 7
        %v1218 = vsub.s32 0, %v1217
        %v1219 = vrot.slane %v1214, %v1218
        %v1237 = vunpack.c.l.b16 %v1198
        %v1238 = vunpack.c.l.b16 %v1199
        %v1239 = vunpack.c.l.b16 %v1200
        %v1240 = vunpack.c.l.b16 %v1201
        %v1241 = vunpack.c.l.b16 %v1202
        %v1242 = vunpack.c.l.b16 %v1203
        %v1243 = vunpack.c.l.b16 %v1204
        %v1244 = vunpack.c.l.b16 %v1205
        %v1245 = vunpack.c.l.b16 %v1206
        %v1246 = vunpack.c.l.b16 %v1207
        %v1247 = vunpack.c.l.b16 %v1208
        %v1248 = vunpack.c.l.b16 %v1209
        %v1249 = vunpack.c.l.b16 %v1210
        %v1250 = vunpack.c.l.b16 %v1211
        %v1251 = vunpack.c.l.b16 %v1212
        %v1252 = vunpack.c.l.b16 %v1213
        %v1253 = vpack.c.b16 %v1238, %v1237
        %v1254 = vpack.c.b16 %v1240, %v1239
        %v1255 = vpack.c.b16 %v1242, %v1241
        %v1256 = vpack.c.b16 %v1244, %v1243
        %v1257 = vpack.c.b16 %v1246, %v1245
        %v1258 = vpack.c.b16 %v1248, %v1247
        %v1259 = vpack.c.b16 %v1250, %v1249
        %v1260 = vpack.c.b16 %v1252, %v1251
        %1269 = vmatprep.subr.bf16.mxu0 0
        %1270 = vmatpush1.bf16.msra.mxu0 %v1253
        %1271 = vmatprep.subr.bf16.mxu0 0
        %1272 = vmatpush1.bf16.msra.mxu0 %v1254
        %1273 = vmatprep.subr.bf16.mxu0 0
        %1274 = vmatpush1.bf16.msra.mxu0 %v1255
        %1275 = vmatprep.subr.bf16.mxu0 0
        %1276 = vmatpush1.bf16.msra.mxu0 %v1256
        %1277 = vmatprep.subr.bf16.mxu0 0
        %1278 = vmatpush1.bf16.msra.mxu0 %v1257
        %1279 = vmatprep.subr.bf16.mxu0 0
        %1280 = vmatpush1.bf16.msra.mxu0 %v1258
        %1281 = vmatprep.subr.bf16.mxu0 0
        %1282 = vmatpush1.bf16.msra.mxu0 %v1259
        %1283 = vmatprep.subr.bf16.mxu0 0
        %1284 = vmatpush1.bf16.msra.mxu0 %v1260
        %1285 = vmatprep.subr.bf16.mxu0 0
        %1286 = vmatpush1.bf16.msra.mxu0 0
        %1287 = vmatprep.subr.bf16.mxu0 0
        %1288 = vmatpush1.bf16.msra.mxu0 0
        %1289 = vmatprep.subr.bf16.mxu0 0
        %1290 = vmatpush1.bf16.msra.mxu0 0
        %1291 = vmatprep.subr.bf16.mxu0 0
        %1292 = vmatpush1.bf16.msra.mxu0 0
        %1293 = vmatprep.subr.bf16.mxu0 0
        %1294 = vmatpush1.bf16.msra.mxu0 0
        %1295 = vmatprep.subr.bf16.mxu0 0
        %1296 = vmatpush1.bf16.msra.mxu0 0
        %1297 = vmatprep.subr.bf16.mxu0 0
        %1298 = vmatpush1.bf16.msra.mxu0 0
        %1299 = vmatprep.subr.bf16.mxu0 0
        %1300 = vmatpush1.bf16.msra.mxu0 0
        %1301 = vmatprep.mubr.bf16.mxu0 0
        %1302 = vmatmul.mubr.bf16.gmra.mrb[0].mxu0 %v1190
        %v1303 = vpop.f32.mrb[0].mxu0
        %v1304 = vadd.f32 %v1219, %v1303
        %v1305 = vpop.f32.mrb[0].mxu0
        %v1306 = vpop.f32.mrb[0].mxu0
        %v1307 = vadd.f32 %v1219, %v1306
        %v1308 = vpop.f32.mrb[0].mxu0
        %1309 = vmatprep.mubr.bf16.mxu0 0
        %1310 = vmatmul.mubr.bf16.gmra.mrb[0].mxu0 %v1196
        %v1311 = vpop.f32.mrb[0].mxu0
        %v1312 = vadd.f32 %v1219, %v1311
        %v1313 = vpop.f32.mrb[0].mxu0
        %v1314 = vpop.f32.mrb[0].mxu0
        %v1315 = vadd.f32 %v1219, %v1314
        %v1316 = vpop.f32.mrb[0].mxu0
        %1317 = vdwg.mxu0
        %vm1318 = vcmp.ge.f32.partialorder %v1304, 0.0
        %vm1319 = vcmp.ge.f32.partialorder %v1307, 0.0
        %v1320 = vmul.f32 %v1304, 0.01
        %v1321 = vmul.f32 %v1307, 0.01
        %v1322 = vsel %vm1318, %v1304, %v1320
        %v1323 = vsel %vm1319, %v1307, %v1321
        %vm1324 = vcmp.ge.f32.partialorder %v1312, 0.0
        %vm1325 = vcmp.ge.f32.partialorder %v1315, 0.0
        %v1326 = vmul.f32 %v1312, 0.01
        %v1327 = vmul.f32 %v1315, 0.01
        %v1328 = vsel %vm1324, %v1312, %v1326
        %v1329 = vsel %vm1325, %v1315, %v1327
        %vm1330 = vcmp.ge.f32.partialorder %v1088, 0.0
        %vm1331 = vcmp.ge.f32.partialorder %v1092, 0.0
        %vm1332 = vcmp.ge.f32.partialorder %v1098, 0.0
        %vm1333 = vcmp.ge.f32.partialorder %v1102, 0.0
        %vm1334 = vcmp.ge.f32.partialorder %v1108, 0.0
        %vm1335 = vcmp.ge.f32.partialorder %v1112, 0.0
        %vm1336 = vcmp.ge.f32.partialorder %v1118, 0.0
        %vm1337 = vcmp.ge.f32.partialorder %v1122, 0.0
        %vm1338 = vcmp.ge.f32.partialorder %v1128, 0.0
        %vm1339 = vcmp.ge.f32.partialorder %v1132, 0.0
        %vm1340 = vcmp.ge.f32.partialorder %v1138, 0.0
        %vm1341 = vcmp.ge.f32.partialorder %v1142, 0.0
        %vm1342 = vcmp.ge.f32.partialorder %v1148, 0.0
        %vm1343 = vcmp.ge.f32.partialorder %v1152, 0.0
        %vm1344 = vcmp.ge.f32.partialorder %v1158, 0.0
        %vm1345 = vcmp.ge.f32.partialorder %v1162, 0.0
        %v1346 = vmul.f32 %v1088, 0.01
        %v1347 = vmul.f32 %v1092, 0.01
        %v1348 = vmul.f32 %v1098, 0.01
        %v1349 = vmul.f32 %v1102, 0.01
        %v1350 = vmul.f32 %v1108, 0.01
        %v1351 = vmul.f32 %v1112, 0.01
        %v1352 = vmul.f32 %v1118, 0.01
        %v1353 = vmul.f32 %v1122, 0.01
        %v1354 = vmul.f32 %v1128, 0.01
        %v1355 = vmul.f32 %v1132, 0.01
        %v1356 = vmul.f32 %v1138, 0.01
        %v1357 = vmul.f32 %v1142, 0.01
        %v1358 = vmul.f32 %v1148, 0.01
        %v1359 = vmul.f32 %v1152, 0.01
        %v1360 = vmul.f32 %v1158, 0.01
        %v1361 = vmul.f32 %v1162, 0.01
        %v1362 = vsel %vm1330, %v1088, %v1346
        %v1363 = vsel %vm1331, %v1092, %v1347
        %v1364 = vsel %vm1332, %v1098, %v1348
        %v1365 = vsel %vm1333, %v1102, %v1349
        %v1366 = vsel %vm1334, %v1108, %v1350
        %v1367 = vsel %vm1335, %v1112, %v1351
        %v1368 = vsel %vm1336, %v1118, %v1352
        %v1369 = vsel %vm1337, %v1122, %v1353
        %v1370 = vsel %vm1338, %v1128, %v1354
        %v1371 = vsel %vm1339, %v1132, %v1355
        %v1372 = vsel %vm1340, %v1138, %v1356
        %v1373 = vsel %vm1341, %v1142, %v1357
        %v1374 = vsel %vm1342, %v1148, %v1358
        %v1375 = vsel %vm1343, %v1152, %v1359
        %v1376 = vsel %vm1344, %v1158, %v1360
        %v1377 = vsel %vm1345, %v1162, %v1361
        %v1378 = vld [vmem:[%s731] sm:$0x1]
        %v1379 = vld [vmem:[%s731 + $0x1] sm:$0x1]
        %v1380 = vld [vmem:[%s731 + $0x2] sm:$0x1]
        %v1381 = vld [vmem:[%s731 + $0x3] sm:$0x1]
        %v1382 = vld [vmem:[%s731 + $0x4] sm:$0x1]
        %v1383 = vld [vmem:[%s731 + $0x5] sm:$0x1]
        %v1384 = vld [vmem:[%s731 + $0x6] sm:$0x1]
        %v1385 = vld [vmem:[%s731 + $0x7] sm:$0x1]
        %v1386 = vld [vmem:[%s731 + $0x8] sm:$0x1]
        %v1387 = vld [vmem:[%s731 + $0x9] sm:$0x1]
        %vm1388 = vcmp.gt.f32.partialorder %v1378, 0.5
        %vm1389 = vcmp.gt.f32.partialorder %v1379, 0.5
        %vm1390 = vcmp.gt.f32.partialorder %v1380, 0.5
        %vm1391 = vcmp.gt.f32.partialorder %v1381, 0.5
        %vm1392 = vcmp.gt.f32.partialorder %v1382, 0.5
        %vm1393 = vcmp.gt.f32.partialorder %v1383, 0.5
        %vm1394 = vcmp.gt.f32.partialorder %v1384, 0.5
        %vm1395 = vcmp.gt.f32.partialorder %v1385, 0.5
        %vm1396 = vcmp.gt.f32.partialorder %v1386, 0.5
        %vm1397 = vcmp.gt.f32.partialorder %v1387, 0.5
        %v1398 = vsel %vm1388, 1, 0
        %v1399 = vsel %vm1389, 1, 0
        %v1400 = vsel %vm1390, 1, 0
        %v1401 = vsel %vm1391, 1, 0
        %v1402 = vsel %vm1392, 1, 0
        %v1403 = vsel %vm1393, 1, 0
        %v1404 = vsel %vm1394, 1, 0
        %v1405 = vsel %vm1395, 1, 0
        %v1406 = vsel %vm1396, 1, 0
        %v1407 = vsel %vm1397, 1, 0
        %v1408 = vlaneseq
        %v1409 = vshrl.u32 %v1408, 7
        %v1410 = vsub.s32 0, %v1409
        %v1411 = vrot.slane %v1398, %v1410
        %v1412 = vlaneseq
        %v1413 = vshrl.u32 %v1412, 7
        %v1414 = vsub.s32 0, %v1413
        %v1415 = vrot.slane %v1399, %v1414
        %v1416 = vlaneseq
        %v1417 = vshrl.u32 %v1416, 7
        %v1418 = vsub.s32 0, %v1417
        %v1419 = vrot.slane %v1400, %v1418
        %v1420 = vlaneseq
        %v1421 = vshrl.u32 %v1420, 7
        %v1422 = vsub.s32 0, %v1421
        %v1423 = vrot.slane %v1401, %v1422
        %v1424 = vlaneseq
        %v1425 = vshrl.u32 %v1424, 7
        %v1426 = vsub.s32 0, %v1425
        %v1427 = vrot.slane %v1402, %v1426
        %v1428 = vlaneseq
        %v1429 = vshrl.u32 %v1428, 7
        %v1430 = vsub.s32 0, %v1429
        %v1431 = vrot.slane %v1403, %v1430
        %v1432 = vlaneseq
        %v1433 = vshrl.u32 %v1432, 7
        %v1434 = vsub.s32 0, %v1433
        %v1435 = vrot.slane %v1404, %v1434
        %v1436 = vlaneseq
        %v1437 = vshrl.u32 %v1436, 7
        %v1438 = vsub.s32 0, %v1437
        %v1439 = vrot.slane %v1405, %v1438
        %v1440 = vlaneseq
        %v1441 = vshrl.u32 %v1440, 7
        %v1442 = vsub.s32 0, %v1441
        %v1443 = vrot.slane %v1406, %v1442
        %v1444 = vlaneseq
        %v1445 = vshrl.u32 %v1444, 7
        %v1446 = vsub.s32 0, %v1445
        %v1447 = vrot.slane %v1407, %v1446
        %vm1448 = vcmp.eq.s32.totalorder %v1411, 1
        %vm1449 = vcmp.eq.s32.totalorder %v1415, 1
        %vm1450 = vcmp.eq.s32.totalorder %v1419, 1
        %vm1451 = vcmp.eq.s32.totalorder %v1423, 1
        %vm1452 = vcmp.eq.s32.totalorder %v1427, 1
        %vm1453 = vcmp.eq.s32.totalorder %v1431, 1
        %vm1454 = vcmp.eq.s32.totalorder %v1435, 1
        %vm1455 = vcmp.eq.s32.totalorder %v1439, 1
        %vm1456 = vcmp.eq.s32.totalorder %v1443, 1
        %vm1457 = vcmp.eq.s32.totalorder %v1447, 1
        %v1458 = vsel %vm1448, %v1322, 0.0
        %v1459 = vsel %vm1448, %v1323, 0.0
        %v1460 = vsel %vm1449, %v1362, 0.0
        %v1461 = vsel %vm1449, %v1363, 0.0
        %v1462 = vsel %vm1450, %v1364, 0.0
        %v1463 = vsel %vm1450, %v1365, 0.0
        %v1464 = vsel %vm1451, %v1366, 0.0
        %v1465 = vsel %vm1451, %v1367, 0.0
        %v1466 = vsel %vm1452, %v1368, 0.0
        %v1467 = vsel %vm1452, %v1369, 0.0
        %v1468 = vsel %vm1453, %v1370, 0.0
        %v1469 = vsel %vm1453, %v1371, 0.0
        %v1470 = vsel %vm1454, %v1372, 0.0
        %v1471 = vsel %vm1454, %v1373, 0.0
        %v1472 = vsel %vm1455, %v1374, 0.0
        %v1473 = vsel %vm1455, %v1375, 0.0
        %v1474 = vsel %vm1456, %v1376, 0.0
        %v1475 = vsel %vm1456, %v1377, 0.0
        %v1476 = vsel %vm1457, %v1328, 0.0
        %v1477 = vsel %vm1457, %v1329, 0.0
        %vm1498 = vcmask 1040384
        %v1499 = vrot.slane %v1458, 7
        %v1500 = vrot.slane %v1459, 7
        %v1501 = vsel %vm1498, %v1499, %v1500
        %v1502 = vrot.slane %v1460, 7
        %v1503 = vrot.slane %v1461, 7
        %v1504 = vsel %vm1498, %v1502, %v1503
        %v1505 = vrot.slane %v1462, 7
        %v1506 = vrot.slane %v1463, 7
        %v1507 = vsel %vm1498, %v1505, %v1506
        %v1508 = vrot.slane %v1464, 7
        %v1509 = vrot.slane %v1465, 7
        %v1510 = vsel %vm1498, %v1508, %v1509
        %v1511 = vrot.slane %v1466, 7
        %v1512 = vrot.slane %v1467, 7
        %v1513 = vsel %vm1498, %v1511, %v1512
        %v1514 = vrot.slane %v1468, 7
        %v1515 = vrot.slane %v1469, 7
        %v1516 = vsel %vm1498, %v1514, %v1515
        %v1517 = vrot.slane %v1470, 7
        %v1518 = vrot.slane %v1471, 7
        %v1519 = vsel %vm1498, %v1517, %v1518
        %v1520 = vrot.slane %v1472, 7
        %v1521 = vrot.slane %v1473, 7
        %v1522 = vsel %vm1498, %v1520, %v1521
        %v1523 = vrot.slane %v1474, 7
        %v1524 = vrot.slane %v1475, 7
        %v1525 = vsel %vm1498, %v1523, %v1524
        %v1526 = vrot.slane %v1476, 7
        %v1527 = vrot.slane %v1477, 7
        %v1528 = vsel %vm1498, %v1526, %v1527
        %v1549 = vsel %vm1498, 0.0, %v1499
        %v1550 = vsel %vm1498, 0.0, %v1502
        %v1551 = vsel %vm1498, 0.0, %v1505
        %v1552 = vsel %vm1498, 0.0, %v1508
        %v1553 = vsel %vm1498, 0.0, %v1511
        %v1554 = vsel %vm1498, 0.0, %v1514
        %v1555 = vsel %vm1498, 0.0, %v1517
        %v1556 = vsel %vm1498, 0.0, %v1520
        %v1557 = vsel %vm1498, 0.0, %v1523
        %v1558 = vsel %vm1498, 0.0, %v1526
        %vm1559 = vcmask 1046528
        %v1560 = vrot.slane %v1458, 1
        %v1561 = vrot.slane %v1459, 1
        %v1562 = vsel %vm1559, %v1560, %v1561
        %v1563 = vrot.slane %v1460, 1
        %v1564 = vrot.slane %v1461, 1
        %v1565 = vsel %vm1559, %v1563, %v1564
        %v1566 = vrot.slane %v1462, 1
        %v1567 = vrot.slane %v1463, 1
        %v1568 = vsel %vm1559, %v1566, %v1567
        %v1569 = vrot.slane %v1464, 1
        %v1570 = vrot.slane %v1465, 1
        %v1571 = vsel %vm1559, %v1569, %v1570
        %v1572 = vrot.slane %v1466, 1
        %v1573 = vrot.slane %v1467, 1
        %v1574 = vsel %vm1559, %v1572, %v1573
        %v1575 = vrot.slane %v1468, 1
        %v1576 = vrot.slane %v1469, 1
        %v1577 = vsel %vm1559, %v1575, %v1576
        %v1578 = vrot.slane %v1470, 1
        %v1579 = vrot.slane %v1471, 1
        %v1580 = vsel %vm1559, %v1578, %v1579
        %v1581 = vrot.slane %v1472, 1
        %v1582 = vrot.slane %v1473, 1
        %v1583 = vsel %vm1559, %v1581, %v1582
        %v1584 = vrot.slane %v1474, 1
        %v1585 = vrot.slane %v1475, 1
        %v1586 = vsel %vm1559, %v1584, %v1585
        %v1587 = vrot.slane %v1476, 1
        %v1588 = vrot.slane %v1477, 1
        %v1589 = vsel %vm1559, %v1587, %v1588
        %v1610 = vsel %vm1559, %v1561, 0.0
        %v1611 = vsel %vm1559, %v1564, 0.0
        %v1612 = vsel %vm1559, %v1567, 0.0
        %v1613 = vsel %vm1559, %v1570, 0.0
        %v1614 = vsel %vm1559, %v1573, 0.0
        %v1615 = vsel %vm1559, %v1576, 0.0
        %v1616 = vsel %vm1559, %v1579, 0.0
        %v1617 = vsel %vm1559, %v1582, 0.0
        %v1618 = vsel %vm1559, %v1585, 0.0
        %v1619 = vsel %vm1559, %v1588, 0.0
        %v1620 = vld [vmem:[#allocation16] sm:$0xff]
        %v1621 = vld [vmem:[#allocation16 + $0x8] sm:$0x1]
        %v1622 = vlaneseq
        %v1623 = vshrl.u32 %v1622, 7
        %v1624 = vsub.s32 4, %v1623
        %v1625 = vrot.slane %v1620, %v1624
        %v1626 = vmul.f32 %v1460, %v1625
        %v1627 = vmul.f32 %v1461, %v1625
        %v1628 = vmul.f32 %v1462, %v1625
        %v1629 = vmul.f32 %v1463, %v1625
        %v1630 = vmul.f32 %v1464, %v1625
        %v1631 = vmul.f32 %v1465, %v1625
        %v1632 = vmul.f32 %v1466, %v1625
        %v1633 = vmul.f32 %v1467, %v1625
        %v1634 = vmul.f32 %v1468, %v1625
        %v1635 = vmul.f32 %v1469, %v1625
        %v1636 = vmul.f32 %v1470, %v1625
        %v1637 = vmul.f32 %v1471, %v1625
        %v1638 = vmul.f32 %v1472, %v1625
        %v1639 = vmul.f32 %v1473, %v1625
        %v1640 = vmul.f32 %v1474, %v1625
        %v1641 = vmul.f32 %v1475, %v1625
        %v1642 = vld [vmem:[#allocation17] sm:$0x1]
        %v1644 = vlaneseq
        %v1645 = vshrl.u32 %v1644, 7
        %v1646 = vsub.s32 0, %v1645
        %v1647 = vrot.slane %v1642, %v1646
        %v1649 = vadd.f32 %v1626, %v1647
        %v1650 = vadd.f32 %v1627, %v1647
        %v1651 = vadd.f32 %v1628, %v1647
        %v1652 = vadd.f32 %v1629, %v1647
        %v1653 = vadd.f32 %v1630, %v1647
        %v1654 = vadd.f32 %v1631, %v1647
        %v1655 = vadd.f32 %v1632, %v1647
        %v1656 = vadd.f32 %v1633, %v1647
        %v1657 = vadd.f32 %v1634, %v1647
        %v1658 = vadd.f32 %v1635, %v1647
        %v1659 = vadd.f32 %v1636, %v1647
        %v1660 = vadd.f32 %v1637, %v1647
        %v1661 = vadd.f32 %v1638, %v1647
        %v1662 = vadd.f32 %v1639, %v1647
        %v1663 = vadd.f32 %v1640, %v1647
        %v1664 = vadd.f32 %v1641, %v1647
        %v1665 = vlaneseq
        %v1666 = vshrl.u32 %v1665, 7
        %v1667 = vsub.s32 0, %v1666
        %v1668 = vrot.slane %v1620, %v1667
        %v1669 = vmul.f32 %v1549, %v1668
        %v1670 = vmul.f32 %v1501, %v1668
        %v1671 = vmul.f32 %v1550, %v1668
        %v1672 = vmul.f32 %v1504, %v1668
        %v1673 = vmul.f32 %v1551, %v1668
        %v1674 = vmul.f32 %v1507, %v1668
        %v1675 = vmul.f32 %v1552, %v1668
        %v1676 = vmul.f32 %v1510, %v1668
        %v1677 = vmul.f32 %v1553, %v1668
        %v1678 = vmul.f32 %v1513, %v1668
        %v1679 = vmul.f32 %v1554, %v1668
        %v1680 = vmul.f32 %v1516, %v1668
        %v1681 = vmul.f32 %v1555, %v1668
        %v1682 = vmul.f32 %v1519, %v1668
        %v1683 = vmul.f32 %v1556, %v1668
        %v1684 = vmul.f32 %v1522, %v1668
        %v1685 = vadd.f32 %v1649, %v1669
        %v1686 = vadd.f32 %v1650, %v1670
        %v1687 = vadd.f32 %v1651, %v1671
        %v1688 = vadd.f32 %v1652, %v1672
        %v1689 = vadd.f32 %v1653, %v1673
        %v1690 = vadd.f32 %v1654, %v1674
        %v1691 = vadd.f32 %v1655, %v1675
        %v1692 = vadd.f32 %v1656, %v1676
        %v1693 = vadd.f32 %v1657, %v1677
        %v1694 = vadd.f32 %v1658, %v1678
        %v1695 = vadd.f32 %v1659, %v1679
        %v1696 = vadd.f32 %v1660, %v1680
        %v1697 = vadd.f32 %v1661, %v1681
        %v1698 = vadd.f32 %v1662, %v1682
        %v1699 = vadd.f32 %v1663, %v1683
        %v1700 = vadd.f32 %v1664, %v1684
        %v1701 = vlaneseq
        %v1702 = vshrl.u32 %v1701, 7
        %v1703 = vsub.s32 1, %v1702
        %v1704 = vrot.slane %v1620, %v1703
        %v1705 = vmul.f32 %v1458, %v1704
        %v1706 = vmul.f32 %v1459, %v1704
        %v1707 = vmul.f32 %v1460, %v1704
        %v1708 = vmul.f32 %v1461, %v1704
        %v1709 = vmul.f32 %v1462, %v1704
        %v1710 = vmul.f32 %v1463, %v1704
        %v1711 = vmul.f32 %v1464, %v1704
        %v1712 = vmul.f32 %v1465, %v1704
        %v1713 = vmul.f32 %v1466, %v1704
        %v1714 = vmul.f32 %v1467, %v1704
        %v1715 = vmul.f32 %v1468, %v1704
        %v1716 = vmul.f32 %v1469, %v1704
        %v1717 = vmul.f32 %v1470, %v1704
        %v1718 = vmul.f32 %v1471, %v1704
        %v1719 = vmul.f32 %v1472, %v1704
        %v1720 = vmul.f32 %v1473, %v1704
        %v1721 = vadd.f32 %v1685, %v1705
        %v1722 = vadd.f32 %v1686, %v1706
        %v1723 = vadd.f32 %v1687, %v1707
        %v1724 = vadd.f32 %v1688, %v1708
        %v1725 = vadd.f32 %v1689, %v1709
        %v1726 = vadd.f32 %v1690, %v1710
        %v1727 = vadd.f32 %v1691, %v1711
        %v1728 = vadd.f32 %v1692, %v1712
        %v1729 = vadd.f32 %v1693, %v1713
        %v1730 = vadd.f32 %v1694, %v1714
        %v1731 = vadd.f32 %v1695, %v1715
        %v1732 = vadd.f32 %v1696, %v1716
        %v1733 = vadd.f32 %v1697, %v1717
        %v1734 = vadd.f32 %v1698, %v1718
        %v1735 = vadd.f32 %v1699, %v1719
        %v1736 = vadd.f32 %v1700, %v1720
        %v1737 = vlaneseq
        %v1738 = vshrl.u32 %v1737, 7
        %v1739 = vsub.s32 2, %v1738
        %v1740 = vrot.slane %v1620, %v1739
        %v1741 = vmul.f32 %v1562, %v1740
        %v1742 = vmul.f32 %v1610, %v1740
        %v1743 = vmul.f32 %v1565, %v1740
        %v1744 = vmul.f32 %v1611, %v1740
        %v1745 = vmul.f32 %v1568, %v1740
        %v1746 = vmul.f32 %v1612, %v1740
        %v1747 = vmul.f32 %v1571, %v1740
        %v1748 = vmul.f32 %v1613, %v1740
        %v1749 = vmul.f32 %v1574, %v1740
        %v1750 = vmul.f32 %v1614, %v1740
        %v1751 = vmul.f32 %v1577, %v1740
        %v1752 = vmul.f32 %v1615, %v1740
        %v1753 = vmul.f32 %v1580, %v1740
        %v1754 = vmul.f32 %v1616, %v1740
        %v1755 = vmul.f32 %v1583, %v1740
        %v1756 = vmul.f32 %v1617, %v1740
        %v1757 = vadd.f32 %v1721, %v1741
        %v1758 = vadd.f32 %v1722, %v1742
        %v1759 = vadd.f32 %v1723, %v1743
        %v1760 = vadd.f32 %v1724, %v1744
        %v1761 = vadd.f32 %v1725, %v1745
        %v1762 = vadd.f32 %v1726, %v1746
        %v1763 = vadd.f32 %v1727, %v1747
        %v1764 = vadd.f32 %v1728, %v1748
        %v1765 = vadd.f32 %v1729, %v1749
        %v1766 = vadd.f32 %v1730, %v1750
        %v1767 = vadd.f32 %v1731, %v1751
        %v1768 = vadd.f32 %v1732, %v1752
        %v1769 = vadd.f32 %v1733, %v1753
        %v1770 = vadd.f32 %v1734, %v1754
        %v1771 = vadd.f32 %v1735, %v1755
        %v1772 = vadd.f32 %v1736, %v1756
        %v1773 = vlaneseq
        %v1774 = vshrl.u32 %v1773, 7
        %v1775 = vsub.s32 3, %v1774
        %v1776 = vrot.slane %v1620, %v1775
        %v1777 = vmul.f32 %v1550, %v1776
        %v1778 = vmul.f32 %v1504, %v1776
        %v1779 = vmul.f32 %v1551, %v1776
        %v1780 = vmul.f32 %v1507, %v1776
        %v1781 = vmul.f32 %v1552, %v1776
        %v1782 = vmul.f32 %v1510, %v1776
        %v1783 = vmul.f32 %v1553, %v1776
        %v1784 = vmul.f32 %v1513, %v1776
        %v1785 = vmul.f32 %v1554, %v1776
        %v1786 = vmul.f32 %v1516, %v1776
        %v1787 = vmul.f32 %v1555, %v1776
        %v1788 = vmul.f32 %v1519, %v1776
        %v1789 = vmul.f32 %v1556, %v1776
        %v1790 = vmul.f32 %v1522, %v1776
        %v1791 = vmul.f32 %v1557, %v1776
        %v1792 = vmul.f32 %v1525, %v1776
        %v1793 = vadd.f32 %v1757, %v1777
        %v1794 = vadd.f32 %v1758, %v1778
        %v1795 = vadd.f32 %v1759, %v1779
        %v1796 = vadd.f32 %v1760, %v1780
        %v1797 = vadd.f32 %v1761, %v1781
        %v1798 = vadd.f32 %v1762, %v1782
        %v1799 = vadd.f32 %v1763, %v1783
        %v1800 = vadd.f32 %v1764, %v1784
        %v1801 = vadd.f32 %v1765, %v1785
        %v1802 = vadd.f32 %v1766, %v1786
        %v1803 = vadd.f32 %v1767, %v1787
        %v1804 = vadd.f32 %v1768, %v1788
        %v1805 = vadd.f32 %v1769, %v1789
        %v1806 = vadd.f32 %v1770, %v1790
        %v1807 = vadd.f32 %v1771, %v1791
        %v1808 = vadd.f32 %v1772, %v1792
        %v1809 = vlaneseq
        %v1810 = vshrl.u32 %v1809, 7
        %v1811 = vsub.s32 5, %v1810
        %v1812 = vrot.slane %v1620, %v1811
        %v1813 = vmul.f32 %v1565, %v1812
        %v1814 = vmul.f32 %v1611, %v1812
        %v1815 = vmul.f32 %v1568, %v1812
        %v1816 = vmul.f32 %v1612, %v1812
        %v1817 = vmul.f32 %v1571, %v1812
        %v1818 = vmul.f32 %v1613, %v1812
        %v1819 = vmul.f32 %v1574, %v1812
        %v1820 = vmul.f32 %v1614, %v1812
        %v1821 = vmul.f32 %v1577, %v1812
        %v1822 = vmul.f32 %v1615, %v1812
        %v1823 = vmul.f32 %v1580, %v1812
        %v1824 = vmul.f32 %v1616, %v1812
        %v1825 = vmul.f32 %v1583, %v1812
        %v1826 = vmul.f32 %v1617, %v1812
        %v1827 = vmul.f32 %v1586, %v1812
        %v1828 = vmul.f32 %v1618, %v1812
        %v1829 = vadd.f32 %v1793, %v1813
        %v1830 = vadd.f32 %v1794, %v1814
        %v1831 = vadd.f32 %v1795, %v1815
        %v1832 = vadd.f32 %v1796, %v1816
        %v1833 = vadd.f32 %v1797, %v1817
        %v1834 = vadd.f32 %v1798, %v1818
        %v1835 = vadd.f32 %v1799, %v1819
        %v1836 = vadd.f32 %v1800, %v1820
        %v1837 = vadd.f32 %v1801, %v1821
        %v1838 = vadd.f32 %v1802, %v1822
        %v1839 = vadd.f32 %v1803, %v1823
        %v1840 = vadd.f32 %v1804, %v1824
        %v1841 = vadd.f32 %v1805, %v1825
        %v1842 = vadd.f32 %v1806, %v1826
        %v1843 = vadd.f32 %v1807, %v1827
        %v1844 = vadd.f32 %v1808, %v1828
        %v1845 = vlaneseq
        %v1846 = vshrl.u32 %v1845, 7
        %v1847 = vsub.s32 6, %v1846
        %v1848 = vrot.slane %v1620, %v1847
        %v1849 = vmul.f32 %v1551, %v1848
        %v1850 = vmul.f32 %v1507, %v1848
        %v1851 = vmul.f32 %v1552, %v1848
        %v1852 = vmul.f32 %v1510, %v1848
        %v1853 = vmul.f32 %v1553, %v1848
        %v1854 = vmul.f32 %v1513, %v1848
        %v1855 = vmul.f32 %v1554, %v1848
        %v1856 = vmul.f32 %v1516, %v1848
        %v1857 = vmul.f32 %v1555, %v1848
        %v1858 = vmul.f32 %v1519, %v1848
        %v1859 = vmul.f32 %v1556, %v1848
        %v1860 = vmul.f32 %v1522, %v1848
        %v1861 = vmul.f32 %v1557, %v1848
        %v1862 = vmul.f32 %v1525, %v1848
        %v1863 = vmul.f32 %v1558, %v1848
        %v1864 = vmul.f32 %v1528, %v1848
        %v1865 = vadd.f32 %v1829, %v1849
        %v1866 = vadd.f32 %v1830, %v1850
        %v1867 = vadd.f32 %v1831, %v1851
        %v1868 = vadd.f32 %v1832, %v1852
        %v1869 = vadd.f32 %v1833, %v1853
        %v1870 = vadd.f32 %v1834, %v1854
        %v1871 = vadd.f32 %v1835, %v1855
        %v1872 = vadd.f32 %v1836, %v1856
        %v1873 = vadd.f32 %v1837, %v1857
        %v1874 = vadd.f32 %v1838, %v1858
        %v1875 = vadd.f32 %v1839, %v1859
        %v1876 = vadd.f32 %v1840, %v1860
        %v1877 = vadd.f32 %v1841, %v1861
        %v1878 = vadd.f32 %v1842, %v1862
        %v1879 = vadd.f32 %v1843, %v1863
        %v1880 = vadd.f32 %v1844, %v1864
        %v1881 = vlaneseq
        %v1882 = vshrl.u32 %v1881, 7
        %v1883 = vsub.s32 7, %v1882
        %v1884 = vrot.slane %v1620, %v1883
        %v1885 = vmul.f32 %v1462, %v1884
        %v1886 = vmul.f32 %v1463, %v1884
        %v1887 = vmul.f32 %v1464, %v1884
        %v1888 = vmul.f32 %v1465, %v1884
        %v1889 = vmul.f32 %v1466, %v1884
        %v1890 = vmul.f32 %v1467, %v1884
        %v1891 = vmul.f32 %v1468, %v1884
        %v1892 = vmul.f32 %v1469, %v1884
        %v1893 = vmul.f32 %v1470, %v1884
        %v1894 = vmul.f32 %v1471, %v1884
        %v1895 = vmul.f32 %v1472, %v1884
        %v1896 = vmul.f32 %v1473, %v1884
        %v1897 = vmul.f32 %v1474, %v1884
        %v1898 = vmul.f32 %v1475, %v1884
        %v1899 = vmul.f32 %v1476, %v1884
        %v1900 = vmul.f32 %v1477, %v1884
        %v1901 = vadd.f32 %v1865, %v1885
        %v1902 = vadd.f32 %v1866, %v1886
        %v1903 = vadd.f32 %v1867, %v1887
        %v1904 = vadd.f32 %v1868, %v1888
        %v1905 = vadd.f32 %v1869, %v1889
        %v1906 = vadd.f32 %v1870, %v1890
        %v1907 = vadd.f32 %v1871, %v1891
        %v1908 = vadd.f32 %v1872, %v1892
        %v1909 = vadd.f32 %v1873, %v1893
        %v1910 = vadd.f32 %v1874, %v1894
        %v1911 = vadd.f32 %v1875, %v1895
        %v1912 = vadd.f32 %v1876, %v1896
        %v1913 = vadd.f32 %v1877, %v1897
        %v1914 = vadd.f32 %v1878, %v1898
        %v1915 = vadd.f32 %v1879, %v1899
        %v1916 = vadd.f32 %v1880, %v1900
        %v1917 = vlaneseq
        %v1918 = vshrl.u32 %v1917, 7
        %v1919 = vsub.s32 0, %v1918
        %v1920 = vrot.slane %v1621, %v1919
        %v1921 = vmul.f32 %v1568, %v1920
        %v1922 = vmul.f32 %v1612, %v1920
        %v1923 = vmul.f32 %v1571, %v1920
        %v1924 = vmul.f32 %v1613, %v1920
        %v1925 = vmul.f32 %v1574, %v1920
        %v1926 = vmul.f32 %v1614, %v1920
        %v1927 = vmul.f32 %v1577, %v1920
        %v1928 = vmul.f32 %v1615, %v1920
        %v1929 = vmul.f32 %v1580, %v1920
        %v1930 = vmul.f32 %v1616, %v1920
        %v1931 = vmul.f32 %v1583, %v1920
        %v1932 = vmul.f32 %v1617, %v1920
        %v1933 = vmul.f32 %v1586, %v1920
        %v1934 = vmul.f32 %v1618, %v1920
        %v1935 = vmul.f32 %v1589, %v1920
        %v1936 = vmul.f32 %v1619, %v1920
        %v1937 = vadd.f32 %v1901, %v1921
        %v1938 = vadd.f32 %v1902, %v1922
        %v1939 = vadd.f32 %v1903, %v1923
        %v1940 = vadd.f32 %v1904, %v1924
        %v1941 = vadd.f32 %v1905, %v1925
        %v1942 = vadd.f32 %v1906, %v1926
        %v1943 = vadd.f32 %v1907, %v1927
        %v1944 = vadd.f32 %v1908, %v1928
        %v1945 = vadd.f32 %v1909, %v1929
        %v1946 = vadd.f32 %v1910, %v1930
        %v1947 = vadd.f32 %v1911, %v1931
        %v1948 = vadd.f32 %v1912, %v1932
        %v1949 = vadd.f32 %v1913, %v1933
        %v1950 = vadd.f32 %v1914, %v1934
        %v1951 = vadd.f32 %v1915, %v1935
        %v1952 = vadd.f32 %v1916, %v1936
        %v1953 = vmul.f32 %v1937, %v1090
        %v1954 = vmul.f32 %v1938, %v1094
        %v1955 = vmul.f32 %v1939, %v1100
        %v1956 = vmul.f32 %v1940, %v1104
        %v1957 = vmul.f32 %v1941, %v1110
        %v1958 = vmul.f32 %v1942, %v1114
        %v1959 = vmul.f32 %v1943, %v1120
        %v1960 = vmul.f32 %v1944, %v1124
        %v1961 = vmul.f32 %v1945, %v1130
        %v1962 = vmul.f32 %v1946, %v1134
        %v1963 = vmul.f32 %v1947, %v1140
        %v1964 = vmul.f32 %v1948, %v1144
        %v1965 = vmul.f32 %v1949, %v1150
        %v1966 = vmul.f32 %v1950, %v1154
        %v1967 = vmul.f32 %v1951, %v1160
        %v1968 = vmul.f32 %v1952, %v1164
        %v1969 = vpack.c.bf16 %v1954, %v1953
        %v1970 = vpack.c.bf16 %v1956, %v1955
        %v1971 = vpack.c.bf16 %v1958, %v1957
        %v1972 = vpack.c.bf16 %v1960, %v1959
        %v1973 = vpack.c.bf16 %v1962, %v1961
        %v1974 = vpack.c.bf16 %v1964, %v1963
        %v1975 = vpack.c.bf16 %v1966, %v1965
        %v1976 = vpack.c.bf16 %v1968, %v1967
        %v1977 = vld [vmem:[#allocation20] sm:$0x1]
        %v1979 = vlaneseq
        %v1980 = vshrl.u32 %v1979, 7
        %v1981 = vsub.s32 0, %v1980
        %v1982 = vrot.slane %v1977, %v1981
        %v1984 = vadd.f32 %v1166, %v1982
        %v1985 = vadd.f32 %v1167, %v1982
        %v1986 = vadd.f32 %v1168, %v1982
        %v1987 = vadd.f32 %v1169, %v1982
        %v1988 = vadd.f32 %v1170, %v1982
        %v1989 = vadd.f32 %v1171, %v1982
        %v1990 = vadd.f32 %v1172, %v1982
        %v1991 = vadd.f32 %v1173, %v1982
        %v1992 = vadd.f32 %v1174, %v1982
        %v1993 = vadd.f32 %v1175, %v1982
        %v1994 = vadd.f32 %v1176, %v1982
        %v1995 = vadd.f32 %v1177, %v1982
        %v1996 = vadd.f32 %v1178, %v1982
        %v1997 = vadd.f32 %v1179, %v1982
        %v1998 = vadd.f32 %v1180, %v1982
        %v1999 = vadd.f32 %v1181, %v1982
        %v2000 = vld [vmem:[#allocation19] sm:$0xf]
        %v2001 = vld [vmem:[#allocation19 + $0x4] sm:$0xf]
        %v2002 = vld [vmem:[#allocation19 + $0x8] sm:$0xf]
        %v2003 = vld [vmem:[#allocation19 + $0xc] sm:$0xf]
        %v2004 = vld [vmem:[#allocation19 + $0x10] sm:$0xf]
        %v2005 = vld [vmem:[#allocation19 + $0x14] sm:$0xf]
        %v2006 = vld [vmem:[#allocation19 + $0x18] sm:$0xf]
        %v2007 = vld [vmem:[#allocation19 + $0x1c] sm:$0xf]
        %v2008 = vld [vmem:[#allocation19 + $0x20] sm:$0xf]
        %v2009 = vld [vmem:[#allocation19 + $0x24] sm:$0xf]
        %v2010 = vld [vmem:[#allocation19 + $0x28] sm:$0xf]
        %v2011 = vld [vmem:[#allocation19 + $0x2c] sm:$0xf]
        %v2012 = vld [vmem:[#allocation19 + $0x30] sm:$0xf]
        %v2013 = vld [vmem:[#allocation19 + $0x34] sm:$0xf]
        %v2014 = vld [vmem:[#allocation19 + $0x38] sm:$0xf]
        %v2015 = vld [vmem:[#allocation19 + $0x3c] sm:$0xf]
        %v2032 = vunpack.c.l.b16 %v2000
        %v2033 = vunpack.c.l.b16 %v2001
        %v2034 = vunpack.c.l.b16 %v2002
        %v2035 = vunpack.c.l.b16 %v2003
        %v2036 = vunpack.c.l.b16 %v2004
        %v2037 = vunpack.c.l.b16 %v2005
        %v2038 = vunpack.c.l.b16 %v2006
        %v2039 = vunpack.c.l.b16 %v2007
        %v2040 = vunpack.c.l.b16 %v2008
        %v2041 = vunpack.c.l.b16 %v2009
        %v2042 = vunpack.c.l.b16 %v2010
        %v2043 = vunpack.c.l.b16 %v2011
        %v2044 = vunpack.c.l.b16 %v2012
        %v2045 = vunpack.c.l.b16 %v2013
        %v2046 = vunpack.c.l.b16 %v2014
        %v2047 = vunpack.c.l.b16 %v2015
        %v2048 = vpack.c.b16 %v2033, %v2032
        %v2049 = vpack.c.b16 %v2035, %v2034
        %v2050 = vpack.c.b16 %v2037, %v2036
        %v2051 = vpack.c.b16 %v2039, %v2038
        %v2052 = vpack.c.b16 %v2041, %v2040
        %v2053 = vpack.c.b16 %v2043, %v2042
        %v2054 = vpack.c.b16 %v2045, %v2044
        %v2055 = vpack.c.b16 %v2047, %v2046
        %2064 = vmatprep.subr.bf16.mxu0 0
        %2065 = vmatpush1.bf16.msra.mxu0 %v2048
        %2066 = vmatprep.subr.bf16.mxu0 0
        %2067 = vmatpush1.bf16.msra.mxu0 %v2049
        %2068 = vmatprep.subr.bf16.mxu0 0
        %2069 = vmatpush1.bf16.msra.mxu0 %v2050
        %2070 = vmatprep.subr.bf16.mxu0 0
        %2071 = vmatpush1.bf16.msra.mxu0 %v2051
        %2072 = vmatprep.subr.bf16.mxu0 0
        %2073 = vmatpush1.bf16.msra.mxu0 %v2052
        %2074 = vmatprep.subr.bf16.mxu0 0
        %2075 = vmatpush1.bf16.msra.mxu0 %v2053
        %2076 = vmatprep.subr.bf16.mxu0 0
        %2077 = vmatpush1.bf16.msra.mxu0 %v2054
        %2078 = vmatprep.subr.bf16.mxu0 0
        %2079 = vmatpush1.bf16.msra.mxu0 %v2055
        %2080 = vmatprep.subr.bf16.mxu0 0
        %2081 = vmatpush1.bf16.msra.mxu0 0
        %2082 = vmatprep.subr.bf16.mxu0 0
        %2083 = vmatpush1.bf16.msra.mxu0 0
        %2084 = vmatprep.subr.bf16.mxu0 0
        %2085 = vmatpush1.bf16.msra.mxu0 0
        %2086 = vmatprep.subr.bf16.mxu0 0
        %2087 = vmatpush1.bf16.msra.mxu0 0
        %2088 = vmatprep.subr.bf16.mxu0 0
        %2089 = vmatpush1.bf16.msra.mxu0 0
        %2090 = vmatprep.subr.bf16.mxu0 0
        %2091 = vmatpush1.bf16.msra.mxu0 0
        %2092 = vmatprep.subr.bf16.mxu0 0
        %2093 = vmatpush1.bf16.msra.mxu0 0
        %2094 = vmatprep.subr.bf16.mxu0 0
        %2095 = vmatpush1.bf16.msra.mxu0 0
        %2096 = vmatprep.mubr.bf16.mxu0 0
        %2097 = vmatmul.mubr.bf16.gmra.mrb[0].mxu0 %v1969
        %v2098 = vpop.f32.mrb[0].mxu0
        %v2099 = vadd.f32 0.0, %v2098
        %v2100 = vpop.f32.mrb[0].mxu0
        %v2101 = vpop.f32.mrb[0].mxu0
        %v2102 = vadd.f32 0.0, %v2101
        %v2103 = vpop.f32.mrb[0].mxu0
        %2104 = vmatprep.mubr.bf16.mxu0 0
        %2105 = vmatmul.mubr.bf16.gmra.mrb[0].mxu0 %v1970
        %v2106 = vpop.f32.mrb[0].mxu0
        %v2107 = vadd.f32 0.0, %v2106
        %v2108 = vpop.f32.mrb[0].mxu0
        %v2109 = vpop.f32.mrb[0].mxu0
        %v2110 = vadd.f32 0.0, %v2109
        %v2111 = vpop.f32.mrb[0].mxu0
        %2112 = vmatprep.mubr.bf16.mxu0 0
        %2113 = vmatmul.mubr.bf16.gmra.mrb[0].mxu0 %v1971
        %v2114 = vpop.f32.mrb[0].mxu0
        %v2115 = vadd.f32 0.0, %v2114
        %v2116 = vpop.f32.mrb[0].mxu0
        %v2117 = vpop.f32.mrb[0].mxu0
        %v2118 = vadd.f32 0.0, %v2117
        %v2119 = vpop.f32.mrb[0].mxu0
        %2120 = vmatprep.mubr.bf16.mxu0 0
        %2121 = vmatmul.mubr.bf16.gmra.mrb[0].mxu0 %v1972
        %v2122 = vpop.f32.mrb[0].mxu0
        %v2123 = vadd.f32 0.0, %v2122
        %v2124 = vpop.f32.mrb[0].mxu0
        %v2125 = vpop.f32.mrb[0].mxu0
        %v2126 = vadd.f32 0.0, %v2125
        %v2127 = vpop.f32.mrb[0].mxu0
        %2128 = vmatprep.mubr.bf16.mxu0 0
        %2129 = vmatmul.mubr.bf16.gmra.mrb[0].mxu0 %v1973
        %v2130 = vpop.f32.mrb[0].mxu0
        %v2131 = vadd.f32 0.0, %v2130
        %v2132 = vpop.f32.mrb[0].mxu0
        %v2133 = vpop.f32.mrb[0].mxu0
        %v2134 = vadd.f32 0.0, %v2133
        %v2135 = vpop.f32.mrb[0].mxu0
        %2136 = vmatprep.mubr.bf16.mxu0 0
        %2137 = vmatmul.mubr.bf16.gmra.mrb[0].mxu0 %v1974
        %v2138 = vpop.f32.mrb[0].mxu0
        %v2139 = vadd.f32 0.0, %v2138
        %v2140 = vpop.f32.mrb[0].mxu0
        %v2141 = vpop.f32.mrb[0].mxu0
        %v2142 = vadd.f32 0.0, %v2141
        %v2143 = vpop.f32.mrb[0].mxu0
        %2144 = vmatprep.mubr.bf16.mxu0 0
        %2145 = vmatmul.mubr.bf16.gmra.mrb[0].mxu0 %v1975
        %v2146 = vpop.f32.mrb[0].mxu0
        %v2147 = vadd.f32 0.0, %v2146
        %v2148 = vpop.f32.mrb[0].mxu0
        %v2149 = vpop.f32.mrb[0].mxu0
        %v2150 = vadd.f32 0.0, %v2149
        %v2151 = vpop.f32.mrb[0].mxu0
        %2152 = vmatprep.mubr.bf16.mxu0 0
        %2153 = vmatmul.mubr.bf16.gmra.mrb[0].mxu0 %v1976
        %v2154 = vpop.f32.mrb[0].mxu0
        %v2155 = vadd.f32 0.0, %v2154
        %v2156 = vpop.f32.mrb[0].mxu0
        %v2157 = vpop.f32.mrb[0].mxu0
        %v2158 = vadd.f32 0.0, %v2157
        %v2159 = vpop.f32.mrb[0].mxu0
        %2160 = vdwg.mxu0
        %v2161 = vadd.f32 %v1984, %v2099
        %v2162 = vadd.f32 %v1985, %v2102
        %v2163 = vadd.f32 %v1986, %v2107
        %v2164 = vadd.f32 %v1987, %v2110
        %v2165 = vadd.f32 %v1988, %v2115
        %v2166 = vadd.f32 %v1989, %v2118
        %v2167 = vadd.f32 %v1990, %v2123
        %v2168 = vadd.f32 %v1991, %v2126
        %v2169 = vadd.f32 %v1992, %v2131
        %v2170 = vadd.f32 %v1993, %v2134
        %v2171 = vadd.f32 %v1994, %v2139
        %v2172 = vadd.f32 %v1995, %v2142
        %v2173 = vadd.f32 %v1996, %v2147
        %v2174 = vadd.f32 %v1997, %v2150
        %v2175 = vadd.f32 %v1998, %v2155
        %v2176 = vadd.f32 %v1999, %v2158
        %v2177 = vpack.c.bf16 %v2162, %v2161
        %v2178 = vpack.c.bf16 %v2164, %v2163
        %v2179 = vpack.c.bf16 %v2166, %v2165
        %v2180 = vpack.c.bf16 %v2168, %v2167
        %v2181 = vpack.c.bf16 %v2170, %v2169
        %v2182 = vpack.c.bf16 %v2172, %v2171
        %v2183 = vpack.c.bf16 %v2174, %v2173
        %v2184 = vpack.c.bf16 %v2176, %v2175
        %v2185 = vld [vmem:[#allocation22] sm:$0xff]
        %v2186 = vld [vmem:[#allocation22 + $0x8] sm:$0xff]
        %v2187 = vld [vmem:[#allocation22 + $0x10] sm:$0xff]
        %v2188 = vld [vmem:[#allocation22 + $0x18] sm:$0xff]
        %v2189 = vld [vmem:[#allocation22 + $0x20] sm:$0xff]
        %v2190 = vld [vmem:[#allocation22 + $0x28] sm:$0xff]
        %v2191 = vld [vmem:[#allocation22 + $0x30] sm:$0xff]
        %v2192 = vld [vmem:[#allocation22 + $0x38] sm:$0xff]
        %v2193 = vld [vmem:[#allocation22 + $0x40] sm:$0xff]
        %v2194 = vld [vmem:[#allocation22 + $0x48] sm:$0xff]
        %v2195 = vld [vmem:[#allocation22 + $0x50] sm:$0xff]
        %v2196 = vld [vmem:[#allocation22 + $0x58] sm:$0xff]
        %v2197 = vld [vmem:[#allocation22 + $0x60] sm:$0xff]
        %v2198 = vld [vmem:[#allocation22 + $0x68] sm:$0xff]
        %v2199 = vld [vmem:[#allocation22 + $0x70] sm:$0xff]
        %v2200 = vld [vmem:[#allocation22 + $0x78] sm:$0xff]
        %v2201 = vld [vmem:[#allocation22 + $0x80] sm:$0xff]
        %v2202 = vld [vmem:[#allocation22 + $0x88] sm:$0xff]
        %v2203 = vld [vmem:[#allocation22 + $0x90] sm:$0xff]
        %v2204 = vld [vmem:[#allocation22 + $0x98] sm:$0xff]
        %v2205 = vld [vmem:[#allocation22 + $0xa0] sm:$0xff]
        %v2206 = vld [vmem:[#allocation22 + $0xa8] sm:$0xff]
        %v2207 = vld [vmem:[#allocation22 + $0xb0] sm:$0xff]
        %v2208 = vld [vmem:[#allocation22 + $0xb8] sm:$0xff]
        %v2209 = vld [vmem:[#allocation22 + $0xc0] sm:$0xff]
        %v2210 = vld [vmem:[#allocation22 + $0xc8] sm:$0xff]
        %v2211 = vld [vmem:[#allocation22 + $0xd0] sm:$0xff]
        %v2212 = vld [vmem:[#allocation22 + $0xd8] sm:$0xff]
        %v2213 = vld [vmem:[#allocation22 + $0xe0] sm:$0xff]
        %v2214 = vld [vmem:[#allocation22 + $0xe8] sm:$0xff]
        %v2215 = vld [vmem:[#allocation22 + $0xf0] sm:$0xff]
        %v2216 = vld [vmem:[#allocation22 + $0xf8] sm:$0xff]
        %v2217 = vld [vmem:[#allocation23] sm:$0xf]
        %v2219 = vlaneseq
        %v2220 = vshrl.u32 %v2219, 7
        %v2221 = vsub.s32 0, %v2220
        %v2222 = vrot.slane %v2217, %v2221
        %v2223 = vlaneseq
        %v2224 = vshrl.u32 %v2223, 7
        %v2225 = vsub.s32 1, %v2224
        %v2226 = vrot.slane %v2217, %v2225
        %v2227 = vlaneseq
        %v2228 = vshrl.u32 %v2227, 7
        %v2229 = vsub.s32 2, %v2228
        %v2230 = vrot.slane %v2217, %v2229
        %v2231 = vlaneseq
        %v2232 = vshrl.u32 %v2231, 7
        %v2233 = vsub.s32 3, %v2232
        %v2234 = vrot.slane %v2217, %v2233
        %v2271 = vunpack.c.l.b16 %v2185
        %v2272 = vunpack.c.h.b16 %v2185
        %v2273 = vunpack.c.l.b16 %v2186
        %v2274 = vunpack.c.h.b16 %v2186
        %v2275 = vunpack.c.l.b16 %v2187
        %v2276 = vunpack.c.h.b16 %v2187
        %v2277 = vunpack.c.l.b16 %v2188
        %v2278 = vunpack.c.h.b16 %v2188
        %v2279 = vunpack.c.l.b16 %v2189
        %v2280 = vunpack.c.h.b16 %v2189
        %v2281 = vunpack.c.l.b16 %v2190
        %v2282 = vunpack.c.h.b16 %v2190
        %v2283 = vunpack.c.l.b16 %v2191
        %v2284 = vunpack.c.h.b16 %v2191
        %v2285 = vunpack.c.l.b16 %v2192
        %v2286 = vunpack.c.h.b16 %v2192
        %v2287 = vunpack.c.l.b16 %v2193
        %v2288 = vunpack.c.h.b16 %v2193
        %v2289 = vunpack.c.l.b16 %v2194
        %v2290 = vunpack.c.h.b16 %v2194
        %v2291 = vunpack.c.l.b16 %v2195
        %v2292 = vunpack.c.h.b16 %v2195
        %v2293 = vunpack.c.l.b16 %v2196
        %v2294 = vunpack.c.h.b16 %v2196
        %v2295 = vunpack.c.l.b16 %v2197
        %v2296 = vunpack.c.h.b16 %v2197
        %v2297 = vunpack.c.l.b16 %v2198
        %v2298 = vunpack.c.h.b16 %v2198
        %v2299 = vunpack.c.l.b16 %v2199
        %v2300 = vunpack.c.h.b16 %v2199
        %v2301 = vunpack.c.l.b16 %v2200
        %v2302 = vunpack.c.h.b16 %v2200
        %v2303 = vunpack.c.l.b16 %v2201
        %v2304 = vunpack.c.h.b16 %v2201
        %v2305 = vunpack.c.l.b16 %v2202
        %v2306 = vunpack.c.h.b16 %v2202
        %v2307 = vunpack.c.l.b16 %v2203
        %v2308 = vunpack.c.h.b16 %v2203
        %v2309 = vunpack.c.l.b16 %v2204
        %v2310 = vunpack.c.h.b16 %v2204
        %v2311 = vunpack.c.l.b16 %v2205
        %v2312 = vunpack.c.h.b16 %v2205
        %v2313 = vunpack.c.l.b16 %v2206
        %v2314 = vunpack.c.h.b16 %v2206
        %v2315 = vunpack.c.l.b16 %v2207
        %v2316 = vunpack.c.h.b16 %v2207
        %v2317 = vunpack.c.l.b16 %v2208
        %v2318 = vunpack.c.h.b16 %v2208
        %v2319 = vunpack.c.l.b16 %v2209
        %v2320 = vunpack.c.h.b16 %v2209
        %v2321 = vunpack.c.l.b16 %v2210
        %v2322 = vunpack.c.h.b16 %v2210
        %v2323 = vunpack.c.l.b16 %v2211
        %v2324 = vunpack.c.h.b16 %v2211
        %v2325 = vunpack.c.l.b16 %v2212
        %v2326 = vunpack.c.h.b16 %v2212
        %v2327 = vunpack.c.l.b16 %v2213
        %v2328 = vunpack.c.h.b16 %v2213
        %v2329 = vunpack.c.l.b16 %v2214
        %v2330 = vunpack.c.h.b16 %v2214
        %v2331 = vunpack.c.l.b16 %v2215
        %v2332 = vunpack.c.h.b16 %v2215
        %v2333 = vunpack.c.l.b16 %v2216
        %v2334 = vunpack.c.h.b16 %v2216
        %v2335 = vpack.c.b16 %v2275, %v2271
        %v2336 = vpack.c.b16 %v2276, %v2272
        %v2337 = vpack.c.b16 %v2277, %v2273
        %v2338 = vpack.c.b16 %v2278, %v2274
        %v2339 = vpack.c.b16 %v2283, %v2279
        %v2340 = vpack.c.b16 %v2284, %v2280
        %v2341 = vpack.c.b16 %v2285, %v2281
        %v2342 = vpack.c.b16 %v2286, %v2282
        %v2343 = vpack.c.b16 %v2291, %v2287
        %v2344 = vpack.c.b16 %v2292, %v2288
        %v2345 = vpack.c.b16 %v2293, %v2289
        %v2346 = vpack.c.b16 %v2294, %v2290
        %v2347 = vpack.c.b16 %v2299, %v2295
        %v2348 = vpack.c.b16 %v2300, %v2296
        %v2349 = vpack.c.b16 %v2301, %v2297
        %v2350 = vpack.c.b16 %v2302, %v2298
        %v2351 = vpack.c.b16 %v2307, %v2303
        %v2352 = vpack.c.b16 %v2308, %v2304
        %v2353 = vpack.c.b16 %v2309, %v2305
        %v2354 = vpack.c.b16 %v2310, %v2306
        %v2355 = vpack.c.b16 %v2315, %v2311
        %v2356 = vpack.c.b16 %v2316, %v2312
        %v2357 = vpack.c.b16 %v2317, %v2313
        %v2358 = vpack.c.b16 %v2318, %v2314
        %v2359 = vpack.c.b16 %v2323, %v2319
        %v2360 = vpack.c.b16 %v2324, %v2320
        %v2361 = vpack.c.b16 %v2325, %v2321
        %v2362 = vpack.c.b16 %v2326, %v2322
        %v2363 = vpack.c.b16 %v2331, %v2327
        %v2364 = vpack.c.b16 %v2332, %v2328
        %v2365 = vpack.c.b16 %v2333, %v2329
        %v2366 = vpack.c.b16 %v2334, %v2330
        %2399 = vmatprep.subr.bf16.mxu0 %v2336
        %2400 = vmatpush1.bf16.msra.mxu0 %v2335
        %2401 = vmatprep.subr.bf16.mxu0 %v2340
        %2402 = vmatpush1.bf16.msra.mxu0 %v2339
        %2403 = vmatprep.subr.bf16.mxu0 %v2344
        %2404 = vmatpush1.bf16.msra.mxu0 %v2343
        %2405 = vmatprep.subr.bf16.mxu0 %v2348
        %2406 = vmatpush1.bf16.msra.mxu0 %v2347
        %2407 = vmatprep.subr.bf16.mxu0 %v2352
        %2408 = vmatpush1.bf16.msra.mxu0 %v2351
        %2409 = vmatprep.subr.bf16.mxu0 %v2356
        %2410 = vmatpush1.bf16.msra.mxu0 %v2355
        %2411 = vmatprep.subr.bf16.mxu0 %v2360
        %2412 = vmatpush1.bf16.msra.mxu0 %v2359
        %2413 = vmatprep.subr.bf16.mxu0 %v2364
        %2414 = vmatpush1.bf16.msra.mxu0 %v2363
        %2415 = vmatprep.subr.bf16.mxu0 0
        %2416 = vmatpush1.bf16.msra.mxu0 0
        %2417 = vmatprep.subr.bf16.mxu0 0
        %2418 = vmatpush1.bf16.msra.mxu0 0
        %2419 = vmatprep.subr.bf16.mxu0 0
        %2420 = vmatpush1.bf16.msra.mxu0 0
        %2421 = vmatprep.subr.bf16.mxu0 0
        %2422 = vmatpush1.bf16.msra.mxu0 0
        %2423 = vmatprep.subr.bf16.mxu0 0
        %2424 = vmatpush1.bf16.msra.mxu0 0
        %2425 = vmatprep.subr.bf16.mxu0 0
        %2426 = vmatpush1.bf16.msra.mxu0 0
        %2427 = vmatprep.subr.bf16.mxu0 0
        %2428 = vmatpush1.bf16.msra.mxu0 0
        %2429 = vmatprep.subr.bf16.mxu0 0
        %2430 = vmatpush1.bf16.msra.mxu0 0
        %2431 = vmatprep.mubr.bf16.mxu0 0
        %2432 = vmatmul.mubr.bf16.gmra.mrb[0].mxu0 %v2177
        %v2433 = vpop.f32.mrb[0].mxu0
        %v2434 = vadd.f32 %v2222, %v2433
        %v2435 = vpop.f32.mrb[0].mxu0
        %v2436 = vadd.f32 %v2226, %v2435
        %v2437 = vpop.f32.mrb[0].mxu0
        %v2438 = vadd.f32 %v2222, %v2437
        %v2439 = vpop.f32.mrb[0].mxu0
        %v2440 = vadd.f32 %v2226, %v2439
        %2441 = vmatprep.mubr.bf16.mxu0 0
        %2442 = vmatmul.mubr.bf16.gmra.mrb[0].mxu0 %v2178
        %v2443 = vpop.f32.mrb[0].mxu0
        %v2444 = vadd.f32 %v2222, %v2443
        %v2445 = vpop.f32.mrb[0].mxu0
        %v2446 = vadd.f32 %v2226, %v2445
        %v2447 = vpop.f32.mrb[0].mxu0
        %v2448 = vadd.f32 %v2222, %v2447
        %v2449 = vpop.f32.mrb[0].mxu0
        %v2450 = vadd.f32 %v2226, %v2449
        %2451 = vmatprep.mubr.bf16.mxu0 0
        %2452 = vmatmul.mubr.bf16.gmra.mrb[0].mxu0 %v2179
        %v2453 = vpop.f32.mrb[0].mxu0
        %v2454 = vadd.f32 %v2222, %v2453
        %v2455 = vpop.f32.mrb[0].mxu0
        %v2456 = vadd.f32 %v2226, %v2455
        %v2457 = vpop.f32.mrb[0].mxu0
        %v2458 = vadd.f32 %v2222, %v2457
        %v2459 = vpop.f32.mrb[0].mxu0
        %v2460 = vadd.f32 %v2226, %v2459
        %2461 = vmatprep.mubr.bf16.mxu0 0
        %2462 = vmatmul.mubr.bf16.gmra.mrb[0].mxu0 %v2180
        %v2463 = vpop.f32.mrb[0].mxu0
        %v2464 = vadd.f32 %v2222, %v2463
        %v2465 = vpop.f32.mrb[0].mxu0
        %v2466 = vadd.f32 %v2226, %v2465
        %v2467 = vpop.f32.mrb[0].mxu0
        %v2468 = vadd.f32 %v2222, %v2467
        %v2469 = vpop.f32.mrb[0].mxu0
        %v2470 = vadd.f32 %v2226, %v2469
        %2471 = vmatprep.mubr.bf16.mxu0 0
        %2472 = vmatmul.mubr.bf16.gmra.mrb[0].mxu0 %v2181
        %v2473 = vpop.f32.mrb[0].mxu0
        %v2474 = vadd.f32 %v2222, %v2473
        %v2475 = vpop.f32.mrb[0].mxu0
        %v2476 = vadd.f32 %v2226, %v2475
        %v2477 = vpop.f32.mrb[0].mxu0
        %v2478 = vadd.f32 %v2222, %v2477
        %v2479 = vpop.f32.mrb[0].mxu0
        %v2480 = vadd.f32 %v2226, %v2479
        %2481 = vmatprep.mubr.bf16.mxu0 0
        %2482 = vmatmul.mubr.bf16.gmra.mrb[0].mxu0 %v2182
        %v2483 = vpop.f32.mrb[0].mxu0
        %v2484 = vadd.f32 %v2222, %v2483
        %v2485 = vpop.f32.mrb[0].mxu0
        %v2486 = vadd.f32 %v2226, %v2485
        %v2487 = vpop.f32.mrb[0].mxu0
        %v2488 = vadd.f32 %v2222, %v2487
        %v2489 = vpop.f32.mrb[0].mxu0
        %v2490 = vadd.f32 %v2226, %v2489
        %2491 = vmatprep.mubr.bf16.mxu0 0
        %2492 = vmatmul.mubr.bf16.gmra.mrb[0].mxu0 %v2183
        %v2493 = vpop.f32.mrb[0].mxu0
        %v2494 = vadd.f32 %v2222, %v2493
        %v2495 = vpop.f32.mrb[0].mxu0
        %v2496 = vadd.f32 %v2226, %v2495
        %v2497 = vpop.f32.mrb[0].mxu0
        %v2498 = vadd.f32 %v2222, %v2497
        %v2499 = vpop.f32.mrb[0].mxu0
        %v2500 = vadd.f32 %v2226, %v2499
        %2501 = vmatprep.mubr.bf16.mxu0 0
        %2502 = vmatmul.mubr.bf16.gmra.mrb[0].mxu0 %v2184
        %v2503 = vpop.f32.mrb[0].mxu0
        %v2504 = vadd.f32 %v2222, %v2503
        %v2505 = vpop.f32.mrb[0].mxu0
        %v2506 = vadd.f32 %v2226, %v2505
        %v2507 = vpop.f32.mrb[0].mxu0
        %v2508 = vadd.f32 %v2222, %v2507
        %v2509 = vpop.f32.mrb[0].mxu0
        %v2510 = vadd.f32 %v2226, %v2509
        %2511 = vdwg.mxu0
        %2512 = vmatprep.subr.bf16.mxu0 %v2338
        %2513 = vmatpush1.bf16.msra.mxu0 %v2337
        %2514 = vmatprep.subr.bf16.mxu0 %v2342
        %2515 = vmatpush1.bf16.msra.mxu0 %v2341
        %2516 = vmatprep.subr.bf16.mxu0 %v2346
        %2517 = vmatpush1.bf16.msra.mxu0 %v2345
        %2518 = vmatprep.subr.bf16.mxu0 %v2350
        %2519 = vmatpush1.bf16.msra.mxu0 %v2349
        %2520 = vmatprep.subr.bf16.mxu0 %v2354
        %2521 = vmatpush1.bf16.msra.mxu0 %v2353
        %2522 = vmatprep.subr.bf16.mxu0 %v2358
        %2523 = vmatpush1.bf16.msra.mxu0 %v2357
        %2524 = vmatprep.subr.bf16.mxu0 %v2362
        %2525 = vmatpush1.bf16.msra.mxu0 %v2361
        %2526 = vmatprep.subr.bf16.mxu0 %v2366
        %2527 = vmatpush1.bf16.msra.mxu0 %v2365
        %2528 = vmatprep.subr.bf16.mxu0 0
        %2529 = vmatpush1.bf16.msra.mxu0 0
        %2530 = vmatprep.subr.bf16.mxu0 0
        %2531 = vmatpush1.bf16.msra.mxu0 0
        %2532 = vmatprep.subr.bf16.mxu0 0
        %2533 = vmatpush1.bf16.msra.mxu0 0
        %2534 = vmatprep.subr.bf16.mxu0 0
        %2535 = vmatpush1.bf16.msra.mxu0 0
        %2536 = vmatprep.subr.bf16.mxu0 0
        %2537 = vmatpush1.bf16.msra.mxu0 0
        %2538 = vmatprep.subr.bf16.mxu0 0
        %2539 = vmatpush1.bf16.msra.mxu0 0
        %2540 = vmatprep.subr.bf16.mxu0 0
        %2541 = vmatpush1.bf16.msra.mxu0 0
        %2542 = vmatprep.subr.bf16.mxu0 0
        %2543 = vmatpush1.bf16.msra.mxu0 0
        %2544 = vmatprep.mubr.bf16.mxu0 0
        %2545 = vmatmul.mubr.bf16.gmra.mrb[0].mxu0 %v2177
        %v2546 = vpop.f32.mrb[0].mxu0
        %v2547 = vadd.f32 %v2230, %v2546
        %v2548 = vpop.f32.mrb[0].mxu0
        %v2549 = vadd.f32 %v2234, %v2548
        %v2550 = vpop.f32.mrb[0].mxu0
        %v2551 = vadd.f32 %v2230, %v2550
        %v2552 = vpop.f32.mrb[0].mxu0
        %v2553 = vadd.f32 %v2234, %v2552
        %2554 = vmatprep.mubr.bf16.mxu0 0
        %2555 = vmatmul.mubr.bf16.gmra.mrb[0].mxu0 %v2178
        %v2556 = vpop.f32.mrb[0].mxu0
        %v2557 = vadd.f32 %v2230, %v2556
        %v2558 = vpop.f32.mrb[0].mxu0
        %v2559 = vadd.f32 %v2234, %v2558
        %v2560 = vpop.f32.mrb[0].mxu0
        %v2561 = vadd.f32 %v2230, %v2560
        %v2562 = vpop.f32.mrb[0].mxu0
        %v2563 = vadd.f32 %v2234, %v2562
        %2564 = vmatprep.mubr.bf16.mxu0 0
        %2565 = vmatmul.mubr.bf16.gmra.mrb[0].mxu0 %v2179
        %v2566 = vpop.f32.mrb[0].mxu0
        %v2567 = vadd.f32 %v2230, %v2566
        %v2568 = vpop.f32.mrb[0].mxu0
        %v2569 = vadd.f32 %v2234, %v2568
        %v2570 = vpop.f32.mrb[0].mxu0
        %v2571 = vadd.f32 %v2230, %v2570
        %v2572 = vpop.f32.mrb[0].mxu0
        %v2573 = vadd.f32 %v2234, %v2572
        %2574 = vmatprep.mubr.bf16.mxu0 0
        %2575 = vmatmul.mubr.bf16.gmra.mrb[0].mxu0 %v2180
        %v2576 = vpop.f32.mrb[0].mxu0
        %v2577 = vadd.f32 %v2230, %v2576
        %v2578 = vpop.f32.mrb[0].mxu0
        %v2579 = vadd.f32 %v2234, %v2578
        %v2580 = vpop.f32.mrb[0].mxu0
        %v2581 = vadd.f32 %v2230, %v2580
        %v2582 = vpop.f32.mrb[0].mxu0
        %v2583 = vadd.f32 %v2234, %v2582
        %2584 = vmatprep.mubr.bf16.mxu0 0
        %2585 = vmatmul.mubr.bf16.gmra.mrb[0].mxu0 %v2181
        %v2586 = vpop.f32.mrb[0].mxu0
        %v2587 = vadd.f32 %v2230, %v2586
        %v2588 = vpop.f32.mrb[0].mxu0
        %v2589 = vadd.f32 %v2234, %v2588
        %v2590 = vpop.f32.mrb[0].mxu0
        %v2591 = vadd.f32 %v2230, %v2590
        %v2592 = vpop.f32.mrb[0].mxu0
        %v2593 = vadd.f32 %v2234, %v2592
        %2594 = vmatprep.mubr.bf16.mxu0 0
        %2595 = vmatmul.mubr.bf16.gmra.mrb[0].mxu0 %v2182
        %v2596 = vpop.f32.mrb[0].mxu0
        %v2597 = vadd.f32 %v2230, %v2596
        %v2598 = vpop.f32.mrb[0].mxu0
        %v2599 = vadd.f32 %v2234, %v2598
        %v2600 = vpop.f32.mrb[0].mxu0
        %v2601 = vadd.f32 %v2230, %v2600
        %v2602 = vpop.f32.mrb[0].mxu0
        %v2603 = vadd.f32 %v2234, %v2602
        %2604 = vmatprep.mubr.bf16.mxu0 0
        %2605 = vmatmul.mubr.bf16.gmra.mrb[0].mxu0 %v2183
        %v2606 = vpop.f32.mrb[0].mxu0
        %v2607 = vadd.f32 %v2230, %v2606
        %v2608 = vpop.f32.mrb[0].mxu0
        %v2609 = vadd.f32 %v2234, %v2608
        %v2610 = vpop.f32.mrb[0].mxu0
        %v2611 = vadd.f32 %v2230, %v2610
        %v2612 = vpop.f32.mrb[0].mxu0
        %v2613 = vadd.f32 %v2234, %v2612
        %2614 = vmatprep.mubr.bf16.mxu0 0
        %2615 = vmatmul.mubr.bf16.gmra.mrb[0].mxu0 %v2184
        %v2616 = vpop.f32.mrb[0].mxu0
        %v2617 = vadd.f32 %v2230, %v2616
        %v2618 = vpop.f32.mrb[0].mxu0
        %v2619 = vadd.f32 %v2234, %v2618
        %v2620 = vpop.f32.mrb[0].mxu0
        %v2621 = vadd.f32 %v2230, %v2620
        %v2622 = vpop.f32.mrb[0].mxu0
        %v2623 = vadd.f32 %v2234, %v2622
        %2624 = vdwg.mxu0
        %vm2625 = vcmp.ge.f32.partialorder %v2547, 0.0
        %vm2626 = vcmp.ge.f32.partialorder %v2549, 0.0
        %vm2627 = vcmp.ge.f32.partialorder %v2551, 0.0
        %vm2628 = vcmp.ge.f32.partialorder %v2553, 0.0
        %vm2629 = vcmp.ge.f32.partialorder %v2557, 0.0
        %vm2630 = vcmp.ge.f32.partialorder %v2559, 0.0
        %vm2631 = vcmp.ge.f32.partialorder %v2561, 0.0
        %vm2632 = vcmp.ge.f32.partialorder %v2563, 0.0
        %vm2633 = vcmp.ge.f32.partialorder %v2567, 0.0
        %vm2634 = vcmp.ge.f32.partialorder %v2569, 0.0
        %vm2635 = vcmp.ge.f32.partialorder %v2571, 0.0
        %vm2636 = vcmp.ge.f32.partialorder %v2573, 0.0
        %vm2637 = vcmp.ge.f32.partialorder %v2577, 0.0
        %vm2638 = vcmp.ge.f32.partialorder %v2579, 0.0
        %vm2639 = vcmp.ge.f32.partialorder %v2581, 0.0
        %vm2640 = vcmp.ge.f32.partialorder %v2583, 0.0
        %vm2641 = vcmp.ge.f32.partialorder %v2587, 0.0
        %vm2642 = vcmp.ge.f32.partialorder %v2589, 0.0
        %vm2643 = vcmp.ge.f32.partialorder %v2591, 0.0
        %vm2644 = vcmp.ge.f32.partialorder %v2593, 0.0
        %vm2645 = vcmp.ge.f32.partialorder %v2597, 0.0
        %vm2646 = vcmp.ge.f32.partialorder %v2599, 0.0
        %vm2647 = vcmp.ge.f32.partialorder %v2601, 0.0
        %vm2648 = vcmp.ge.f32.partialorder %v2603, 0.0
        %vm2649 = vcmp.ge.f32.partialorder %v2607, 0.0
        %vm2650 = vcmp.ge.f32.partialorder %v2609, 0.0
        %vm2651 = vcmp.ge.f32.partialorder %v2611, 0.0
        %vm2652 = vcmp.ge.f32.partialorder %v2613, 0.0
        %vm2653 = vcmp.ge.f32.partialorder %v2617, 0.0
        %vm2654 = vcmp.ge.f32.partialorder %v2619, 0.0
        %vm2655 = vcmp.ge.f32.partialorder %v2621, 0.0
        %vm2656 = vcmp.ge.f32.partialorder %v2623, 0.0
        %v2657 = vmul.f32 %v2547, 0.1
        %v2658 = vmul.f32 %v2549, 0.1
        %v2659 = vmul.f32 %v2551, 0.1
        %v2660 = vmul.f32 %v2553, 0.1
        %v2661 = vmul.f32 %v2557, 0.1
        %v2662 = vmul.f32 %v2559, 0.1
        %v2663 = vmul.f32 %v2561, 0.1
        %v2664 = vmul.f32 %v2563, 0.1
        %v2665 = vmul.f32 %v2567, 0.1
        %v2666 = vmul.f32 %v2569, 0.1
        %v2667 = vmul.f32 %v2571, 0.1
        %v2668 = vmul.f32 %v2573, 0.1
        %v2669 = vmul.f32 %v2577, 0.1
        %v2670 = vmul.f32 %v2579, 0.1
        %v2671 = vmul.f32 %v2581, 0.1
        %v2672 = vmul.f32 %v2583, 0.1
        %v2673 = vmul.f32 %v2587, 0.1
        %v2674 = vmul.f32 %v2589, 0.1
        %v2675 = vmul.f32 %v2591, 0.1
        %v2676 = vmul.f32 %v2593, 0.1
        %v2677 = vmul.f32 %v2597, 0.1
        %v2678 = vmul.f32 %v2599, 0.1
        %v2679 = vmul.f32 %v2601, 0.1
        %v2680 = vmul.f32 %v2603, 0.1
        %v2681 = vmul.f32 %v2607, 0.1
        %v2682 = vmul.f32 %v2609, 0.1
        %v2683 = vmul.f32 %v2611, 0.1
        %v2684 = vmul.f32 %v2613, 0.1
        %v2685 = vmul.f32 %v2617, 0.1
        %v2686 = vmul.f32 %v2619, 0.1
        %v2687 = vmul.f32 %v2621, 0.1
        %v2688 = vmul.f32 %v2623, 0.1
        %v2689 = vsel %vm2625, %v2547, %v2657
        %v2690 = vsel %vm2626, %v2549, %v2658
        %v2691 = vsel %vm2627, %v2551, %v2659
        %v2692 = vsel %vm2628, %v2553, %v2660
        %v2693 = vsel %vm2629, %v2557, %v2661
        %v2694 = vsel %vm2630, %v2559, %v2662
        %v2695 = vsel %vm2631, %v2561, %v2663
        %v2696 = vsel %vm2632, %v2563, %v2664
        %v2697 = vsel %vm2633, %v2567, %v2665
        %v2698 = vsel %vm2634, %v2569, %v2666
        %v2699 = vsel %vm2635, %v2571, %v2667
        %v2700 = vsel %vm2636, %v2573, %v2668
        %v2701 = vsel %vm2637, %v2577, %v2669
        %v2702 = vsel %vm2638, %v2579, %v2670
        %v2703 = vsel %vm2639, %v2581, %v2671
        %v2704 = vsel %vm2640, %v2583, %v2672
        %v2705 = vsel %vm2641, %v2587, %v2673
        %v2706 = vsel %vm2642, %v2589, %v2674
        %v2707 = vsel %vm2643, %v2591, %v2675
        %v2708 = vsel %vm2644, %v2593, %v2676
        %v2709 = vsel %vm2645, %v2597, %v2677
        %v2710 = vsel %vm2646, %v2599, %v2678
        %v2711 = vsel %vm2647, %v2601, %v2679
        %v2712 = vsel %vm2648, %v2603, %v2680
        %v2713 = vsel %vm2649, %v2607, %v2681
        %v2714 = vsel %vm2650, %v2609, %v2682
        %v2715 = vsel %vm2651, %v2611, %v2683
        %v2716 = vsel %vm2652, %v2613, %v2684
        %v2717 = vsel %vm2653, %v2617, %v2685
        %v2718 = vsel %vm2654, %v2619, %v2686
        %v2719 = vsel %vm2655, %v2621, %v2687
        %v2720 = vsel %vm2656, %v2623, %v2688
        %v2721 = vmul.f32 %v2434, %v2689
        %v2722 = vmul.f32 %v2436, %v2690
        %v2723 = vmul.f32 %v2438, %v2691
        %v2724 = vmul.f32 %v2440, %v2692
        %v2725 = vmul.f32 %v2444, %v2693
        %v2726 = vmul.f32 %v2446, %v2694
        %v2727 = vmul.f32 %v2448, %v2695
        %v2728 = vmul.f32 %v2450, %v2696
        %v2729 = vmul.f32 %v2454, %v2697
        %v2730 = vmul.f32 %v2456, %v2698
        %v2731 = vmul.f32 %v2458, %v2699
        %v2732 = vmul.f32 %v2460, %v2700
        %v2733 = vmul.f32 %v2464, %v2701
        %v2734 = vmul.f32 %v2466, %v2702
        %v2735 = vmul.f32 %v2468, %v2703
        %v2736 = vmul.f32 %v2470, %v2704
        %v2737 = vmul.f32 %v2474, %v2705
        %v2738 = vmul.f32 %v2476, %v2706
        %v2739 = vmul.f32 %v2478, %v2707
        %v2740 = vmul.f32 %v2480, %v2708
        %v2741 = vmul.f32 %v2484, %v2709
        %v2742 = vmul.f32 %v2486, %v2710
        %v2743 = vmul.f32 %v2488, %v2711
        %v2744 = vmul.f32 %v2490, %v2712
        %v2745 = vmul.f32 %v2494, %v2713
        %v2746 = vmul.f32 %v2496, %v2714
        %v2747 = vmul.f32 %v2498, %v2715
        %v2748 = vmul.f32 %v2500, %v2716
        %v2749 = vmul.f32 %v2504, %v2717
        %v2750 = vmul.f32 %v2506, %v2718
        %v2751 = vmul.f32 %v2508, %v2719
        %v2752 = vmul.f32 %v2510, %v2720
        %v2753 = vpack.c.bf16 %v2723, %v2721
        %v2754 = vpack.c.bf16 %v2724, %v2722
        %v2755 = vpack.c.bf16 %v2727, %v2725
        %v2756 = vpack.c.bf16 %v2728, %v2726
        %v2757 = vpack.c.bf16 %v2731, %v2729
        %v2758 = vpack.c.bf16 %v2732, %v2730
        %v2759 = vpack.c.bf16 %v2735, %v2733
        %v2760 = vpack.c.bf16 %v2736, %v2734
        %v2761 = vpack.c.bf16 %v2739, %v2737
        %v2762 = vpack.c.bf16 %v2740, %v2738
        %v2763 = vpack.c.bf16 %v2743, %v2741
        %v2764 = vpack.c.bf16 %v2744, %v2742
        %v2765 = vpack.c.bf16 %v2747, %v2745
        %v2766 = vpack.c.bf16 %v2748, %v2746
        %v2767 = vpack.c.bf16 %v2751, %v2749
        %v2768 = vpack.c.bf16 %v2752, %v2750
        %v2769 = vld [vmem:[#allocation25] sm:$0xf]
        %v2770 = vld [vmem:[#allocation25 + $0x4] sm:$0xf]
        %v2771 = vld [vmem:[#allocation25 + $0x8] sm:$0xf]
        %v2772 = vld [vmem:[#allocation25 + $0xc] sm:$0xf]
        %v2773 = vld [vmem:[#allocation25 + $0x10] sm:$0xf]
        %v2774 = vld [vmem:[#allocation25 + $0x14] sm:$0xf]
        %v2775 = vld [vmem:[#allocation25 + $0x18] sm:$0xf]
        %v2776 = vld [vmem:[#allocation25 + $0x1c] sm:$0xf]
        %v2777 = vld [vmem:[#allocation25 + $0x20] sm:$0xf]
        %v2778 = vld [vmem:[#allocation25 + $0x24] sm:$0xf]
        %v2779 = vld [vmem:[#allocation25 + $0x28] sm:$0xf]
        %v2780 = vld [vmem:[#allocation25 + $0x2c] sm:$0xf]
        %v2781 = vld [vmem:[#allocation25 + $0x30] sm:$0xf]
        %v2782 = vld [vmem:[#allocation25 + $0x34] sm:$0xf]
        %v2783 = vld [vmem:[#allocation25 + $0x38] sm:$0xf]
        %v2784 = vld [vmem:[#allocation25 + $0x3c] sm:$0xf]
        %v2785 = vld [vmem:[#allocation25 + $0x40] sm:$0xf]
        %v2786 = vld [vmem:[#allocation25 + $0x44] sm:$0xf]
        %v2787 = vld [vmem:[#allocation25 + $0x48] sm:$0xf]
        %v2788 = vld [vmem:[#allocation25 + $0x4c] sm:$0xf]
        %v2789 = vld [vmem:[#allocation25 + $0x50] sm:$0xf]
        %v2790 = vld [vmem:[#allocation25 + $0x54] sm:$0xf]
        %v2791 = vld [vmem:[#allocation25 + $0x58] sm:$0xf]
        %v2792 = vld [vmem:[#allocation25 + $0x5c] sm:$0xf]
        %v2793 = vld [vmem:[#allocation25 + $0x60] sm:$0xf]
        %v2794 = vld [vmem:[#allocation25 + $0x64] sm:$0xf]
        %v2795 = vld [vmem:[#allocation25 + $0x68] sm:$0xf]
        %v2796 = vld [vmem:[#allocation25 + $0x6c] sm:$0xf]
        %v2797 = vld [vmem:[#allocation25 + $0x70] sm:$0xf]
        %v2798 = vld [vmem:[#allocation25 + $0x74] sm:$0xf]
        %v2799 = vld [vmem:[#allocation25 + $0x78] sm:$0xf]
        %v2800 = vld [vmem:[#allocation25 + $0x7c] sm:$0xf]
        %v2801 = vld [vmem:[#allocation26] sm:$0x1]
        %v2803 = vlaneseq
        %v2804 = vshrl.u32 %v2803, 7
        %v2805 = vsub.s32 0, %v2804
        %v2806 = vrot.slane %v2801, %v2805
        %v2840 = vunpack.c.l.b16 %v2769
        %v2841 = vunpack.c.l.b16 %v2770
        %v2842 = vunpack.c.l.b16 %v2771
        %v2843 = vunpack.c.l.b16 %v2772
        %v2844 = vunpack.c.l.b16 %v2773
        %v2845 = vunpack.c.l.b16 %v2774
        %v2846 = vunpack.c.l.b16 %v2775
        %v2847 = vunpack.c.l.b16 %v2776
        %v2848 = vunpack.c.l.b16 %v2777
        %v2849 = vunpack.c.l.b16 %v2778
        %v2850 = vunpack.c.l.b16 %v2779
        %v2851 = vunpack.c.l.b16 %v2780
        %v2852 = vunpack.c.l.b16 %v2781
        %v2853 = vunpack.c.l.b16 %v2782
        %v2854 = vunpack.c.l.b16 %v2783
        %v2855 = vunpack.c.l.b16 %v2784
        %v2856 = vunpack.c.l.b16 %v2785
        %v2857 = vunpack.c.l.b16 %v2786
        %v2858 = vunpack.c.l.b16 %v2787
        %v2859 = vunpack.c.l.b16 %v2788
        %v2860 = vunpack.c.l.b16 %v2789
        %v2861 = vunpack.c.l.b16 %v2790
        %v2862 = vunpack.c.l.b16 %v2791
        %v2863 = vunpack.c.l.b16 %v2792
        %v2864 = vunpack.c.l.b16 %v2793
        %v2865 = vunpack.c.l.b16 %v2794
        %v2866 = vunpack.c.l.b16 %v2795
        %v2867 = vunpack.c.l.b16 %v2796
        %v2868 = vunpack.c.l.b16 %v2797
        %v2869 = vunpack.c.l.b16 %v2798
        %v2870 = vunpack.c.l.b16 %v2799
        %v2871 = vunpack.c.l.b16 %v2800
        %v2872 = vpack.c.b16 %v2841, %v2840
        %v2873 = vpack.c.b16 %v2843, %v2842
        %v2874 = vpack.c.b16 %v2845, %v2844
        %v2875 = vpack.c.b16 %v2847, %v2846
        %v2876 = vpack.c.b16 %v2849, %v2848
        %v2877 = vpack.c.b16 %v2851, %v2850
        %v2878 = vpack.c.b16 %v2853, %v2852
        %v2879 = vpack.c.b16 %v2855, %v2854
        %v2880 = vpack.c.b16 %v2857, %v2856
        %v2881 = vpack.c.b16 %v2859, %v2858
        %v2882 = vpack.c.b16 %v2861, %v2860
        %v2883 = vpack.c.b16 %v2863, %v2862
        %v2884 = vpack.c.b16 %v2865, %v2864
        %v2885 = vpack.c.b16 %v2867, %v2866
        %v2886 = vpack.c.b16 %v2869, %v2868
        %v2887 = vpack.c.b16 %v2871, %v2870
        %2904 = vmatprep.subr.bf16.mxu0 0
        %2905 = vmatpush1.bf16.msra.mxu0 %v2872
        %2906 = vmatprep.subr.bf16.mxu0 0
        %2907 = vmatpush1.bf16.msra.mxu0 %v2873
        %2908 = vmatprep.subr.bf16.mxu0 0
        %2909 = vmatpush1.bf16.msra.mxu0 %v2874
        %2910 = vmatprep.subr.bf16.mxu0 0
        %2911 = vmatpush1.bf16.msra.mxu0 %v2875
        %2912 = vmatprep.subr.bf16.mxu0 0
        %2913 = vmatpush1.bf16.msra.mxu0 %v2876
        %2914 = vmatprep.subr.bf16.mxu0 0
        %2915 = vmatpush1.bf16.msra.mxu0 %v2877
        %2916 = vmatprep.subr.bf16.mxu0 0
        %2917 = vmatpush1.bf16.msra.mxu0 %v2878
        %2918 = vmatprep.subr.bf16.mxu0 0
        %2919 = vmatpush1.bf16.msra.mxu0 %v2879
        %2920 = vmatprep.subr.bf16.mxu0 0
        %2921 = vmatpush1.bf16.msra.mxu0 %v2880
        %2922 = vmatprep.subr.bf16.mxu0 0
        %2923 = vmatpush1.bf16.msra.mxu0 %v2881
        %2924 = vmatprep.subr.bf16.mxu0 0
        %2925 = vmatpush1.bf16.msra.mxu0 %v2882
        %2926 = vmatprep.subr.bf16.mxu0 0
        %2927 = vmatpush1.bf16.msra.mxu0 %v2883
        %2928 = vmatprep.subr.bf16.mxu0 0
        %2929 = vmatpush1.bf16.msra.mxu0 %v2884
        %2930 = vmatprep.subr.bf16.mxu0 0
        %2931 = vmatpush1.bf16.msra.mxu0 %v2885
        %2932 = vmatprep.subr.bf16.mxu0 0
        %2933 = vmatpush1.bf16.msra.mxu0 %v2886
        %2934 = vmatprep.subr.bf16.mxu0 0
        %2935 = vmatpush1.bf16.msra.mxu0 %v2887
        %2936 = vmatprep.mubr.bf16.mxu0 %v2754
        %2937 = vmatmul.mubr.bf16.gmra.mrb[0].mxu0 %v2753
        %v2938 = vpop.f32.mrb[0].mxu0
        %v2939 = vadd.f32 %v2806, %v2938
        %v2940 = vpop.f32.mrb[0].mxu0
        %v2941 = vpop.f32.mrb[0].mxu0
        %v2942 = vadd.f32 %v2806, %v2941
        %v2943 = vpop.f32.mrb[0].mxu0
        %2944 = vmatprep.mubr.bf16.mxu0 %v2756
        %2945 = vmatmul.mubr.bf16.gmra.mrb[0].mxu0 %v2755
        %v2946 = vpop.f32.mrb[0].mxu0
        %v2947 = vadd.f32 %v2806, %v2946
        %v2948 = vpop.f32.mrb[0].mxu0
        %v2949 = vpop.f32.mrb[0].mxu0
        %v2950 = vadd.f32 %v2806, %v2949
        %v2951 = vpop.f32.mrb[0].mxu0
        %2952 = vmatprep.mubr.bf16.mxu0 %v2758
        %2953 = vmatmul.mubr.bf16.gmra.mrb[0].mxu0 %v2757
        %v2954 = vpop.f32.mrb[0].mxu0
        %v2955 = vadd.f32 %v2806, %v2954
        %v2956 = vpop.f32.mrb[0].mxu0
        %v2957 = vpop.f32.mrb[0].mxu0
        %v2958 = vadd.f32 %v2806, %v2957
        %v2959 = vpop.f32.mrb[0].mxu0
        %2960 = vmatprep.mubr.bf16.mxu0 %v2760
        %2961 = vmatmul.mubr.bf16.gmra.mrb[0].mxu0 %v2759
        %v2962 = vpop.f32.mrb[0].mxu0
        %v2963 = vadd.f32 %v2806, %v2962
        %v2964 = vpop.f32.mrb[0].mxu0
        %v2965 = vpop.f32.mrb[0].mxu0
        %v2966 = vadd.f32 %v2806, %v2965
        %v2967 = vpop.f32.mrb[0].mxu0
        %2968 = vmatprep.mubr.bf16.mxu0 %v2762
        %2969 = vmatmul.mubr.bf16.gmra.mrb[0].mxu0 %v2761
        %v2970 = vpop.f32.mrb[0].mxu0
        %v2971 = vadd.f32 %v2806, %v2970
        %v2972 = vpop.f32.mrb[0].mxu0
        %v2973 = vpop.f32.mrb[0].mxu0
        %v2974 = vadd.f32 %v2806, %v2973
        %v2975 = vpop.f32.mrb[0].mxu0
        %2976 = vmatprep.mubr.bf16.mxu0 %v2764
        %2977 = vmatmul.mubr.bf16.gmra.mrb[0].mxu0 %v2763
        %v2978 = vpop.f32.mrb[0].mxu0
        %v2979 = vadd.f32 %v2806, %v2978
        %v2980 = vpop.f32.mrb[0].mxu0
        %v2981 = vpop.f32.mrb[0].mxu0
        %v2982 = vadd.f32 %v2806, %v2981
        %v2983 = vpop.f32.mrb[0].mxu0
        %2984 = vmatprep.mubr.bf16.mxu0 %v2766
        %2985 = vmatmul.mubr.bf16.gmra.mrb[0].mxu0 %v2765
        %v2986 = vpop.f32.mrb[0].mxu0
        %v2987 = vadd.f32 %v2806, %v2986
        %v2988 = vpop.f32.mrb[0].mxu0
        %v2989 = vpop.f32.mrb[0].mxu0
        %v2990 = vadd.f32 %v2806, %v2989
        %v2991 = vpop.f32.mrb[0].mxu0
        %2992 = vmatprep.mubr.bf16.mxu0 %v2768
        %2993 = vmatmul.mubr.bf16.gmra.mrb[0].mxu0 %v2767
        %v2994 = vpop.f32.mrb[0].mxu0
        %v2995 = vadd.f32 %v2806, %v2994
        %v2996 = vpop.f32.mrb[0].mxu0
        %v2997 = vpop.f32.mrb[0].mxu0
        %v2998 = vadd.f32 %v2806, %v2997
        %v2999 = vpop.f32.mrb[0].mxu0
        %3000 = vdwg.mxu0
        %v3001 = vadd.f32 %v2161, %v2939
        %v3002 = vadd.f32 %v2162, %v2942
        %v3003 = vadd.f32 %v2163, %v2947
        %v3004 = vadd.f32 %v2164, %v2950
        %v3005 = vadd.f32 %v2165, %v2955
        %v3006 = vadd.f32 %v2166, %v2958
        %v3007 = vadd.f32 %v2167, %v2963
        %v3008 = vadd.f32 %v2168, %v2966
        %v3009 = vadd.f32 %v2169, %v2971
        %v3010 = vadd.f32 %v2170, %v2974
        %v3011 = vadd.f32 %v2171, %v2979
        %v3012 = vadd.f32 %v2172, %v2982
        %v3013 = vadd.f32 %v2173, %v2987
        %v3014 = vadd.f32 %v2174, %v2990
        %v3015 = vadd.f32 %v2175, %v2995
        %v3016 = vadd.f32 %v2176, %v2998
        %3017 = vst [vmem:[%s869] sm:$0xff] %v3001
        %3018 = vst [vmem:[%s869 + $0x8] sm:$0xff] %v3002
        %3019 = vst [vmem:[%s869 + $0x10] sm:$0xff] %v3003
        %3020 = vst [vmem:[%s869 + $0x18] sm:$0xff] %v3004
        %3021 = vst [vmem:[%s869 + $0x20] sm:$0xff] %v3005
        %3022 = vst [vmem:[%s869 + $0x28] sm:$0xff] %v3006
        %3023 = vst [vmem:[%s869 + $0x30] sm:$0xff] %v3007
        %3024 = vst [vmem:[%s869 + $0x38] sm:$0xff] %v3008
        %3025 = vst [vmem:[%s869 + $0x40] sm:$0xff] %v3009
        %3026 = vst [vmem:[%s869 + $0x48] sm:$0xff] %v3010
        %3027 = vst [vmem:[%s869 + $0x50] sm:$0xff] %v3011
        %3028 = vst [vmem:[%s869 + $0x58] sm:$0xff] %v3012
        %3029 = vst [vmem:[%s869 + $0x60] sm:$0xff] %v3013
        %3030 = vst [vmem:[%s869 + $0x68] sm:$0xff] %v3014
        %3031 = vst [vmem:[%s869 + $0x70] sm:$0xff] %v3015
        %3032 = vst [vmem:[%s869 + $0x78] sm:$0xff] %v3016
        %s3033 = sand.u32 %s445, 1
        %s3034 = scalar_lea.sflag [#allocation4], %s3033
        %s3035 = sand.u32 %s445, 1
        %s3036 = smul.addr %s3035, 128
        %s3037 = scalar_lea.vmem [#allocation28], %s3036
        // Predicated region
        $region149: #{tpu_custom_call.1} parent=83 // pred_check
          %p3038 = pneg %p455
        $region150: #{tpu_custom_call.1} parent=83 // pred_check_branch
          %3040 = sbr.rel (%p3038) target = $region152
        $region151: #{tpu_custom_call.1} parent=83 // pred_region
          %s3041 = smul.u32 8, %s50
          %s3043 = ssub.s32 2048, 2048
          %3044 = vsyncadd %s3034, %s3043
          %s3045 = smul.addr %s3041, 2
          %s3046 = smul.addr %s49, 32
          %s3047 = sadd.s32 %s3045, %s3046
          %s3048 = smul.addr %s3047, 128
          %s3049 = scalar_lea.hbm %s16, %s3048
          %s3050 = sshll.u32 %s3037, 4
          %s3051 = int_to_ptr.vmem [resolvable:$true] %s3050
          %3056 = dma.vmem_to_hbm [thread:$0]  %s3051, 2048, %s3049, %s3034, 128, 128, 8
        $region152: #{tpu_custom_call.1} parent=83 // pred_fallthru
          _
      $region84: #{tpu_custom_call.1} parent=5 // pred_fallthru
        _
      %p3057 = scmp.le.s32.totalorder 2, %s40
      // Predicated region
      $region153: #{tpu_custom_call.1} parent=5 // pred_check
        %p3058 = pneg %p3057
      $region154: #{tpu_custom_call.1} parent=5 // pred_check_branch
        %3060 = sbr.rel (%p3058) target = $region156
      $region155: #{tpu_custom_call.1} parent=5 // pred_region
        %s3061 = ssub.s32 %s40, 2
        // Predicated region
        $region157: #{tpu_custom_call.1} parent=155 // pred_check
          %p3062 = pneg %p461
        $region158: #{tpu_custom_call.1} parent=155 // pred_check_branch
          %3064 = sbr.rel (%p3062) target = $region160
        $region159: #{tpu_custom_call.1} parent=155 // pred_region
          %s3065 = sand.u32 %s446, 1
          %s3066 = scalar_lea.sflag [#allocation4], %s3065
          %s3067 = sand.u32 %s446, 1
          %s3068 = smul.addr %s3067, 128
          %s3069 = scalar_lea.vmem [#allocation28], %s3068
          %3070 = dma.done %s3066, 2048
        $region160: #{tpu_custom_call.1} parent=155 // pred_fallthru
          _
      $region156: #{tpu_custom_call.1} parent=5 // pred_fallthru
        _
    $region6: #{tpu_custom_call.1} parent=1 // loop_footer
      %s44 = sadd.s32 1, %s40
    $region7: #{tpu_custom_call.1} parent=1 // loop_footer_branch
      %39 = sbr.rel target = $region3
    $region8: #{tpu_custom_call.1} parent=1 // loop_exit
      _
    %3071 = vsyncpa [#allocation3], 1
    %s3072 = scalar_lea.sflag [#allocation3], 1
    %3073 = vsyncpa %s3072, 1
    %3074 = vsyncpa [#allocation6], 1
    %s3075 = scalar_lea.sflag [#allocation6], 1
    %3076 = vsyncpa %s3075, 1
    %3077 = vsyncpa [#allocation9], 1
    %s3078 = scalar_lea.sflag [#allocation9], 1
    %3079 = vsyncpa %s3078, 1
    %3080 = vsyncpa [#allocation12], 1
    %3081 = vsyncpa [#allocation15], 1
    %3082 = vsyncpa [#allocation18], 1
    %3083 = vsyncpa [#allocation21], 1
    %3084 = vsyncpa [#allocation24], 1
    %3085 = vsyncpa [#allocation27], 1
    %3086 = vsyncpa [#allocation4], 1
    %s3087 = scalar_lea.sflag [#allocation4], 1
    %3088 = vsyncpa %s3087, 1

</llo_original>
